<compile_context>
chip_gen: v7x
topology: tpu7x:2x2x1
jax: 0.10.0
libtpu: 0.0.40
codegen_flags: <defaults>
</compile_context>

<pallas_src>
import functools

import jax
import jax.numpy as jnp
from jax.experimental import pallas as pl
from jax.experimental.pallas import tpu as pltpu

EPS = 1e-5  # nn.GroupNorm default eps


def _round_up(a, b):
    return (a + b - 1) // b * b


def _lrelu(x):
    # Net.LeakyReLU:  (x > 0.1x)*x + (x < 0.1x)*0.1x  ==  select on sign(x).
    return jnp.where(x > 0, x, 0.1 * x)


# ------------------------------ fused kernel ---------------------------------

def _net_kernel(x_ref,
                band_ref, se1_ref, so1_ref, b1_ref, g1_ref, be1_ref, m1_ref,
                w2_ref, se2_ref, so2_ref, b2_ref, g2_ref, be2_ref, m2_ref,
                wf1_ref, bf1_ref, gf_ref, bef_ref, mf_ref, wf2_ref, bf2_ref,
                o_ref, y_scr):
    """Whole Net forward for one batch tile.

    x_ref    : (28, NB, 28)   input images, H-major (H, n, W)
    band_ref : (5, 28, 240)   bf16 conv1 band matrices; out lanes = c*24 + w
    se1/so1  : (240, 120)     stage-1 width-pool 0/1 selectors
    b1/g1/be1: (1,240)/(1,120)/(1,120)   conv1 bias, GN(2,10) gamma/beta per lane
    m1_ref   : (2, 120)       GN(2,10) group lane masks
    w2_ref   : (5, 120, 160)  bf16 conv2 band matrices; out lanes = w_out*20 + c_out
    se2/so2  : (160, 80)      stage-2 width-pool 0/1 selectors
    b2/g2/be2: (1,160)/(1,80)/(1,80)
    m2_ref   : (4, 80)        GN(4,20) group lane masks
    wf1_ref  : (4, 80, 64)    bf16 fc1 weights per pooled row (out padded 50->64)
    bf1/gf/bef: (1, 64)
    mf_ref   : (10, 64)       GN(10,50) group masks (zero on padded lanes)
    wf2_ref  : (64, 10)       fc2 weights (zero-padded rows)
    bf2_ref  : (1, 10)
    o_ref    : (NB, 10)       log-probabilities
    y_scr    : (12, NB, 120)  VMEM scratch holding stage-1 activations
    """
    nb = x_ref.shape[1]

    # ---- stage 1: conv1 + 2x2 maxpool + GroupNorm(2,10) + LeakyReLU ----
    acc = jnp.zeros((24 * nb, 240), jnp.float32)
    for kh in range(5):
        xs = x_ref[kh:kh + 24, :, :].reshape(24 * nb, 28)
        acc = acc + jnp.dot(xs.astype(jnp.bfloat16), band_ref[kh],
                            preferred_element_type=jnp.float32)
    acc = acc + b1_ref[...]

    wp = jnp.maximum(
        jnp.dot(acc, se1_ref[...], preferred_element_type=jnp.float32),
        jnp.dot(acc, so1_ref[...], preferred_element_type=jnp.float32))
    wp3 = wp.reshape(24, nb, 120)
    pooled = [jnp.maximum(wp3[2 * h], wp3[2 * h + 1]) for h in range(12)]

    m1 = m1_ref[...]
    s_lane = pooled[0]
    for h in range(1, 12):
        s_lane = s_lane + pooled[h]
    mean_lane = jnp.zeros_like(s_lane)
    for g in range(2):
        mg = m1[g:g + 1, :]
        mean_lane = mean_lane + (
            jnp.sum(s_lane * mg, axis=-1, keepdims=True) * (1.0 / 720.0)) * mg
    cent = [p - mean_lane for p in pooled]
    sq_lane = cent[0] * cent[0]
    for h in range(1, 12):
        sq_lane = sq_lane + cent[h] * cent[h]
    var_lane = jnp.zeros_like(sq_lane)
    for g in range(2):
        mg = m1[g:g + 1, :]
        var_lane = var_lane + (
            jnp.sum(sq_lane * mg, axis=-1, keepdims=True) * (1.0 / 720.0)) * mg
    rstd = jax.lax.rsqrt(var_lane + EPS)
    gam = g1_ref[...]
    bet = be1_ref[...]
    for h in range(12):
        y_scr[h] = _lrelu(cent[h] * rstd * gam + bet)

    # ---- stage 2: conv2 + maxpool + GN(4,20) + LeakyReLU ----
    acc2 = jnp.zeros((8 * nb, 160), jnp.float32)
    for kh in range(5):
        ys = y_scr[kh:kh + 8, :, :].reshape(8 * nb, 120)
        acc2 = acc2 + jnp.dot(ys.astype(jnp.bfloat16), w2_ref[kh],
                              preferred_element_type=jnp.float32)
    acc2 = acc2 + b2_ref[...]

    wp2 = jnp.maximum(
        jnp.dot(acc2, se2_ref[...], preferred_element_type=jnp.float32),
        jnp.dot(acc2, so2_ref[...], preferred_element_type=jnp.float32))
    wp2r = wp2.reshape(8, nb, 80)
    pooled2 = [jnp.maximum(wp2r[2 * h], wp2r[2 * h + 1]) for h in range(4)]

    m2 = m2_ref[...]
    s_lane = pooled2[0] + pooled2[1] + pooled2[2] + pooled2[3]
    mean_lane = jnp.zeros_like(s_lane)
    for g in range(4):
        mg = m2[g:g + 1, :]
        mean_lane = mean_lane + (
            jnp.sum(s_lane * mg, axis=-1, keepdims=True) * (1.0 / 80.0)) * mg
    cent2 = [p - mean_lane for p in pooled2]
    sq_lane = (cent2[0] * cent2[0] + cent2[1] * cent2[1]
               + cent2[2] * cent2[2] + cent2[3] * cent2[3])
    var_lane = jnp.zeros_like(sq_lane)
    for g in range(4):
        mg = m2[g:g + 1, :]
        var_lane = var_lane + (
            jnp.sum(sq_lane * mg, axis=-1, keepdims=True) * (1.0 / 80.0)) * mg
    rstd2 = jax.lax.rsqrt(var_lane + EPS)
    g2 = g2_ref[...]
    be2 = be2_ref[...]
    act = [_lrelu(c * rstd2 * g2 + be2) for c in cent2]

    # ---- fc1 (320 -> 50, padded to 64 lanes): one matmul per pooled row ----
    z = jnp.zeros((nb, 64), jnp.float32)
    for h in range(4):
        z = z + jnp.dot(act[h].astype(jnp.bfloat16), wf1_ref[h],
                        preferred_element_type=jnp.float32)
    z = z + bf1_ref[...]

    # ---- GroupNorm(10, 50) + LeakyReLU ----
    mf = mf_ref[...]
    mean_lane = jnp.zeros_like(z)
    for g in range(10):
        mg = mf[g:g + 1, :]
        mean_lane = mean_lane + (
            jnp.sum(z * mg, axis=-1, keepdims=True) * (1.0 / 5.0)) * mg
    dz = z - mean_lane
    var_lane = jnp.zeros_like(z)
    for g in range(10):
        mg = mf[g:g + 1, :]
        var_lane = var_lane + (
            jnp.sum(dz * dz * mg, axis=-1, keepdims=True) * (1.0 / 5.0)) * mg
    rstd3 = jax.lax.rsqrt(var_lane + EPS)
    yz = _lrelu(dz * rstd3 * gf_ref[...] + bef_ref[...])

    # ---- fc2 + log_softmax (f32) ----
    logits = (jnp.dot(yz, wf2_ref[...], preferred_element_type=jnp.float32)
              + bf2_ref[...])
    m = jnp.max(logits, axis=-1, keepdims=True)
    s = logits - m
    lse = jnp.log(jnp.sum(jnp.exp(s), axis=-1, keepdims=True))
    o_ref[...] = s - lse


# --------------------------- wrapper-side constants ---------------------------

def _stage1_consts(params):
    w1 = params['w1'].astype(jnp.float32)                       # (10, 1, 5, 5)
    eyes = jnp.stack([jnp.eye(28, 24, k=-k, dtype=jnp.float32) for k in range(5)])
    band = jnp.einsum('kvj,chk->hvcj', eyes, w1[:, 0])          # (5, 28, 10, 24)
    band = band.reshape(5, 28, 240).astype(jnp.bfloat16)
    col_e = jnp.kron(jnp.eye(12, dtype=jnp.float32), jnp.array([[1.0], [0.0]], jnp.float32))
    col_o = jnp.kron(jnp.eye(12, dtype=jnp.float32), jnp.array([[0.0], [1.0]], jnp.float32))
    se = jnp.kron(jnp.eye(10, dtype=jnp.float32), col_e)        # (240, 120)
    so = jnp.kron(jnp.eye(10, dtype=jnp.float32), col_o)
    bias = jnp.repeat(params['b1'].astype(jnp.float32), 24)[None, :]   # (1, 240)
    gam = jnp.repeat(params['g1'].astype(jnp.float32), 12)[None, :]    # (1, 120)
    bet = jnp.repeat(params['be1'].astype(jnp.float32), 12)[None, :]
    ch = jnp.arange(120) // 12
    msk = (ch[None, :] // 5 == jnp.arange(2)[:, None]).astype(jnp.float32)  # (2, 120)
    return band, se, so, bias, gam, bet, msk


def _stage2_consts(params):
    w2 = params['w2'].astype(jnp.float32)                       # (20, 10, 5, 5)
    eyes = jnp.stack([jnp.eye(12, 8, k=-k, dtype=jnp.float32) for k in range(5)])
    w2b = jnp.einsum('kvj,oihk->hivjo', eyes, w2)               # (5, 10, 12, 8, 20)
    w2b = w2b.reshape(5, 120, 160).astype(jnp.bfloat16)
    row_e = jnp.kron(jnp.eye(4, dtype=jnp.float32), jnp.array([[1.0], [0.0]], jnp.float32))
    row_o = jnp.kron(jnp.eye(4, dtype=jnp.float32), jnp.array([[0.0], [1.0]], jnp.float32))
    se = jnp.kron(row_e, jnp.eye(20, dtype=jnp.float32))        # (160, 80)
    so = jnp.kron(row_o, jnp.eye(20, dtype=jnp.float32))
    b2 = jnp.tile(params['b2'].astype(jnp.float32), 8)[None, :]      # (1, 160)
    g2 = jnp.tile(params['g2'].astype(jnp.float32), 4)[None, :]      # (1, 80)
    be2 = jnp.tile(params['be2'].astype(jnp.float32), 4)[None, :]
    co = jnp.arange(80) % 20
    m2 = (co[None, :] // 5 == jnp.arange(4)[:, None]).astype(jnp.float32)  # (4, 80)

    wf1 = params['wf1'].astype(jnp.float32)                     # (50, 320)
    wf1t = jnp.zeros((320, 64), jnp.float32).at[:, :50].set(wf1.T)
    wf1h = wf1t.reshape(20, 4, 4, 64).transpose(1, 2, 0, 3).reshape(4, 80, 64)
    wf1h = wf1h.astype(jnp.bfloat16)                            # (4, 80, 64)
    bf1 = jnp.zeros((1, 64), jnp.float32).at[0, :50].set(params['bf1'].astype(jnp.float32))
    gf = jnp.zeros((1, 64), jnp.float32).at[0, :50].set(params['gf1'].astype(jnp.float32))
    bef = jnp.zeros((1, 64), jnp.float32).at[0, :50].set(params['bef1'].astype(jnp.float32))
    f = jnp.arange(64)
    mf = ((f[None, :] // 5 == jnp.arange(10)[:, None])
          & (f[None, :] < 50)).astype(jnp.float32)              # (10, 64)
    wf2 = jnp.zeros((64, 10), jnp.float32).at[:50, :].set(params['wf2'].astype(jnp.float32).T)
    bf2 = params['bf2'].astype(jnp.float32)[None, :]            # (1, 10)
    return w2b, se, so, b2, g2, be2, m2, wf1h, bf1, gf, bef, mf, wf2, bf2


# --------------------------------- forward -----------------------------------

def net_forward(params, x, *, block_n=64):
    n = x.shape[0]
    x = x.reshape(n, 28, 28).astype(jnp.float32)

    nb = max(8, min(block_n, _round_up(n, 8)))
    nb = _round_up(nb, 8)
    n_pad = _round_up(n, nb)
    if n_pad != n:
        x = jnp.pad(x, ((0, n_pad - n), (0, 0), (0, 0)))
    xh = jnp.transpose(x, (1, 0, 2))                            # (28, n_pad, 28) H-major

    band, se1, so1, b1l, g1l, be1l, m1 = _stage1_consts(params)
    (w2b, se2, so2, b2l, g2l, be2l, m2,
     wf1h, bf1, gf, bef, mf, wf2, bf2) = _stage2_consts(params)

    zero2 = lambda i: (0, 0)
    zero3 = lambda i: (0, 0, 0)
    grid = (n_pad // nb,)

    out = pl.pallas_call(
        _net_kernel,
        out_shape=jax.ShapeDtypeStruct((n_pad, 10), jnp.float32),
        grid=grid,
        in_specs=[
            pl.BlockSpec((28, nb, 28), lambda i: (0, i, 0)),
            pl.BlockSpec((5, 28, 240), zero3),
            pl.BlockSpec((240, 120), zero2),
            pl.BlockSpec((240, 120), zero2),
            pl.BlockSpec((1, 240), zero2),
            pl.BlockSpec((1, 120), zero2),
            pl.BlockSpec((1, 120), zero2),
            pl.BlockSpec((2, 120), zero2),
            pl.BlockSpec((5, 120, 160), zero3),
            pl.BlockSpec((160, 80), zero2),
            pl.BlockSpec((160, 80), zero2),
            pl.BlockSpec((1, 160), zero2),
            pl.BlockSpec((1, 80), zero2),
            pl.BlockSpec((1, 80), zero2),
            pl.BlockSpec((4, 80), zero2),
            pl.BlockSpec((4, 80, 64), zero3),
            pl.BlockSpec((1, 64), zero2),
            pl.BlockSpec((1, 64), zero2),
            pl.BlockSpec((1, 64), zero2),
            pl.BlockSpec((10, 64), zero2),
            pl.BlockSpec((64, 10), zero2),
            pl.BlockSpec((1, 10), zero2),
        ],
        out_specs=pl.BlockSpec((nb, 10), lambda i: (i, 0)),
        scratch_shapes=[pltpu.VMEM((12, nb, 120), jnp.float32)],
        compiler_params=pltpu.CompilerParams(
            dimension_semantics=("parallel",),
            vmem_limit_bytes=32 * 1024 * 1024),
    )(xh, band, se1, so1, b1l, g1l, be1l, m1,
      w2b, se2, so2, b2l, g2l, be2l, m2,
      wf1h, bf1, gf, bef, mf, wf2, bf2)

    return out[:n]


# ------------------------------ plain-JAX reference ---------------------------

def reference_forward(params, x):
    def lrelu(v):
        return jnp.where(v > 0, v, 0.1 * v)

    def gn(v, gamma, beta, groups):
        nb, c = v.shape[0], v.shape[1]
        vr = v.reshape(nb, groups, -1)
        mu = vr.mean(axis=-1, keepdims=True)
        var = ((vr - mu) ** 2).mean(axis=-1, keepdims=True)
        vn = ((vr - mu) / jnp.sqrt(var + EPS)).reshape(v.shape)
        shape = (1, c) + (1,) * (v.ndim - 2)
        return vn * gamma.reshape(shape) + beta.reshape(shape)

    def conv(v, w, b):
        out = jax.lax.conv_general_dilated(
            v, w, window_strides=(1, 1), padding='VALID',
            dimension_numbers=('NCHW', 'OIHW', 'NCHW'))
        return out + b.reshape(1, -1, 1, 1)

    def pool(v):
        return jnp.maximum(
            jnp.maximum(v[:, :, 0::2, 0::2], v[:, :, 0::2, 1::2]),
            jnp.maximum(v[:, :, 1::2, 0::2], v[:, :, 1::2, 1::2]))

    y = lrelu(gn(pool(conv(x, params['w1'], params['b1'])), params['g1'], params['be1'], 2))
    y = lrelu(gn(pool(conv(y, params['w2'], params['b2'])), params['g2'], params['be2'], 4))
    y = y.reshape(y.shape[0], 320)
    y = lrelu(gn(y @ params['wf1'].T + params['bf1'], params['gf1'], params['bef1'], 10))
    y = y @ params['wf2'].T + params['bf2']
    return jax.nn.log_softmax(y, axis=-1)


def init_params(key):
    ks = jax.random.split(key, 12)
    nrm = lambda k, s: (0.1 * jax.random.normal(k, s)).astype(jnp.float32)
    return {
        'w1': nrm(ks[0], (10, 1, 5, 5)),  'b1': nrm(ks[1], (10,)),
        'g1': 1.0 + nrm(ks[2], (10,)),    'be1': nrm(ks[3], (10,)),
        'w2': nrm(ks[4], (20, 10, 5, 5)), 'b2': nrm(ks[5], (20,)),
        'g2': 1.0 + nrm(ks[6], (20,)),    'be2': nrm(ks[7], (20,)),
        'wf1': nrm(ks[8], (50, 320)),     'bf1': nrm(ks[9], (50,)),
        'gf1': jnp.ones((50,), jnp.float32), 'bef1': jnp.zeros((50,), jnp.float32),
        'wf2': nrm(ks[10], (10, 50)),     'bf2': nrm(ks[11], (10,)),
    }


if __name__ == "__main__":
    key = jax.random.PRNGKey(0)
    params = init_params(key)
    # fc1 expects 320 = 20*4*4 features => input spatial must be 28x28 (MNIST).
    x = jax.random.normal(jax.random.PRNGKey(0), (2, 1, 28, 28), dtype=jnp.float32)

    fwd = jax.jit(functools.partial(net_forward, params))
    out = fwd(x)
    jax.block_until_ready(out)

    assert out.shape == (2, 10) and out.dtype == jnp.float32
    # rows of exp(log_softmax) must sum to ~1
    assert bool(jnp.all(jnp.abs(jnp.sum(jnp.exp(out), axis=1) - 1.0) < 1e-4))
    # cross-check the fused Pallas pipeline against a plain-JAX reference
    ref = jax.jit(functools.partial(reference_forward, params))(x)
    max_err = float(jnp.max(jnp.abs(out - ref)))
    assert max_err < 0.1, f"mismatch vs reference: {max_err}"
    print("KERNEL_OK")
</pallas_src>

<mosaic_0001>
module attributes {stable_mosaic.version = 11 : i64} {
  func.func @_net_kernel(%arg0: i32, %arg1: memref<28x8x28xf32, #tpu.memory_space<vmem>>, %arg2: memref<5x28x240xbf16, #tpu.memory_space<vmem>>, %arg3: memref<240x120xf32, #tpu.memory_space<vmem>>, %arg4: memref<240x120xf32, #tpu.memory_space<vmem>>, %arg5: memref<1x240xf32, #tpu.memory_space<vmem>>, %arg6: memref<1x120xf32, #tpu.memory_space<vmem>>, %arg7: memref<1x120xf32, #tpu.memory_space<vmem>>, %arg8: memref<2x120xf32, #tpu.memory_space<vmem>>, %arg9: memref<5x120x160xbf16, #tpu.memory_space<vmem>>, %arg10: memref<160x80xf32, #tpu.memory_space<vmem>>, %arg11: memref<160x80xf32, #tpu.memory_space<vmem>>, %arg12: memref<1x160xf32, #tpu.memory_space<vmem>>, %arg13: memref<1x80xf32, #tpu.memory_space<vmem>>, %arg14: memref<1x80xf32, #tpu.memory_space<vmem>>, %arg15: memref<4x80xf32, #tpu.memory_space<vmem>>, %arg16: memref<4x80x64xbf16, #tpu.memory_space<vmem>>, %arg17: memref<1x64xf32, #tpu.memory_space<vmem>>, %arg18: memref<1x64xf32, #tpu.memory_space<vmem>>, %arg19: memref<1x64xf32, #tpu.memory_space<vmem>>, %arg20: memref<10x64xf32, #tpu.memory_space<vmem>>, %arg21: memref<64x10xf32, #tpu.memory_space<vmem>>, %arg22: memref<1x10xf32, #tpu.memory_space<vmem>>, %arg23: memref<8x10xf32, #tpu.memory_space<vmem>>, %arg24: memref<12x8x120xf32, #tpu.memory_space<vmem>>) attributes {dimension_semantics = [#tpu.dimension_semantics<parallel>], iteration_bounds = array<i64: 1>, scalar_prefetch = 0 : i64, scratch_operands = 1 : i64, tpu.core_type = #tpu.core_type<tc>, window_params = [{transform_indices = @transform_0, window_bounds = array<i64: 28, 8, 28>}, {pipeline_mode = #tpu.pipeline_mode<synchronous>, transform_indices = @transform_1, window_bounds = array<i64: 5, 28, 240>}, {pipeline_mode = #tpu.pipeline_mode<synchronous>, transform_indices = @transform_2, window_bounds = array<i64: 240, 120>}, {pipeline_mode = #tpu.pipeline_mode<synchronous>, transform_indices = @transform_3, window_bounds = array<i64: 240, 120>}, {pipeline_mode = #tpu.pipeline_mode<synchronous>, transform_indices = @transform_4, window_bounds = array<i64: 1, 240>}, {pipeline_mode = #tpu.pipeline_mode<synchronous>, transform_indices = @transform_5, window_bounds = array<i64: 1, 120>}, {pipeline_mode = #tpu.pipeline_mode<synchronous>, transform_indices = @transform_6, window_bounds = array<i64: 1, 120>}, {pipeline_mode = #tpu.pipeline_mode<synchronous>, transform_indices = @transform_7, window_bounds = array<i64: 2, 120>}, {pipeline_mode = #tpu.pipeline_mode<synchronous>, transform_indices = @transform_8, window_bounds = array<i64: 5, 120, 160>}, {pipeline_mode = #tpu.pipeline_mode<synchronous>, transform_indices = @transform_9, window_bounds = array<i64: 160, 80>}, {pipeline_mode = #tpu.pipeline_mode<synchronous>, transform_indices = @transform_10, window_bounds = array<i64: 160, 80>}, {pipeline_mode = #tpu.pipeline_mode<synchronous>, transform_indices = @transform_11, window_bounds = array<i64: 1, 160>}, {pipeline_mode = #tpu.pipeline_mode<synchronous>, transform_indices = @transform_12, window_bounds = array<i64: 1, 80>}, {pipeline_mode = #tpu.pipeline_mode<synchronous>, transform_indices = @transform_13, window_bounds = array<i64: 1, 80>}, {pipeline_mode = #tpu.pipeline_mode<synchronous>, transform_indices = @transform_14, window_bounds = array<i64: 4, 80>}, {pipeline_mode = #tpu.pipeline_mode<synchronous>, transform_indices = @transform_15, window_bounds = array<i64: 4, 80, 64>}, {pipeline_mode = #tpu.pipeline_mode<synchronous>, transform_indices = @transform_16, window_bounds = array<i64: 1, 64>}, {pipeline_mode = #tpu.pipeline_mode<synchronous>, transform_indices = @transform_17, window_bounds = array<i64: 1, 64>}, {pipeline_mode = #tpu.pipeline_mode<synchronous>, transform_indices = @transform_18, window_bounds = array<i64: 1, 64>}, {pipeline_mode = #tpu.pipeline_mode<synchronous>, transform_indices = @transform_19, window_bounds = array<i64: 10, 64>}, {pipeline_mode = #tpu.pipeline_mode<synchronous>, transform_indices = @transform_20, window_bounds = array<i64: 64, 10>}, {pipeline_mode = #tpu.pipeline_mode<synchronous>, transform_indices = @transform_21, window_bounds = array<i64: 1, 10>}, {transform_indices = @transform_22, window_bounds = array<i64: 8, 10>}]} {
    %cst = arith.constant 0.000000e+00 : f32
    %0 = vector.broadcast %cst : f32 to vector<192x240xf32>
    %c0 = arith.constant 0 : index
    %c0_0 = arith.constant 0 : index
    %c0_1 = arith.constant 0 : index
    %1 = vector.load %arg1[%c0, %c0_0, %c0_1] : memref<28x8x28xf32, #tpu.memory_space<vmem>>, vector<24x8x28xf32>
    %2 = vector.shape_cast %1 : vector<24x8x28xf32> to vector<192x28xf32>
    %3 = arith.truncf %2 : vector<192x28xf32> to vector<192x28xbf16>
    %c0_2 = arith.constant 0 : index
    %c0_3 = arith.constant 0 : index
    %c0_4 = arith.constant 0 : index
    %4 = vector.load %arg2[%c0_2, %c0_3, %c0_4] : memref<5x28x240xbf16, #tpu.memory_space<vmem>>, vector<1x28x240xbf16>
    %5 = vector.shape_cast %4 : vector<1x28x240xbf16> to vector<28x240xbf16>
    %cst_5 = arith.constant dense<0.000000e+00> : vector<192x240xf32>
    %6 = tpu.matmul %3, %5, %cst_5 {dimension_numbers = #tpu.dot_dimension_numbers<[1], [0], [0], [1], [0, 0, 1, 1], [], []>} : vector<192x28xbf16>, vector<28x240xbf16>, vector<192x240xf32> -> vector<192x240xf32>
    %7 = arith.addf %0, %6 : vector<192x240xf32>
    %c1 = arith.constant 1 : index
    %c0_6 = arith.constant 0 : index
    %c0_7 = arith.constant 0 : index
    %8 = vector.load %arg1[%c1, %c0_6, %c0_7] : memref<28x8x28xf32, #tpu.memory_space<vmem>>, vector<24x8x28xf32>
    %9 = vector.shape_cast %8 : vector<24x8x28xf32> to vector<192x28xf32>
    %10 = arith.truncf %9 : vector<192x28xf32> to vector<192x28xbf16>
    %c1_8 = arith.constant 1 : index
    %c0_9 = arith.constant 0 : index
    %c0_10 = arith.constant 0 : index
    %11 = vector.load %arg2[%c1_8, %c0_9, %c0_10] : memref<5x28x240xbf16, #tpu.memory_space<vmem>>, vector<1x28x240xbf16>
    %12 = vector.shape_cast %11 : vector<1x28x240xbf16> to vector<28x240xbf16>
    %cst_11 = arith.constant dense<0.000000e+00> : vector<192x240xf32>
    %13 = tpu.matmul %10, %12, %cst_11 {dimension_numbers = #tpu.dot_dimension_numbers<[1], [0], [0], [1], [0, 0, 1, 1], [], []>} : vector<192x28xbf16>, vector<28x240xbf16>, vector<192x240xf32> -> vector<192x240xf32>
    %14 = arith.addf %7, %13 : vector<192x240xf32>
    %c2 = arith.constant 2 : index
    %c0_12 = arith.constant 0 : index
    %c0_13 = arith.constant 0 : index
    %15 = vector.load %arg1[%c2, %c0_12, %c0_13] : memref<28x8x28xf32, #tpu.memory_space<vmem>>, vector<24x8x28xf32>
    %16 = vector.shape_cast %15 : vector<24x8x28xf32> to vector<192x28xf32>
    %17 = arith.truncf %16 : vector<192x28xf32> to vector<192x28xbf16>
    %c2_14 = arith.constant 2 : index
    %c0_15 = arith.constant 0 : index
    %c0_16 = arith.constant 0 : index
    %18 = vector.load %arg2[%c2_14, %c0_15, %c0_16] : memref<5x28x240xbf16, #tpu.memory_space<vmem>>, vector<1x28x240xbf16>
    %19 = vector.shape_cast %18 : vector<1x28x240xbf16> to vector<28x240xbf16>
    %cst_17 = arith.constant dense<0.000000e+00> : vector<192x240xf32>
    %20 = tpu.matmul %17, %19, %cst_17 {dimension_numbers = #tpu.dot_dimension_numbers<[1], [0], [0], [1], [0, 0, 1, 1], [], []>} : vector<192x28xbf16>, vector<28x240xbf16>, vector<192x240xf32> -> vector<192x240xf32>
    %21 = arith.addf %14, %20 : vector<192x240xf32>
    %c3 = arith.constant 3 : index
    %c0_18 = arith.constant 0 : index
    %c0_19 = arith.constant 0 : index
    %22 = vector.load %arg1[%c3, %c0_18, %c0_19] : memref<28x8x28xf32, #tpu.memory_space<vmem>>, vector<24x8x28xf32>
    %23 = vector.shape_cast %22 : vector<24x8x28xf32> to vector<192x28xf32>
    %24 = arith.truncf %23 : vector<192x28xf32> to vector<192x28xbf16>
    %c3_20 = arith.constant 3 : index
    %c0_21 = arith.constant 0 : index
    %c0_22 = arith.constant 0 : index
    %25 = vector.load %arg2[%c3_20, %c0_21, %c0_22] : memref<5x28x240xbf16, #tpu.memory_space<vmem>>, vector<1x28x240xbf16>
    %26 = vector.shape_cast %25 : vector<1x28x240xbf16> to vector<28x240xbf16>
    %cst_23 = arith.constant dense<0.000000e+00> : vector<192x240xf32>
    %27 = tpu.matmul %24, %26, %cst_23 {dimension_numbers = #tpu.dot_dimension_numbers<[1], [0], [0], [1], [0, 0, 1, 1], [], []>} : vector<192x28xbf16>, vector<28x240xbf16>, vector<192x240xf32> -> vector<192x240xf32>
    %28 = arith.addf %21, %27 : vector<192x240xf32>
    %c4 = arith.constant 4 : index
    %c0_24 = arith.constant 0 : index
    %c0_25 = arith.constant 0 : index
    %29 = vector.load %arg1[%c4, %c0_24, %c0_25] : memref<28x8x28xf32, #tpu.memory_space<vmem>>, vector<24x8x28xf32>
    %30 = vector.shape_cast %29 : vector<24x8x28xf32> to vector<192x28xf32>
    %31 = arith.truncf %30 : vector<192x28xf32> to vector<192x28xbf16>
    %c4_26 = arith.constant 4 : index
    %c0_27 = arith.constant 0 : index
    %c0_28 = arith.constant 0 : index
    %32 = vector.load %arg2[%c4_26, %c0_27, %c0_28] : memref<5x28x240xbf16, #tpu.memory_space<vmem>>, vector<1x28x240xbf16>
    %33 = vector.shape_cast %32 : vector<1x28x240xbf16> to vector<28x240xbf16>
    %cst_29 = arith.constant dense<0.000000e+00> : vector<192x240xf32>
    %34 = tpu.matmul %31, %33, %cst_29 {dimension_numbers = #tpu.dot_dimension_numbers<[1], [0], [0], [1], [0, 0, 1, 1], [], []>} : vector<192x28xbf16>, vector<28x240xbf16>, vector<192x240xf32> -> vector<192x240xf32>
    %35 = arith.addf %28, %34 : vector<192x240xf32>
    %c0_30 = arith.constant 0 : index
    %c0_31 = arith.constant 0 : index
    %36 = vector.load %arg5[%c0_30, %c0_31] : memref<1x240xf32, #tpu.memory_space<vmem>>, vector<1x240xf32>
    %37 = vector.broadcast %36 : vector<1x240xf32> to vector<192x240xf32>
    %38 = arith.addf %35, %37 : vector<192x240xf32>
    %c0_32 = arith.constant 0 : index
    %c0_33 = arith.constant 0 : index
    %39 = vector.load %arg3[%c0_32, %c0_33] : memref<240x120xf32, #tpu.memory_space<vmem>>, vector<240x120xf32>
    %cst_34 = arith.constant dense<0.000000e+00> : vector<192x120xf32>
    %40 = tpu.matmul %38, %39, %cst_34 {dimension_numbers = #tpu.dot_dimension_numbers<[1], [0], [0], [1], [0, 0, 1, 1], [], []>} : vector<192x240xf32>, vector<240x120xf32>, vector<192x120xf32> -> vector<192x120xf32>
    %c0_35 = arith.constant 0 : index
    %c0_36 = arith.constant 0 : index
    %41 = vector.load %arg4[%c0_35, %c0_36] : memref<240x120xf32, #tpu.memory_space<vmem>>, vector<240x120xf32>
    %cst_37 = arith.constant dense<0.000000e+00> : vector<192x120xf32>
    %42 = tpu.matmul %38, %41, %cst_37 {dimension_numbers = #tpu.dot_dimension_numbers<[1], [0], [0], [1], [0, 0, 1, 1], [], []>} : vector<192x240xf32>, vector<240x120xf32>, vector<192x120xf32> -> vector<192x120xf32>
    %43 = arith.maximumf %40, %42 : vector<192x120xf32>
    %44 = vector.shape_cast %43 : vector<192x120xf32> to vector<24x8x120xf32>
    %45 = vector.extract_strided_slice %44 {offsets = [0, 0, 0], sizes = [1, 8, 120], strides = [1, 1, 1]} : vector<24x8x120xf32> to vector<1x8x120xf32>
    %46 = vector.shape_cast %45 : vector<1x8x120xf32> to vector<8x120xf32>
    %47 = vector.extract_strided_slice %44 {offsets = [1, 0, 0], sizes = [1, 8, 120], strides = [1, 1, 1]} : vector<24x8x120xf32> to vector<1x8x120xf32>
    %48 = vector.shape_cast %47 : vector<1x8x120xf32> to vector<8x120xf32>
    %49 = arith.maximumf %46, %48 : vector<8x120xf32>
    %50 = vector.extract_strided_slice %44 {offsets = [2, 0, 0], sizes = [1, 8, 120], strides = [1, 1, 1]} : vector<24x8x120xf32> to vector<1x8x120xf32>
    %51 = vector.shape_cast %50 : vector<1x8x120xf32> to vector<8x120xf32>
    %52 = vector.extract_strided_slice %44 {offsets = [3, 0, 0], sizes = [1, 8, 120], strides = [1, 1, 1]} : vector<24x8x120xf32> to vector<1x8x120xf32>
    %53 = vector.shape_cast %52 : vector<1x8x120xf32> to vector<8x120xf32>
    %54 = arith.maximumf %51, %53 : vector<8x120xf32>
    %55 = vector.extract_strided_slice %44 {offsets = [4, 0, 0], sizes = [1, 8, 120], strides = [1, 1, 1]} : vector<24x8x120xf32> to vector<1x8x120xf32>
    %56 = vector.shape_cast %55 : vector<1x8x120xf32> to vector<8x120xf32>
    %57 = vector.extract_strided_slice %44 {offsets = [5, 0, 0], sizes = [1, 8, 120], strides = [1, 1, 1]} : vector<24x8x120xf32> to vector<1x8x120xf32>
    %58 = vector.shape_cast %57 : vector<1x8x120xf32> to vector<8x120xf32>
    %59 = arith.maximumf %56, %58 : vector<8x120xf32>
    %60 = vector.extract_strided_slice %44 {offsets = [6, 0, 0], sizes = [1, 8, 120], strides = [1, 1, 1]} : vector<24x8x120xf32> to vector<1x8x120xf32>
    %61 = vector.shape_cast %60 : vector<1x8x120xf32> to vector<8x120xf32>
    %62 = vector.extract_strided_slice %44 {offsets = [7, 0, 0], sizes = [1, 8, 120], strides = [1, 1, 1]} : vector<24x8x120xf32> to vector<1x8x120xf32>
    %63 = vector.shape_cast %62 : vector<1x8x120xf32> to vector<8x120xf32>
    %64 = arith.maximumf %61, %63 : vector<8x120xf32>
    %65 = vector.extract_strided_slice %44 {offsets = [8, 0, 0], sizes = [1, 8, 120], strides = [1, 1, 1]} : vector<24x8x120xf32> to vector<1x8x120xf32>
    %66 = vector.shape_cast %65 : vector<1x8x120xf32> to vector<8x120xf32>
    %67 = vector.extract_strided_slice %44 {offsets = [9, 0, 0], sizes = [1, 8, 120], strides = [1, 1, 1]} : vector<24x8x120xf32> to vector<1x8x120xf32>
    %68 = vector.shape_cast %67 : vector<1x8x120xf32> to vector<8x120xf32>
    %69 = arith.maximumf %66, %68 : vector<8x120xf32>
    %70 = vector.extract_strided_slice %44 {offsets = [10, 0, 0], sizes = [1, 8, 120], strides = [1, 1, 1]} : vector<24x8x120xf32> to vector<1x8x120xf32>
    %71 = vector.shape_cast %70 : vector<1x8x120xf32> to vector<8x120xf32>
    %72 = vector.extract_strided_slice %44 {offsets = [11, 0, 0], sizes = [1, 8, 120], strides = [1, 1, 1]} : vector<24x8x120xf32> to vector<1x8x120xf32>
    %73 = vector.shape_cast %72 : vector<1x8x120xf32> to vector<8x120xf32>
    %74 = arith.maximumf %71, %73 : vector<8x120xf32>
    %75 = vector.extract_strided_slice %44 {offsets = [12, 0, 0], sizes = [1, 8, 120], strides = [1, 1, 1]} : vector<24x8x120xf32> to vector<1x8x120xf32>
    %76 = vector.shape_cast %75 : vector<1x8x120xf32> to vector<8x120xf32>
    %77 = vector.extract_strided_slice %44 {offsets = [13, 0, 0], sizes = [1, 8, 120], strides = [1, 1, 1]} : vector<24x8x120xf32> to vector<1x8x120xf32>
    %78 = vector.shape_cast %77 : vector<1x8x120xf32> to vector<8x120xf32>
    %79 = arith.maximumf %76, %78 : vector<8x120xf32>
    %80 = vector.extract_strided_slice %44 {offsets = [14, 0, 0], sizes = [1, 8, 120], strides = [1, 1, 1]} : vector<24x8x120xf32> to vector<1x8x120xf32>
    %81 = vector.shape_cast %80 : vector<1x8x120xf32> to vector<8x120xf32>
    %82 = vector.extract_strided_slice %44 {offsets = [15, 0, 0], sizes = [1, 8, 120], strides = [1, 1, 1]} : vector<24x8x120xf32> to vector<1x8x120xf32>
    %83 = vector.shape_cast %82 : vector<1x8x120xf32> to vector<8x120xf32>
    %84 = arith.maximumf %81, %83 : vector<8x120xf32>
    %85 = vector.extract_strided_slice %44 {offsets = [16, 0, 0], sizes = [1, 8, 120], strides = [1, 1, 1]} : vector<24x8x120xf32> to vector<1x8x120xf32>
    %86 = vector.shape_cast %85 : vector<1x8x120xf32> to vector<8x120xf32>
    %87 = vector.extract_strided_slice %44 {offsets = [17, 0, 0], sizes = [1, 8, 120], strides = [1, 1, 1]} : vector<24x8x120xf32> to vector<1x8x120xf32>
    %88 = vector.shape_cast %87 : vector<1x8x120xf32> to vector<8x120xf32>
    %89 = arith.maximumf %86, %88 : vector<8x120xf32>
    %90 = vector.extract_strided_slice %44 {offsets = [18, 0, 0], sizes = [1, 8, 120], strides = [1, 1, 1]} : vector<24x8x120xf32> to vector<1x8x120xf32>
    %91 = vector.shape_cast %90 : vector<1x8x120xf32> to vector<8x120xf32>
    %92 = vector.extract_strided_slice %44 {offsets = [19, 0, 0], sizes = [1, 8, 120], strides = [1, 1, 1]} : vector<24x8x120xf32> to vector<1x8x120xf32>
    %93 = vector.shape_cast %92 : vector<1x8x120xf32> to vector<8x120xf32>
    %94 = arith.maximumf %91, %93 : vector<8x120xf32>
    %95 = vector.extract_strided_slice %44 {offsets = [20, 0, 0], sizes = [1, 8, 120], strides = [1, 1, 1]} : vector<24x8x120xf32> to vector<1x8x120xf32>
    %96 = vector.shape_cast %95 : vector<1x8x120xf32> to vector<8x120xf32>
    %97 = vector.extract_strided_slice %44 {offsets = [21, 0, 0], sizes = [1, 8, 120], strides = [1, 1, 1]} : vector<24x8x120xf32> to vector<1x8x120xf32>
    %98 = vector.shape_cast %97 : vector<1x8x120xf32> to vector<8x120xf32>
    %99 = arith.maximumf %96, %98 : vector<8x120xf32>
    %100 = vector.extract_strided_slice %44 {offsets = [22, 0, 0], sizes = [1, 8, 120], strides = [1, 1, 1]} : vector<24x8x120xf32> to vector<1x8x120xf32>
    %101 = vector.shape_cast %100 : vector<1x8x120xf32> to vector<8x120xf32>
    %102 = vector.extract_strided_slice %44 {offsets = [23, 0, 0], sizes = [1, 8, 120], strides = [1, 1, 1]} : vector<24x8x120xf32> to vector<1x8x120xf32>
    %103 = vector.shape_cast %102 : vector<1x8x120xf32> to vector<8x120xf32>
    %104 = arith.maximumf %101, %103 : vector<8x120xf32>
    %c0_38 = arith.constant 0 : index
    %c0_39 = arith.constant 0 : index
    %105 = vector.load %arg8[%c0_38, %c0_39] : memref<2x120xf32, #tpu.memory_space<vmem>>, vector<2x120xf32>
    %106 = arith.addf %49, %54 : vector<8x120xf32>
    %107 = arith.addf %106, %59 : vector<8x120xf32>
    %108 = arith.addf %107, %64 : vector<8x120xf32>
    %109 = arith.addf %108, %69 : vector<8x120xf32>
    %110 = arith.addf %109, %74 : vector<8x120xf32>
    %111 = arith.addf %110, %79 : vector<8x120xf32>
    %112 = arith.addf %111, %84 : vector<8x120xf32>
    %113 = arith.addf %112, %89 : vector<8x120xf32>
    %114 = arith.addf %113, %94 : vector<8x120xf32>
    %115 = arith.addf %114, %99 : vector<8x120xf32>
    %116 = arith.addf %115, %104 : vector<8x120xf32>
    %cst_40 = arith.constant 0.000000e+00 : f32
    %117 = vector.broadcast %cst_40 : f32 to vector<8x120xf32>
    %118 = vector.extract_strided_slice %105 {offsets = [0, 0], sizes = [1, 120], strides = [1, 1]} : vector<2x120xf32> to vector<1x120xf32>
    %119 = vector.broadcast %118 : vector<1x120xf32> to vector<8x120xf32>
    %120 = arith.mulf %116, %119 : vector<8x120xf32>
    %cst_41 = arith.constant dense<0.000000e+00> : vector<8xf32>
    %121 = vector.multi_reduction <add>, %120, %cst_41 [1] : vector<8x120xf32> to vector<8xf32>
    %122 = vector.shape_cast %121 : vector<8xf32> to vector<8x1xf32>
    %cst_42 = arith.constant 0.00138888892 : f32
    %123 = vector.broadcast %cst_42 : f32 to vector<8x1xf32>
    %124 = arith.mulf %122, %123 : vector<8x1xf32>
    %125 = vector.broadcast %124 : vector<8x1xf32> to vector<8x120xf32>
    %126 = vector.broadcast %118 : vector<1x120xf32> to vector<8x120xf32>
    %127 = arith.mulf %125, %126 : vector<8x120xf32>
    %128 = arith.addf %117, %127 : vector<8x120xf32>
    %129 = vector.extract_strided_slice %105 {offsets = [1, 0], sizes = [1, 120], strides = [1, 1]} : vector<2x120xf32> to vector<1x120xf32>
    %130 = vector.broadcast %129 : vector<1x120xf32> to vector<8x120xf32>
    %131 = arith.mulf %116, %130 : vector<8x120xf32>
    %cst_43 = arith.constant dense<0.000000e+00> : vector<8xf32>
    %132 = vector.multi_reduction <add>, %131, %cst_43 [1] : vector<8x120xf32> to vector<8xf32>
    %133 = vector.shape_cast %132 : vector<8xf32> to vector<8x1xf32>
    %cst_44 = arith.constant 0.00138888892 : f32
    %134 = vector.broadcast %cst_44 : f32 to vector<8x1xf32>
    %135 = arith.mulf %133, %134 : vector<8x1xf32>
    %136 = vector.broadcast %135 : vector<8x1xf32> to vector<8x120xf32>
    %137 = vector.broadcast %129 : vector<1x120xf32> to vector<8x120xf32>
    %138 = arith.mulf %136, %137 : vector<8x120xf32>
    %139 = arith.addf %128, %138 : vector<8x120xf32>
    %140 = arith.subf %49, %139 : vector<8x120xf32>
    %141 = arith.subf %54, %139 : vector<8x120xf32>
    %142 = arith.subf %59, %139 : vector<8x120xf32>
    %143 = arith.subf %64, %139 : vector<8x120xf32>
    %144 = arith.subf %69, %139 : vector<8x120xf32>
    %145 = arith.subf %74, %139 : vector<8x120xf32>
    %146 = arith.subf %79, %139 : vector<8x120xf32>
    %147 = arith.subf %84, %139 : vector<8x120xf32>
    %148 = arith.subf %89, %139 : vector<8x120xf32>
    %149 = arith.subf %94, %139 : vector<8x120xf32>
    %150 = arith.subf %99, %139 : vector<8x120xf32>
    %151 = arith.subf %104, %139 : vector<8x120xf32>
    %152 = arith.mulf %140, %140 : vector<8x120xf32>
    %153 = arith.mulf %141, %141 : vector<8x120xf32>
    %154 = arith.addf %152, %153 : vector<8x120xf32>
    %155 = arith.mulf %142, %142 : vector<8x120xf32>
    %156 = arith.addf %154, %155 : vector<8x120xf32>
    %157 = arith.mulf %143, %143 : vector<8x120xf32>
    %158 = arith.addf %156, %157 : vector<8x120xf32>
    %159 = arith.mulf %144, %144 : vector<8x120xf32>
    %160 = arith.addf %158, %159 : vector<8x120xf32>
    %161 = arith.mulf %145, %145 : vector<8x120xf32>
    %162 = arith.addf %160, %161 : vector<8x120xf32>
    %163 = arith.mulf %146, %146 : vector<8x120xf32>
    %164 = arith.addf %162, %163 : vector<8x120xf32>
    %165 = arith.mulf %147, %147 : vector<8x120xf32>
    %166 = arith.addf %164, %165 : vector<8x120xf32>
    %167 = arith.mulf %148, %148 : vector<8x120xf32>
    %168 = arith.addf %166, %167 : vector<8x120xf32>
    %169 = arith.mulf %149, %149 : vector<8x120xf32>
    %170 = arith.addf %168, %169 : vector<8x120xf32>
    %171 = arith.mulf %150, %150 : vector<8x120xf32>
    %172 = arith.addf %170, %171 : vector<8x120xf32>
    %173 = arith.mulf %151, %151 : vector<8x120xf32>
    %174 = arith.addf %172, %173 : vector<8x120xf32>
    %cst_45 = arith.constant 0.000000e+00 : f32
    %175 = vector.broadcast %cst_45 : f32 to vector<8x120xf32>
    %176 = vector.extract_strided_slice %105 {offsets = [0, 0], sizes = [1, 120], strides = [1, 1]} : vector<2x120xf32> to vector<1x120xf32>
    %177 = vector.broadcast %176 : vector<1x120xf32> to vector<8x120xf32>
    %178 = arith.mulf %174, %177 : vector<8x120xf32>
    %cst_46 = arith.constant dense<0.000000e+00> : vector<8xf32>
    %179 = vector.multi_reduction <add>, %178, %cst_46 [1] : vector<8x120xf32> to vector<8xf32>
    %180 = vector.shape_cast %179 : vector<8xf32> to vector<8x1xf32>
    %cst_47 = arith.constant 0.00138888892 : f32
    %181 = vector.broadcast %cst_47 : f32 to vector<8x1xf32>
    %182 = arith.mulf %180, %181 : vector<8x1xf32>
    %183 = vector.broadcast %182 : vector<8x1xf32> to vector<8x120xf32>
    %184 = vector.broadcast %176 : vector<1x120xf32> to vector<8x120xf32>
    %185 = arith.mulf %183, %184 : vector<8x120xf32>
    %186 = arith.addf %175, %185 : vector<8x120xf32>
    %187 = vector.extract_strided_slice %105 {offsets = [1, 0], sizes = [1, 120], strides = [1, 1]} : vector<2x120xf32> to vector<1x120xf32>
    %188 = vector.broadcast %187 : vector<1x120xf32> to vector<8x120xf32>
    %189 = arith.mulf %174, %188 : vector<8x120xf32>
    %cst_48 = arith.constant dense<0.000000e+00> : vector<8xf32>
    %190 = vector.multi_reduction <add>, %189, %cst_48 [1] : vector<8x120xf32> to vector<8xf32>
    %191 = vector.shape_cast %190 : vector<8xf32> to vector<8x1xf32>
    %cst_49 = arith.constant 0.00138888892 : f32
    %192 = vector.broadcast %cst_49 : f32 to vector<8x1xf32>
    %193 = arith.mulf %191, %192 : vector<8x1xf32>
    %194 = vector.broadcast %193 : vector<8x1xf32> to vector<8x120xf32>
    %195 = vector.broadcast %187 : vector<1x120xf32> to vector<8x120xf32>
    %196 = arith.mulf %194, %195 : vector<8x120xf32>
    %197 = arith.addf %186, %196 : vector<8x120xf32>
    %cst_50 = arith.constant 9.99999974E-6 : f32
    %198 = vector.broadcast %cst_50 : f32 to vector<8x120xf32>
    %199 = arith.addf %197, %198 : vector<8x120xf32>
    %200 = math.rsqrt %199 : vector<8x120xf32>
    %c0_51 = arith.constant 0 : index
    %c0_52 = arith.constant 0 : index
    %201 = vector.load %arg6[%c0_51, %c0_52] : memref<1x120xf32, #tpu.memory_space<vmem>>, vector<1x120xf32>
    %c0_53 = arith.constant 0 : index
    %c0_54 = arith.constant 0 : index
    %202 = vector.load %arg7[%c0_53, %c0_54] : memref<1x120xf32, #tpu.memory_space<vmem>>, vector<1x120xf32>
    %203 = arith.mulf %140, %200 : vector<8x120xf32>
    %204 = vector.broadcast %201 : vector<1x120xf32> to vector<8x120xf32>
    %205 = arith.mulf %203, %204 : vector<8x120xf32>
    %206 = vector.broadcast %202 : vector<1x120xf32> to vector<8x120xf32>
    %207 = arith.addf %205, %206 : vector<8x120xf32>
    %cst_55 = arith.constant 0.000000e+00 : f32
    %208 = vector.broadcast %cst_55 : f32 to vector<8x120xf32>
    %209 = arith.cmpf ogt, %207, %208 : vector<8x120xf32>
    %cst_56 = arith.constant 1.000000e-01 : f32
    %210 = vector.broadcast %cst_56 : f32 to vector<8x120xf32>
    %211 = arith.mulf %210, %207 : vector<8x120xf32>
    %212 = arith.select %209, %207, %211 : vector<8x120xi1>, vector<8x120xf32>
    %c0_57 = arith.constant 0 : index
    %c0_58 = arith.constant 0 : index
    %c0_59 = arith.constant 0 : index
    %213 = vector.load %arg24[%c0_57, %c0_58, %c0_59] : memref<12x8x120xf32, #tpu.memory_space<vmem>>, vector<1x8x120xf32>
    %214 = vector.shape_cast %213 : vector<1x8x120xf32> to vector<8x120xf32>
    %215 = vector.shape_cast %212 : vector<8x120xf32> to vector<1x8x120xf32>
    tpu.vector_store %arg24[%c0_57, %c0_58, %c0_59], %215 {strides = array<i32>} : memref<12x8x120xf32, #tpu.memory_space<vmem>>, vector<1x8x120xf32>,
    %216 = arith.mulf %141, %200 : vector<8x120xf32>
    %217 = vector.broadcast %201 : vector<1x120xf32> to vector<8x120xf32>
    %218 = arith.mulf %216, %217 : vector<8x120xf32>
    %219 = vector.broadcast %202 : vector<1x120xf32> to vector<8x120xf32>
    %220 = arith.addf %218, %219 : vector<8x120xf32>
    %cst_60 = arith.constant 0.000000e+00 : f32
    %221 = vector.broadcast %cst_60 : f32 to vector<8x120xf32>
    %222 = arith.cmpf ogt, %220, %221 : vector<8x120xf32>
    %cst_61 = arith.constant 1.000000e-01 : f32
    %223 = vector.broadcast %cst_61 : f32 to vector<8x120xf32>
    %224 = arith.mulf %223, %220 : vector<8x120xf32>
    %225 = arith.select %222, %220, %224 : vector<8x120xi1>, vector<8x120xf32>
    %c1_62 = arith.constant 1 : index
    %c0_63 = arith.constant 0 : index
    %c0_64 = arith.constant 0 : index
    %226 = vector.load %arg24[%c1_62, %c0_63, %c0_64] : memref<12x8x120xf32, #tpu.memory_space<vmem>>, vector<1x8x120xf32>
    %227 = vector.shape_cast %226 : vector<1x8x120xf32> to vector<8x120xf32>
    %228 = vector.shape_cast %225 : vector<8x120xf32> to vector<1x8x120xf32>
    tpu.vector_store %arg24[%c1_62, %c0_63, %c0_64], %228 {strides = array<i32>} : memref<12x8x120xf32, #tpu.memory_space<vmem>>, vector<1x8x120xf32>,
    %229 = arith.mulf %142, %200 : vector<8x120xf32>
    %230 = vector.broadcast %201 : vector<1x120xf32> to vector<8x120xf32>
    %231 = arith.mulf %229, %230 : vector<8x120xf32>
    %232 = vector.broadcast %202 : vector<1x120xf32> to vector<8x120xf32>
    %233 = arith.addf %231, %232 : vector<8x120xf32>
    %cst_65 = arith.constant 0.000000e+00 : f32
    %234 = vector.broadcast %cst_65 : f32 to vector<8x120xf32>
    %235 = arith.cmpf ogt, %233, %234 : vector<8x120xf32>
    %cst_66 = arith.constant 1.000000e-01 : f32
    %236 = vector.broadcast %cst_66 : f32 to vector<8x120xf32>
    %237 = arith.mulf %236, %233 : vector<8x120xf32>
    %238 = arith.select %235, %233, %237 : vector<8x120xi1>, vector<8x120xf32>
    %c2_67 = arith.constant 2 : index
    %c0_68 = arith.constant 0 : index
    %c0_69 = arith.constant 0 : index
    %239 = vector.load %arg24[%c2_67, %c0_68, %c0_69] : memref<12x8x120xf32, #tpu.memory_space<vmem>>, vector<1x8x120xf32>
    %240 = vector.shape_cast %239 : vector<1x8x120xf32> to vector<8x120xf32>
    %241 = vector.shape_cast %238 : vector<8x120xf32> to vector<1x8x120xf32>
    tpu.vector_store %arg24[%c2_67, %c0_68, %c0_69], %241 {strides = array<i32>} : memref<12x8x120xf32, #tpu.memory_space<vmem>>, vector<1x8x120xf32>,
    %242 = arith.mulf %143, %200 : vector<8x120xf32>
    %243 = vector.broadcast %201 : vector<1x120xf32> to vector<8x120xf32>
    %244 = arith.mulf %242, %243 : vector<8x120xf32>
    %245 = vector.broadcast %202 : vector<1x120xf32> to vector<8x120xf32>
    %246 = arith.addf %244, %245 : vector<8x120xf32>
    %cst_70 = arith.constant 0.000000e+00 : f32
    %247 = vector.broadcast %cst_70 : f32 to vector<8x120xf32>
    %248 = arith.cmpf ogt, %246, %247 : vector<8x120xf32>
    %cst_71 = arith.constant 1.000000e-01 : f32
    %249 = vector.broadcast %cst_71 : f32 to vector<8x120xf32>
    %250 = arith.mulf %249, %246 : vector<8x120xf32>
    %251 = arith.select %248, %246, %250 : vector<8x120xi1>, vector<8x120xf32>
    %c3_72 = arith.constant 3 : index
    %c0_73 = arith.constant 0 : index
    %c0_74 = arith.constant 0 : index
    %252 = vector.load %arg24[%c3_72, %c0_73, %c0_74] : memref<12x8x120xf32, #tpu.memory_space<vmem>>, vector<1x8x120xf32>
    %253 = vector.shape_cast %252 : vector<1x8x120xf32> to vector<8x120xf32>
    %254 = vector.shape_cast %251 : vector<8x120xf32> to vector<1x8x120xf32>
    tpu.vector_store %arg24[%c3_72, %c0_73, %c0_74], %254 {strides = array<i32>} : memref<12x8x120xf32, #tpu.memory_space<vmem>>, vector<1x8x120xf32>,
    %255 = arith.mulf %144, %200 : vector<8x120xf32>
    %256 = vector.broadcast %201 : vector<1x120xf32> to vector<8x120xf32>
    %257 = arith.mulf %255, %256 : vector<8x120xf32>
    %258 = vector.broadcast %202 : vector<1x120xf32> to vector<8x120xf32>
    %259 = arith.addf %257, %258 : vector<8x120xf32>
    %cst_75 = arith.constant 0.000000e+00 : f32
    %260 = vector.broadcast %cst_75 : f32 to vector<8x120xf32>
    %261 = arith.cmpf ogt, %259, %260 : vector<8x120xf32>
    %cst_76 = arith.constant 1.000000e-01 : f32
    %262 = vector.broadcast %cst_76 : f32 to vector<8x120xf32>
    %263 = arith.mulf %262, %259 : vector<8x120xf32>
    %264 = arith.select %261, %259, %263 : vector<8x120xi1>, vector<8x120xf32>
    %c4_77 = arith.constant 4 : index
    %c0_78 = arith.constant 0 : index
    %c0_79 = arith.constant 0 : index
    %265 = vector.load %arg24[%c4_77, %c0_78, %c0_79] : memref<12x8x120xf32, #tpu.memory_space<vmem>>, vector<1x8x120xf32>
    %266 = vector.shape_cast %265 : vector<1x8x120xf32> to vector<8x120xf32>
    %267 = vector.shape_cast %264 : vector<8x120xf32> to vector<1x8x120xf32>
    tpu.vector_store %arg24[%c4_77, %c0_78, %c0_79], %267 {strides = array<i32>} : memref<12x8x120xf32, #tpu.memory_space<vmem>>, vector<1x8x120xf32>,
    %268 = arith.mulf %145, %200 : vector<8x120xf32>
    %269 = vector.broadcast %201 : vector<1x120xf32> to vector<8x120xf32>
    %270 = arith.mulf %268, %269 : vector<8x120xf32>
    %271 = vector.broadcast %202 : vector<1x120xf32> to vector<8x120xf32>
    %272 = arith.addf %270, %271 : vector<8x120xf32>
    %cst_80 = arith.constant 0.000000e+00 : f32
    %273 = vector.broadcast %cst_80 : f32 to vector<8x120xf32>
    %274 = arith.cmpf ogt, %272, %273 : vector<8x120xf32>
    %cst_81 = arith.constant 1.000000e-01 : f32
    %275 = vector.broadcast %cst_81 : f32 to vector<8x120xf32>
    %276 = arith.mulf %275, %272 : vector<8x120xf32>
    %277 = arith.select %274, %272, %276 : vector<8x120xi1>, vector<8x120xf32>
    %c5 = arith.constant 5 : index
    %c0_82 = arith.constant 0 : index
    %c0_83 = arith.constant 0 : index
    %278 = vector.load %arg24[%c5, %c0_82, %c0_83] : memref<12x8x120xf32, #tpu.memory_space<vmem>>, vector<1x8x120xf32>
    %279 = vector.shape_cast %278 : vector<1x8x120xf32> to vector<8x120xf32>
    %280 = vector.shape_cast %277 : vector<8x120xf32> to vector<1x8x120xf32>
    tpu.vector_store %arg24[%c5, %c0_82, %c0_83], %280 {strides = array<i32>} : memref<12x8x120xf32, #tpu.memory_space<vmem>>, vector<1x8x120xf32>,
    %281 = arith.mulf %146, %200 : vector<8x120xf32>
    %282 = vector.broadcast %201 : vector<1x120xf32> to vector<8x120xf32>
    %283 = arith.mulf %281, %282 : vector<8x120xf32>
    %284 = vector.broadcast %202 : vector<1x120xf32> to vector<8x120xf32>
    %285 = arith.addf %283, %284 : vector<8x120xf32>
    %cst_84 = arith.constant 0.000000e+00 : f32
    %286 = vector.broadcast %cst_84 : f32 to vector<8x120xf32>
    %287 = arith.cmpf ogt, %285, %286 : vector<8x120xf32>
    %cst_85 = arith.constant 1.000000e-01 : f32
    %288 = vector.broadcast %cst_85 : f32 to vector<8x120xf32>
    %289 = arith.mulf %288, %285 : vector<8x120xf32>
    %290 = arith.select %287, %285, %289 : vector<8x120xi1>, vector<8x120xf32>
    %c6 = arith.constant 6 : index
    %c0_86 = arith.constant 0 : index
    %c0_87 = arith.constant 0 : index
    %291 = vector.load %arg24[%c6, %c0_86, %c0_87] : memref<12x8x120xf32, #tpu.memory_space<vmem>>, vector<1x8x120xf32>
    %292 = vector.shape_cast %291 : vector<1x8x120xf32> to vector<8x120xf32>
    %293 = vector.shape_cast %290 : vector<8x120xf32> to vector<1x8x120xf32>
    tpu.vector_store %arg24[%c6, %c0_86, %c0_87], %293 {strides = array<i32>} : memref<12x8x120xf32, #tpu.memory_space<vmem>>, vector<1x8x120xf32>,
    %294 = arith.mulf %147, %200 : vector<8x120xf32>
    %295 = vector.broadcast %201 : vector<1x120xf32> to vector<8x120xf32>
    %296 = arith.mulf %294, %295 : vector<8x120xf32>
    %297 = vector.broadcast %202 : vector<1x120xf32> to vector<8x120xf32>
    %298 = arith.addf %296, %297 : vector<8x120xf32>
    %cst_88 = arith.constant 0.000000e+00 : f32
    %299 = vector.broadcast %cst_88 : f32 to vector<8x120xf32>
    %300 = arith.cmpf ogt, %298, %299 : vector<8x120xf32>
    %cst_89 = arith.constant 1.000000e-01 : f32
    %301 = vector.broadcast %cst_89 : f32 to vector<8x120xf32>
    %302 = arith.mulf %301, %298 : vector<8x120xf32>
    %303 = arith.select %300, %298, %302 : vector<8x120xi1>, vector<8x120xf32>
    %c7 = arith.constant 7 : index
    %c0_90 = arith.constant 0 : index
    %c0_91 = arith.constant 0 : index
    %304 = vector.load %arg24[%c7, %c0_90, %c0_91] : memref<12x8x120xf32, #tpu.memory_space<vmem>>, vector<1x8x120xf32>
    %305 = vector.shape_cast %304 : vector<1x8x120xf32> to vector<8x120xf32>
    %306 = vector.shape_cast %303 : vector<8x120xf32> to vector<1x8x120xf32>
    tpu.vector_store %arg24[%c7, %c0_90, %c0_91], %306 {strides = array<i32>} : memref<12x8x120xf32, #tpu.memory_space<vmem>>, vector<1x8x120xf32>,
    %307 = arith.mulf %148, %200 : vector<8x120xf32>
    %308 = vector.broadcast %201 : vector<1x120xf32> to vector<8x120xf32>
    %309 = arith.mulf %307, %308 : vector<8x120xf32>
    %310 = vector.broadcast %202 : vector<1x120xf32> to vector<8x120xf32>
    %311 = arith.addf %309, %310 : vector<8x120xf32>
    %cst_92 = arith.constant 0.000000e+00 : f32
    %312 = vector.broadcast %cst_92 : f32 to vector<8x120xf32>
    %313 = arith.cmpf ogt, %311, %312 : vector<8x120xf32>
    %cst_93 = arith.constant 1.000000e-01 : f32
    %314 = vector.broadcast %cst_93 : f32 to vector<8x120xf32>
    %315 = arith.mulf %314, %311 : vector<8x120xf32>
    %316 = arith.select %313, %311, %315 : vector<8x120xi1>, vector<8x120xf32>
    %c8 = arith.constant 8 : index
    %c0_94 = arith.constant 0 : index
    %c0_95 = arith.constant 0 : index
    %317 = vector.load %arg24[%c8, %c0_94, %c0_95] : memref<12x8x120xf32, #tpu.memory_space<vmem>>, vector<1x8x120xf32>
    %318 = vector.shape_cast %317 : vector<1x8x120xf32> to vector<8x120xf32>
    %319 = vector.shape_cast %316 : vector<8x120xf32> to vector<1x8x120xf32>
    tpu.vector_store %arg24[%c8, %c0_94, %c0_95], %319 {strides = array<i32>} : memref<12x8x120xf32, #tpu.memory_space<vmem>>, vector<1x8x120xf32>,
    %320 = arith.mulf %149, %200 : vector<8x120xf32>
    %321 = vector.broadcast %201 : vector<1x120xf32> to vector<8x120xf32>
    %322 = arith.mulf %320, %321 : vector<8x120xf32>
    %323 = vector.broadcast %202 : vector<1x120xf32> to vector<8x120xf32>
    %324 = arith.addf %322, %323 : vector<8x120xf32>
    %cst_96 = arith.constant 0.000000e+00 : f32
    %325 = vector.broadcast %cst_96 : f32 to vector<8x120xf32>
    %326 = arith.cmpf ogt, %324, %325 : vector<8x120xf32>
    %cst_97 = arith.constant 1.000000e-01 : f32
    %327 = vector.broadcast %cst_97 : f32 to vector<8x120xf32>
    %328 = arith.mulf %327, %324 : vector<8x120xf32>
    %329 = arith.select %326, %324, %328 : vector<8x120xi1>, vector<8x120xf32>
    %c9 = arith.constant 9 : index
    %c0_98 = arith.constant 0 : index
    %c0_99 = arith.constant 0 : index
    %330 = vector.load %arg24[%c9, %c0_98, %c0_99] : memref<12x8x120xf32, #tpu.memory_space<vmem>>, vector<1x8x120xf32>
    %331 = vector.shape_cast %330 : vector<1x8x120xf32> to vector<8x120xf32>
    %332 = vector.shape_cast %329 : vector<8x120xf32> to vector<1x8x120xf32>
    tpu.vector_store %arg24[%c9, %c0_98, %c0_99], %332 {strides = array<i32>} : memref<12x8x120xf32, #tpu.memory_space<vmem>>, vector<1x8x120xf32>,
    %333 = arith.mulf %150, %200 : vector<8x120xf32>
    %334 = vector.broadcast %201 : vector<1x120xf32> to vector<8x120xf32>
    %335 = arith.mulf %333, %334 : vector<8x120xf32>
    %336 = vector.broadcast %202 : vector<1x120xf32> to vector<8x120xf32>
    %337 = arith.addf %335, %336 : vector<8x120xf32>
    %cst_100 = arith.constant 0.000000e+00 : f32
    %338 = vector.broadcast %cst_100 : f32 to vector<8x120xf32>
    %339 = arith.cmpf ogt, %337, %338 : vector<8x120xf32>
    %cst_101 = arith.constant 1.000000e-01 : f32
    %340 = vector.broadcast %cst_101 : f32 to vector<8x120xf32>
    %341 = arith.mulf %340, %337 : vector<8x120xf32>
    %342 = arith.select %339, %337, %341 : vector<8x120xi1>, vector<8x120xf32>
    %c10 = arith.constant 10 : index
    %c0_102 = arith.constant 0 : index
    %c0_103 = arith.constant 0 : index
    %343 = vector.load %arg24[%c10, %c0_102, %c0_103] : memref<12x8x120xf32, #tpu.memory_space<vmem>>, vector<1x8x120xf32>
    %344 = vector.shape_cast %343 : vector<1x8x120xf32> to vector<8x120xf32>
    %345 = vector.shape_cast %342 : vector<8x120xf32> to vector<1x8x120xf32>
    tpu.vector_store %arg24[%c10, %c0_102, %c0_103], %345 {strides = array<i32>} : memref<12x8x120xf32, #tpu.memory_space<vmem>>, vector<1x8x120xf32>,
    %346 = arith.mulf %151, %200 : vector<8x120xf32>
    %347 = vector.broadcast %201 : vector<1x120xf32> to vector<8x120xf32>
    %348 = arith.mulf %346, %347 : vector<8x120xf32>
    %349 = vector.broadcast %202 : vector<1x120xf32> to vector<8x120xf32>
    %350 = arith.addf %348, %349 : vector<8x120xf32>
    %cst_104 = arith.constant 0.000000e+00 : f32
    %351 = vector.broadcast %cst_104 : f32 to vector<8x120xf32>
    %352 = arith.cmpf ogt, %350, %351 : vector<8x120xf32>
    %cst_105 = arith.constant 1.000000e-01 : f32
    %353 = vector.broadcast %cst_105 : f32 to vector<8x120xf32>
    %354 = arith.mulf %353, %350 : vector<8x120xf32>
    %355 = arith.select %352, %350, %354 : vector<8x120xi1>, vector<8x120xf32>
    %c11 = arith.constant 11 : index
    %c0_106 = arith.constant 0 : index
    %c0_107 = arith.constant 0 : index
    %356 = vector.load %arg24[%c11, %c0_106, %c0_107] : memref<12x8x120xf32, #tpu.memory_space<vmem>>, vector<1x8x120xf32>
    %357 = vector.shape_cast %356 : vector<1x8x120xf32> to vector<8x120xf32>
    %358 = vector.shape_cast %355 : vector<8x120xf32> to vector<1x8x120xf32>
    tpu.vector_store %arg24[%c11, %c0_106, %c0_107], %358 {strides = array<i32>} : memref<12x8x120xf32, #tpu.memory_space<vmem>>, vector<1x8x120xf32>,
    %cst_108 = arith.constant 0.000000e+00 : f32
    %359 = vector.broadcast %cst_108 : f32 to vector<64x160xf32>
    %c0_109 = arith.constant 0 : index
    %c0_110 = arith.constant 0 : index
    %c0_111 = arith.constant 0 : index
    %360 = vector.load %arg24[%c0_109, %c0_110, %c0_111] : memref<12x8x120xf32, #tpu.memory_space<vmem>>, vector<8x8x120xf32>
    %361 = vector.shape_cast %360 : vector<8x8x120xf32> to vector<64x120xf32>
    %362 = arith.truncf %361 : vector<64x120xf32> to vector<64x120xbf16>
    %c0_112 = arith.constant 0 : index
    %c0_113 = arith.constant 0 : index
    %c0_114 = arith.constant 0 : index
    %363 = vector.load %arg9[%c0_112, %c0_113, %c0_114] : memref<5x120x160xbf16, #tpu.memory_space<vmem>>, vector<1x120x160xbf16>
    %364 = vector.shape_cast %363 : vector<1x120x160xbf16> to vector<120x160xbf16>
    %cst_115 = arith.constant dense<0.000000e+00> : vector<64x160xf32>
    %365 = tpu.matmul %362, %364, %cst_115 {dimension_numbers = #tpu.dot_dimension_numbers<[1], [0], [0], [1], [0, 0, 1, 1], [], []>} : vector<64x120xbf16>, vector<120x160xbf16>, vector<64x160xf32> -> vector<64x160xf32>
    %366 = arith.addf %359, %365 : vector<64x160xf32>
    %c1_116 = arith.constant 1 : index
    %c0_117 = arith.constant 0 : index
    %c0_118 = arith.constant 0 : index
    %367 = vector.load %arg24[%c1_116, %c0_117, %c0_118] : memref<12x8x120xf32, #tpu.memory_space<vmem>>, vector<8x8x120xf32>
    %368 = vector.shape_cast %367 : vector<8x8x120xf32> to vector<64x120xf32>
    %369 = arith.truncf %368 : vector<64x120xf32> to vector<64x120xbf16>
    %c1_119 = arith.constant 1 : index
    %c0_120 = arith.constant 0 : index
    %c0_121 = arith.constant 0 : index
    %370 = vector.load %arg9[%c1_119, %c0_120, %c0_121] : memref<5x120x160xbf16, #tpu.memory_space<vmem>>, vector<1x120x160xbf16>
    %371 = vector.shape_cast %370 : vector<1x120x160xbf16> to vector<120x160xbf16>
    %cst_122 = arith.constant dense<0.000000e+00> : vector<64x160xf32>
    %372 = tpu.matmul %369, %371, %cst_122 {dimension_numbers = #tpu.dot_dimension_numbers<[1], [0], [0], [1], [0, 0, 1, 1], [], []>} : vector<64x120xbf16>, vector<120x160xbf16>, vector<64x160xf32> -> vector<64x160xf32>
    %373 = arith.addf %366, %372 : vector<64x160xf32>
    %c2_123 = arith.constant 2 : index
    %c0_124 = arith.constant 0 : index
    %c0_125 = arith.constant 0 : index
    %374 = vector.load %arg24[%c2_123, %c0_124, %c0_125] : memref<12x8x120xf32, #tpu.memory_space<vmem>>, vector<8x8x120xf32>
    %375 = vector.shape_cast %374 : vector<8x8x120xf32> to vector<64x120xf32>
    %376 = arith.truncf %375 : vector<64x120xf32> to vector<64x120xbf16>
    %c2_126 = arith.constant 2 : index
    %c0_127 = arith.constant 0 : index
    %c0_128 = arith.constant 0 : index
    %377 = vector.load %arg9[%c2_126, %c0_127, %c0_128] : memref<5x120x160xbf16, #tpu.memory_space<vmem>>, vector<1x120x160xbf16>
    %378 = vector.shape_cast %377 : vector<1x120x160xbf16> to vector<120x160xbf16>
    %cst_129 = arith.constant dense<0.000000e+00> : vector<64x160xf32>
    %379 = tpu.matmul %376, %378, %cst_129 {dimension_numbers = #tpu.dot_dimension_numbers<[1], [0], [0], [1], [0, 0, 1, 1], [], []>} : vector<64x120xbf16>, vector<120x160xbf16>, vector<64x160xf32> -> vector<64x160xf32>
    %380 = arith.addf %373, %379 : vector<64x160xf32>
    %c3_130 = arith.constant 3 : index
    %c0_131 = arith.constant 0 : index
    %c0_132 = arith.constant 0 : index
    %381 = vector.load %arg24[%c3_130, %c0_131, %c0_132] : memref<12x8x120xf32, #tpu.memory_space<vmem>>, vector<8x8x120xf32>
    %382 = vector.shape_cast %381 : vector<8x8x120xf32> to vector<64x120xf32>
    %383 = arith.truncf %382 : vector<64x120xf32> to vector<64x120xbf16>
    %c3_133 = arith.constant 3 : index
    %c0_134 = arith.constant 0 : index
    %c0_135 = arith.constant 0 : index
    %384 = vector.load %arg9[%c3_133, %c0_134, %c0_135] : memref<5x120x160xbf16, #tpu.memory_space<vmem>>, vector<1x120x160xbf16>
    %385 = vector.shape_cast %384 : vector<1x120x160xbf16> to vector<120x160xbf16>
    %cst_136 = arith.constant dense<0.000000e+00> : vector<64x160xf32>
    %386 = tpu.matmul %383, %385, %cst_136 {dimension_numbers = #tpu.dot_dimension_numbers<[1], [0], [0], [1], [0, 0, 1, 1], [], []>} : vector<64x120xbf16>, vector<120x160xbf16>, vector<64x160xf32> -> vector<64x160xf32>
    %387 = arith.addf %380, %386 : vector<64x160xf32>
    %c4_137 = arith.constant 4 : index
    %c0_138 = arith.constant 0 : index
    %c0_139 = arith.constant 0 : index
    %388 = vector.load %arg24[%c4_137, %c0_138, %c0_139] : memref<12x8x120xf32, #tpu.memory_space<vmem>>, vector<8x8x120xf32>
    %389 = vector.shape_cast %388 : vector<8x8x120xf32> to vector<64x120xf32>
    %390 = arith.truncf %389 : vector<64x120xf32> to vector<64x120xbf16>
    %c4_140 = arith.constant 4 : index
    %c0_141 = arith.constant 0 : index
    %c0_142 = arith.constant 0 : index
    %391 = vector.load %arg9[%c4_140, %c0_141, %c0_142] : memref<5x120x160xbf16, #tpu.memory_space<vmem>>, vector<1x120x160xbf16>
    %392 = vector.shape_cast %391 : vector<1x120x160xbf16> to vector<120x160xbf16>
    %cst_143 = arith.constant dense<0.000000e+00> : vector<64x160xf32>
    %393 = tpu.matmul %390, %392, %cst_143 {dimension_numbers = #tpu.dot_dimension_numbers<[1], [0], [0], [1], [0, 0, 1, 1], [], []>} : vector<64x120xbf16>, vector<120x160xbf16>, vector<64x160xf32> -> vector<64x160xf32>
    %394 = arith.addf %387, %393 : vector<64x160xf32>
    %c0_144 = arith.constant 0 : index
    %c0_145 = arith.constant 0 : index
    %395 = vector.load %arg12[%c0_144, %c0_145] : memref<1x160xf32, #tpu.memory_space<vmem>>, vector<1x160xf32>
    %396 = vector.broadcast %395 : vector<1x160xf32> to vector<64x160xf32>
    %397 = arith.addf %394, %396 : vector<64x160xf32>
    %c0_146 = arith.constant 0 : index
    %c0_147 = arith.constant 0 : index
    %398 = vector.load %arg10[%c0_146, %c0_147] : memref<160x80xf32, #tpu.memory_space<vmem>>, vector<160x80xf32>
    %cst_148 = arith.constant dense<0.000000e+00> : vector<64x80xf32>
    %399 = tpu.matmul %397, %398, %cst_148 {dimension_numbers = #tpu.dot_dimension_numbers<[1], [0], [0], [1], [0, 0, 1, 1], [], []>} : vector<64x160xf32>, vector<160x80xf32>, vector<64x80xf32> -> vector<64x80xf32>
    %c0_149 = arith.constant 0 : index
    %c0_150 = arith.constant 0 : index
    %400 = vector.load %arg11[%c0_149, %c0_150] : memref<160x80xf32, #tpu.memory_space<vmem>>, vector<160x80xf32>
    %cst_151 = arith.constant dense<0.000000e+00> : vector<64x80xf32>
    %401 = tpu.matmul %397, %400, %cst_151 {dimension_numbers = #tpu.dot_dimension_numbers<[1], [0], [0], [1], [0, 0, 1, 1], [], []>} : vector<64x160xf32>, vector<160x80xf32>, vector<64x80xf32> -> vector<64x80xf32>
    %402 = arith.maximumf %399, %401 : vector<64x80xf32>
    %403 = vector.shape_cast %402 : vector<64x80xf32> to vector<8x8x80xf32>
    %404 = vector.extract_strided_slice %403 {offsets = [0, 0, 0], sizes = [1, 8, 80], strides = [1, 1, 1]} : vector<8x8x80xf32> to vector<1x8x80xf32>
    %405 = vector.shape_cast %404 : vector<1x8x80xf32> to vector<8x80xf32>
    %406 = vector.extract_strided_slice %403 {offsets = [1, 0, 0], sizes = [1, 8, 80], strides = [1, 1, 1]} : vector<8x8x80xf32> to vector<1x8x80xf32>
    %407 = vector.shape_cast %406 : vector<1x8x80xf32> to vector<8x80xf32>
    %408 = arith.maximumf %405, %407 : vector<8x80xf32>
    %409 = vector.extract_strided_slice %403 {offsets = [2, 0, 0], sizes = [1, 8, 80], strides = [1, 1, 1]} : vector<8x8x80xf32> to vector<1x8x80xf32>
    %410 = vector.shape_cast %409 : vector<1x8x80xf32> to vector<8x80xf32>
    %411 = vector.extract_strided_slice %403 {offsets = [3, 0, 0], sizes = [1, 8, 80], strides = [1, 1, 1]} : vector<8x8x80xf32> to vector<1x8x80xf32>
    %412 = vector.shape_cast %411 : vector<1x8x80xf32> to vector<8x80xf32>
    %413 = arith.maximumf %410, %412 : vector<8x80xf32>
    %414 = vector.extract_strided_slice %403 {offsets = [4, 0, 0], sizes = [1, 8, 80], strides = [1, 1, 1]} : vector<8x8x80xf32> to vector<1x8x80xf32>
    %415 = vector.shape_cast %414 : vector<1x8x80xf32> to vector<8x80xf32>
    %416 = vector.extract_strided_slice %403 {offsets = [5, 0, 0], sizes = [1, 8, 80], strides = [1, 1, 1]} : vector<8x8x80xf32> to vector<1x8x80xf32>
    %417 = vector.shape_cast %416 : vector<1x8x80xf32> to vector<8x80xf32>
    %418 = arith.maximumf %415, %417 : vector<8x80xf32>
    %419 = vector.extract_strided_slice %403 {offsets = [6, 0, 0], sizes = [1, 8, 80], strides = [1, 1, 1]} : vector<8x8x80xf32> to vector<1x8x80xf32>
    %420 = vector.shape_cast %419 : vector<1x8x80xf32> to vector<8x80xf32>
    %421 = vector.extract_strided_slice %403 {offsets = [7, 0, 0], sizes = [1, 8, 80], strides = [1, 1, 1]} : vector<8x8x80xf32> to vector<1x8x80xf32>
    %422 = vector.shape_cast %421 : vector<1x8x80xf32> to vector<8x80xf32>
    %423 = arith.maximumf %420, %422 : vector<8x80xf32>
    %c0_152 = arith.constant 0 : index
    %c0_153 = arith.constant 0 : index
    %424 = vector.load %arg15[%c0_152, %c0_153] : memref<4x80xf32, #tpu.memory_space<vmem>>, vector<4x80xf32>
    %425 = arith.addf %408, %413 : vector<8x80xf32>
    %426 = arith.addf %425, %418 : vector<8x80xf32>
    %427 = arith.addf %426, %423 : vector<8x80xf32>
    %cst_154 = arith.constant 0.000000e+00 : f32
    %428 = vector.broadcast %cst_154 : f32 to vector<8x80xf32>
    %429 = vector.extract_strided_slice %424 {offsets = [0, 0], sizes = [1, 80], strides = [1, 1]} : vector<4x80xf32> to vector<1x80xf32>
    %430 = vector.broadcast %429 : vector<1x80xf32> to vector<8x80xf32>
    %431 = arith.mulf %427, %430 : vector<8x80xf32>
    %cst_155 = arith.constant dense<0.000000e+00> : vector<8xf32>
    %432 = vector.multi_reduction <add>, %431, %cst_155 [1] : vector<8x80xf32> to vector<8xf32>
    %433 = vector.shape_cast %432 : vector<8xf32> to vector<8x1xf32>
    %cst_156 = arith.constant 1.250000e-02 : f32
    %434 = vector.broadcast %cst_156 : f32 to vector<8x1xf32>
    %435 = arith.mulf %433, %434 : vector<8x1xf32>
    %436 = vector.broadcast %435 : vector<8x1xf32> to vector<8x80xf32>
    %437 = vector.broadcast %429 : vector<1x80xf32> to vector<8x80xf32>
    %438 = arith.mulf %436, %437 : vector<8x80xf32>
    %439 = arith.addf %428, %438 : vector<8x80xf32>
    %440 = vector.extract_strided_slice %424 {offsets = [1, 0], sizes = [1, 80], strides = [1, 1]} : vector<4x80xf32> to vector<1x80xf32>
    %441 = vector.broadcast %440 : vector<1x80xf32> to vector<8x80xf32>
    %442 = arith.mulf %427, %441 : vector<8x80xf32>
    %cst_157 = arith.constant dense<0.000000e+00> : vector<8xf32>
    %443 = vector.multi_reduction <add>, %442, %cst_157 [1] : vector<8x80xf32> to vector<8xf32>
    %444 = vector.shape_cast %443 : vector<8xf32> to vector<8x1xf32>
    %cst_158 = arith.constant 1.250000e-02 : f32
    %445 = vector.broadcast %cst_158 : f32 to vector<8x1xf32>
    %446 = arith.mulf %444, %445 : vector<8x1xf32>
    %447 = vector.broadcast %446 : vector<8x1xf32> to vector<8x80xf32>
    %448 = vector.broadcast %440 : vector<1x80xf32> to vector<8x80xf32>
    %449 = arith.mulf %447, %448 : vector<8x80xf32>
    %450 = arith.addf %439, %449 : vector<8x80xf32>
    %451 = vector.extract_strided_slice %424 {offsets = [2, 0], sizes = [1, 80], strides = [1, 1]} : vector<4x80xf32> to vector<1x80xf32>
    %452 = vector.broadcast %451 : vector<1x80xf32> to vector<8x80xf32>
    %453 = arith.mulf %427, %452 : vector<8x80xf32>
    %cst_159 = arith.constant dense<0.000000e+00> : vector<8xf32>
    %454 = vector.multi_reduction <add>, %453, %cst_159 [1] : vector<8x80xf32> to vector<8xf32>
    %455 = vector.shape_cast %454 : vector<8xf32> to vector<8x1xf32>
    %cst_160 = arith.constant 1.250000e-02 : f32
    %456 = vector.broadcast %cst_160 : f32 to vector<8x1xf32>
    %457 = arith.mulf %455, %456 : vector<8x1xf32>
    %458 = vector.broadcast %457 : vector<8x1xf32> to vector<8x80xf32>
    %459 = vector.broadcast %451 : vector<1x80xf32> to vector<8x80xf32>
    %460 = arith.mulf %458, %459 : vector<8x80xf32>
    %461 = arith.addf %450, %460 : vector<8x80xf32>
    %462 = vector.extract_strided_slice %424 {offsets = [3, 0], sizes = [1, 80], strides = [1, 1]} : vector<4x80xf32> to vector<1x80xf32>
    %463 = vector.broadcast %462 : vector<1x80xf32> to vector<8x80xf32>
    %464 = arith.mulf %427, %463 : vector<8x80xf32>
    %cst_161 = arith.constant dense<0.000000e+00> : vector<8xf32>
    %465 = vector.multi_reduction <add>, %464, %cst_161 [1] : vector<8x80xf32> to vector<8xf32>
    %466 = vector.shape_cast %465 : vector<8xf32> to vector<8x1xf32>
    %cst_162 = arith.constant 1.250000e-02 : f32
    %467 = vector.broadcast %cst_162 : f32 to vector<8x1xf32>
    %468 = arith.mulf %466, %467 : vector<8x1xf32>
    %469 = vector.broadcast %468 : vector<8x1xf32> to vector<8x80xf32>
    %470 = vector.broadcast %462 : vector<1x80xf32> to vector<8x80xf32>
    %471 = arith.mulf %469, %470 : vector<8x80xf32>
    %472 = arith.addf %461, %471 : vector<8x80xf32>
    %473 = arith.subf %408, %472 : vector<8x80xf32>
    %474 = arith.subf %413, %472 : vector<8x80xf32>
    %475 = arith.subf %418, %472 : vector<8x80xf32>
    %476 = arith.subf %423, %472 : vector<8x80xf32>
    %477 = arith.mulf %473, %473 : vector<8x80xf32>
    %478 = arith.mulf %474, %474 : vector<8x80xf32>
    %479 = arith.addf %477, %478 : vector<8x80xf32>
    %480 = arith.mulf %475, %475 : vector<8x80xf32>
    %481 = arith.addf %479, %480 : vector<8x80xf32>
    %482 = arith.mulf %476, %476 : vector<8x80xf32>
    %483 = arith.addf %481, %482 : vector<8x80xf32>
    %cst_163 = arith.constant 0.000000e+00 : f32
    %484 = vector.broadcast %cst_163 : f32 to vector<8x80xf32>
    %485 = vector.extract_strided_slice %424 {offsets = [0, 0], sizes = [1, 80], strides = [1, 1]} : vector<4x80xf32> to vector<1x80xf32>
    %486 = vector.broadcast %485 : vector<1x80xf32> to vector<8x80xf32>
    %487 = arith.mulf %483, %486 : vector<8x80xf32>
    %cst_164 = arith.constant dense<0.000000e+00> : vector<8xf32>
    %488 = vector.multi_reduction <add>, %487, %cst_164 [1] : vector<8x80xf32> to vector<8xf32>
    %489 = vector.shape_cast %488 : vector<8xf32> to vector<8x1xf32>
    %cst_165 = arith.constant 1.250000e-02 : f32
    %490 = vector.broadcast %cst_165 : f32 to vector<8x1xf32>
    %491 = arith.mulf %489, %490 : vector<8x1xf32>
    %492 = vector.broadcast %491 : vector<8x1xf32> to vector<8x80xf32>
    %493 = vector.broadcast %485 : vector<1x80xf32> to vector<8x80xf32>
    %494 = arith.mulf %492, %493 : vector<8x80xf32>
    %495 = arith.addf %484, %494 : vector<8x80xf32>
    %496 = vector.extract_strided_slice %424 {offsets = [1, 0], sizes = [1, 80], strides = [1, 1]} : vector<4x80xf32> to vector<1x80xf32>
    %497 = vector.broadcast %496 : vector<1x80xf32> to vector<8x80xf32>
    %498 = arith.mulf %483, %497 : vector<8x80xf32>
    %cst_166 = arith.constant dense<0.000000e+00> : vector<8xf32>
    %499 = vector.multi_reduction <add>, %498, %cst_166 [1] : vector<8x80xf32> to vector<8xf32>
    %500 = vector.shape_cast %499 : vector<8xf32> to vector<8x1xf32>
    %cst_167 = arith.constant 1.250000e-02 : f32
    %501 = vector.broadcast %cst_167 : f32 to vector<8x1xf32>
    %502 = arith.mulf %500, %501 : vector<8x1xf32>
    %503 = vector.broadcast %502 : vector<8x1xf32> to vector<8x80xf32>
    %504 = vector.broadcast %496 : vector<1x80xf32> to vector<8x80xf32>
    %505 = arith.mulf %503, %504 : vector<8x80xf32>
    %506 = arith.addf %495, %505 : vector<8x80xf32>
    %507 = vector.extract_strided_slice %424 {offsets = [2, 0], sizes = [1, 80], strides = [1, 1]} : vector<4x80xf32> to vector<1x80xf32>
    %508 = vector.broadcast %507 : vector<1x80xf32> to vector<8x80xf32>
    %509 = arith.mulf %483, %508 : vector<8x80xf32>
    %cst_168 = arith.constant dense<0.000000e+00> : vector<8xf32>
    %510 = vector.multi_reduction <add>, %509, %cst_168 [1] : vector<8x80xf32> to vector<8xf32>
    %511 = vector.shape_cast %510 : vector<8xf32> to vector<8x1xf32>
    %cst_169 = arith.constant 1.250000e-02 : f32
    %512 = vector.broadcast %cst_169 : f32 to vector<8x1xf32>
    %513 = arith.mulf %511, %512 : vector<8x1xf32>
    %514 = vector.broadcast %513 : vector<8x1xf32> to vector<8x80xf32>
    %515 = vector.broadcast %507 : vector<1x80xf32> to vector<8x80xf32>
    %516 = arith.mulf %514, %515 : vector<8x80xf32>
    %517 = arith.addf %506, %516 : vector<8x80xf32>
    %518 = vector.extract_strided_slice %424 {offsets = [3, 0], sizes = [1, 80], strides = [1, 1]} : vector<4x80xf32> to vector<1x80xf32>
    %519 = vector.broadcast %518 : vector<1x80xf32> to vector<8x80xf32>
    %520 = arith.mulf %483, %519 : vector<8x80xf32>
    %cst_170 = arith.constant dense<0.000000e+00> : vector<8xf32>
    %521 = vector.multi_reduction <add>, %520, %cst_170 [1] : vector<8x80xf32> to vector<8xf32>
    %522 = vector.shape_cast %521 : vector<8xf32> to vector<8x1xf32>
    %cst_171 = arith.constant 1.250000e-02 : f32
    %523 = vector.broadcast %cst_171 : f32 to vector<8x1xf32>
    %524 = arith.mulf %522, %523 : vector<8x1xf32>
    %525 = vector.broadcast %524 : vector<8x1xf32> to vector<8x80xf32>
    %526 = vector.broadcast %518 : vector<1x80xf32> to vector<8x80xf32>
    %527 = arith.mulf %525, %526 : vector<8x80xf32>
    %528 = arith.addf %517, %527 : vector<8x80xf32>
    %cst_172 = arith.constant 9.99999974E-6 : f32
    %529 = vector.broadcast %cst_172 : f32 to vector<8x80xf32>
    %530 = arith.addf %528, %529 : vector<8x80xf32>
    %531 = math.rsqrt %530 : vector<8x80xf32>
    %c0_173 = arith.constant 0 : index
    %c0_174 = arith.constant 0 : index
    %532 = vector.load %arg13[%c0_173, %c0_174] : memref<1x80xf32, #tpu.memory_space<vmem>>, vector<1x80xf32>
    %c0_175 = arith.constant 0 : index
    %c0_176 = arith.constant 0 : index
    %533 = vector.load %arg14[%c0_175, %c0_176] : memref<1x80xf32, #tpu.memory_space<vmem>>, vector<1x80xf32>
    %534 = arith.mulf %473, %531 : vector<8x80xf32>
    %535 = vector.broadcast %532 : vector<1x80xf32> to vector<8x80xf32>
    %536 = arith.mulf %534, %535 : vector<8x80xf32>
    %537 = vector.broadcast %533 : vector<1x80xf32> to vector<8x80xf32>
    %538 = arith.addf %536, %537 : vector<8x80xf32>
    %cst_177 = arith.constant 0.000000e+00 : f32
    %539 = vector.broadcast %cst_177 : f32 to vector<8x80xf32>
    %540 = arith.cmpf ogt, %538, %539 : vector<8x80xf32>
    %cst_178 = arith.constant 1.000000e-01 : f32
    %541 = vector.broadcast %cst_178 : f32 to vector<8x80xf32>
    %542 = arith.mulf %541, %538 : vector<8x80xf32>
    %543 = arith.select %540, %538, %542 : vector<8x80xi1>, vector<8x80xf32>
    %544 = arith.mulf %474, %531 : vector<8x80xf32>
    %545 = vector.broadcast %532 : vector<1x80xf32> to vector<8x80xf32>
    %546 = arith.mulf %544, %545 : vector<8x80xf32>
    %547 = vector.broadcast %533 : vector<1x80xf32> to vector<8x80xf32>
    %548 = arith.addf %546, %547 : vector<8x80xf32>
    %cst_179 = arith.constant 0.000000e+00 : f32
    %549 = vector.broadcast %cst_179 : f32 to vector<8x80xf32>
    %550 = arith.cmpf ogt, %548, %549 : vector<8x80xf32>
    %cst_180 = arith.constant 1.000000e-01 : f32
    %551 = vector.broadcast %cst_180 : f32 to vector<8x80xf32>
    %552 = arith.mulf %551, %548 : vector<8x80xf32>
    %553 = arith.select %550, %548, %552 : vector<8x80xi1>, vector<8x80xf32>
    %554 = arith.mulf %475, %531 : vector<8x80xf32>
    %555 = vector.broadcast %532 : vector<1x80xf32> to vector<8x80xf32>
    %556 = arith.mulf %554, %555 : vector<8x80xf32>
    %557 = vector.broadcast %533 : vector<1x80xf32> to vector<8x80xf32>
    %558 = arith.addf %556, %557 : vector<8x80xf32>
    %cst_181 = arith.constant 0.000000e+00 : f32
    %559 = vector.broadcast %cst_181 : f32 to vector<8x80xf32>
    %560 = arith.cmpf ogt, %558, %559 : vector<8x80xf32>
    %cst_182 = arith.constant 1.000000e-01 : f32
    %561 = vector.broadcast %cst_182 : f32 to vector<8x80xf32>
    %562 = arith.mulf %561, %558 : vector<8x80xf32>
    %563 = arith.select %560, %558, %562 : vector<8x80xi1>, vector<8x80xf32>
    %564 = arith.mulf %476, %531 : vector<8x80xf32>
    %565 = vector.broadcast %532 : vector<1x80xf32> to vector<8x80xf32>
    %566 = arith.mulf %564, %565 : vector<8x80xf32>
    %567 = vector.broadcast %533 : vector<1x80xf32> to vector<8x80xf32>
    %568 = arith.addf %566, %567 : vector<8x80xf32>
    %cst_183 = arith.constant 0.000000e+00 : f32
    %569 = vector.broadcast %cst_183 : f32 to vector<8x80xf32>
    %570 = arith.cmpf ogt, %568, %569 : vector<8x80xf32>
    %cst_184 = arith.constant 1.000000e-01 : f32
    %571 = vector.broadcast %cst_184 : f32 to vector<8x80xf32>
    %572 = arith.mulf %571, %568 : vector<8x80xf32>
    %573 = arith.select %570, %568, %572 : vector<8x80xi1>, vector<8x80xf32>
    %cst_185 = arith.constant 0.000000e+00 : f32
    %574 = vector.broadcast %cst_185 : f32 to vector<8x64xf32>
    %575 = arith.truncf %543 : vector<8x80xf32> to vector<8x80xbf16>
    %c0_186 = arith.constant 0 : index
    %c0_187 = arith.constant 0 : index
    %c0_188 = arith.constant 0 : index
    %576 = vector.load %arg16[%c0_186, %c0_187, %c0_188] : memref<4x80x64xbf16, #tpu.memory_space<vmem>>, vector<1x80x64xbf16>
    %577 = vector.shape_cast %576 : vector<1x80x64xbf16> to vector<80x64xbf16>
    %cst_189 = arith.constant dense<0.000000e+00> : vector<8x64xf32>
    %578 = tpu.matmul %575, %577, %cst_189 {dimension_numbers = #tpu.dot_dimension_numbers<[1], [0], [0], [1], [0, 0, 1, 1], [], []>} : vector<8x80xbf16>, vector<80x64xbf16>, vector<8x64xf32> -> vector<8x64xf32>
    %579 = arith.addf %574, %578 : vector<8x64xf32>
    %580 = arith.truncf %553 : vector<8x80xf32> to vector<8x80xbf16>
    %c1_190 = arith.constant 1 : index
    %c0_191 = arith.constant 0 : index
    %c0_192 = arith.constant 0 : index
    %581 = vector.load %arg16[%c1_190, %c0_191, %c0_192] : memref<4x80x64xbf16, #tpu.memory_space<vmem>>, vector<1x80x64xbf16>
    %582 = vector.shape_cast %581 : vector<1x80x64xbf16> to vector<80x64xbf16>
    %cst_193 = arith.constant dense<0.000000e+00> : vector<8x64xf32>
    %583 = tpu.matmul %580, %582, %cst_193 {dimension_numbers = #tpu.dot_dimension_numbers<[1], [0], [0], [1], [0, 0, 1, 1], [], []>} : vector<8x80xbf16>, vector<80x64xbf16>, vector<8x64xf32> -> vector<8x64xf32>
    %584 = arith.addf %579, %583 : vector<8x64xf32>
    %585 = arith.truncf %563 : vector<8x80xf32> to vector<8x80xbf16>
    %c2_194 = arith.constant 2 : index
    %c0_195 = arith.constant 0 : index
    %c0_196 = arith.constant 0 : index
    %586 = vector.load %arg16[%c2_194, %c0_195, %c0_196] : memref<4x80x64xbf16, #tpu.memory_space<vmem>>, vector<1x80x64xbf16>
    %587 = vector.shape_cast %586 : vector<1x80x64xbf16> to vector<80x64xbf16>
    %cst_197 = arith.constant dense<0.000000e+00> : vector<8x64xf32>
    %588 = tpu.matmul %585, %587, %cst_197 {dimension_numbers = #tpu.dot_dimension_numbers<[1], [0], [0], [1], [0, 0, 1, 1], [], []>} : vector<8x80xbf16>, vector<80x64xbf16>, vector<8x64xf32> -> vector<8x64xf32>
    %589 = arith.addf %584, %588 : vector<8x64xf32>
    %590 = arith.truncf %573 : vector<8x80xf32> to vector<8x80xbf16>
    %c3_198 = arith.constant 3 : index
    %c0_199 = arith.constant 0 : index
    %c0_200 = arith.constant 0 : index
    %591 = vector.load %arg16[%c3_198, %c0_199, %c0_200] : memref<4x80x64xbf16, #tpu.memory_space<vmem>>, vector<1x80x64xbf16>
    %592 = vector.shape_cast %591 : vector<1x80x64xbf16> to vector<80x64xbf16>
    %cst_201 = arith.constant dense<0.000000e+00> : vector<8x64xf32>
    %593 = tpu.matmul %590, %592, %cst_201 {dimension_numbers = #tpu.dot_dimension_numbers<[1], [0], [0], [1], [0, 0, 1, 1], [], []>} : vector<8x80xbf16>, vector<80x64xbf16>, vector<8x64xf32> -> vector<8x64xf32>
    %594 = arith.addf %589, %593 : vector<8x64xf32>
    %c0_202 = arith.constant 0 : index
    %c0_203 = arith.constant 0 : index
    %595 = vector.load %arg17[%c0_202, %c0_203] : memref<1x64xf32, #tpu.memory_space<vmem>>, vector<1x64xf32>
    %596 = vector.broadcast %595 : vector<1x64xf32> to vector<8x64xf32>
    %597 = arith.addf %594, %596 : vector<8x64xf32>
    %c0_204 = arith.constant 0 : index
    %c0_205 = arith.constant 0 : index
    %598 = vector.load %arg20[%c0_204, %c0_205] : memref<10x64xf32, #tpu.memory_space<vmem>>, vector<10x64xf32>
    %cst_206 = arith.constant 0.000000e+00 : f32
    %599 = vector.broadcast %cst_206 : f32 to vector<8x64xf32>
    %600 = vector.extract_strided_slice %598 {offsets = [0, 0], sizes = [1, 64], strides = [1, 1]} : vector<10x64xf32> to vector<1x64xf32>
    %601 = vector.broadcast %600 : vector<1x64xf32> to vector<8x64xf32>
    %602 = arith.mulf %597, %601 : vector<8x64xf32>
    %cst_207 = arith.constant dense<0.000000e+00> : vector<8xf32>
    %603 = vector.multi_reduction <add>, %602, %cst_207 [1] : vector<8x64xf32> to vector<8xf32>
    %604 = vector.shape_cast %603 : vector<8xf32> to vector<8x1xf32>
    %cst_208 = arith.constant 2.000000e-01 : f32
    %605 = vector.broadcast %cst_208 : f32 to vector<8x1xf32>
    %606 = arith.mulf %604, %605 : vector<8x1xf32>
    %607 = vector.broadcast %606 : vector<8x1xf32> to vector<8x64xf32>
    %608 = vector.broadcast %600 : vector<1x64xf32> to vector<8x64xf32>
    %609 = arith.mulf %607, %608 : vector<8x64xf32>
    %610 = arith.addf %599, %609 : vector<8x64xf32>
    %611 = vector.extract_strided_slice %598 {offsets = [1, 0], sizes = [1, 64], strides = [1, 1]} : vector<10x64xf32> to vector<1x64xf32>
    %612 = vector.broadcast %611 : vector<1x64xf32> to vector<8x64xf32>
    %613 = arith.mulf %597, %612 : vector<8x64xf32>
    %cst_209 = arith.constant dense<0.000000e+00> : vector<8xf32>
    %614 = vector.multi_reduction <add>, %613, %cst_209 [1] : vector<8x64xf32> to vector<8xf32>
    %615 = vector.shape_cast %614 : vector<8xf32> to vector<8x1xf32>
    %cst_210 = arith.constant 2.000000e-01 : f32
    %616 = vector.broadcast %cst_210 : f32 to vector<8x1xf32>
    %617 = arith.mulf %615, %616 : vector<8x1xf32>
    %618 = vector.broadcast %617 : vector<8x1xf32> to vector<8x64xf32>
    %619 = vector.broadcast %611 : vector<1x64xf32> to vector<8x64xf32>
    %620 = arith.mulf %618, %619 : vector<8x64xf32>
    %621 = arith.addf %610, %620 : vector<8x64xf32>
    %622 = vector.extract_strided_slice %598 {offsets = [2, 0], sizes = [1, 64], strides = [1, 1]} : vector<10x64xf32> to vector<1x64xf32>
    %623 = vector.broadcast %622 : vector<1x64xf32> to vector<8x64xf32>
    %624 = arith.mulf %597, %623 : vector<8x64xf32>
    %cst_211 = arith.constant dense<0.000000e+00> : vector<8xf32>
    %625 = vector.multi_reduction <add>, %624, %cst_211 [1] : vector<8x64xf32> to vector<8xf32>
    %626 = vector.shape_cast %625 : vector<8xf32> to vector<8x1xf32>
    %cst_212 = arith.constant 2.000000e-01 : f32
    %627 = vector.broadcast %cst_212 : f32 to vector<8x1xf32>
    %628 = arith.mulf %626, %627 : vector<8x1xf32>
    %629 = vector.broadcast %628 : vector<8x1xf32> to vector<8x64xf32>
    %630 = vector.broadcast %622 : vector<1x64xf32> to vector<8x64xf32>
    %631 = arith.mulf %629, %630 : vector<8x64xf32>
    %632 = arith.addf %621, %631 : vector<8x64xf32>
    %633 = vector.extract_strided_slice %598 {offsets = [3, 0], sizes = [1, 64], strides = [1, 1]} : vector<10x64xf32> to vector<1x64xf32>
    %634 = vector.broadcast %633 : vector<1x64xf32> to vector<8x64xf32>
    %635 = arith.mulf %597, %634 : vector<8x64xf32>
    %cst_213 = arith.constant dense<0.000000e+00> : vector<8xf32>
    %636 = vector.multi_reduction <add>, %635, %cst_213 [1] : vector<8x64xf32> to vector<8xf32>
    %637 = vector.shape_cast %636 : vector<8xf32> to vector<8x1xf32>
    %cst_214 = arith.constant 2.000000e-01 : f32
    %638 = vector.broadcast %cst_214 : f32 to vector<8x1xf32>
    %639 = arith.mulf %637, %638 : vector<8x1xf32>
    %640 = vector.broadcast %639 : vector<8x1xf32> to vector<8x64xf32>
    %641 = vector.broadcast %633 : vector<1x64xf32> to vector<8x64xf32>
    %642 = arith.mulf %640, %641 : vector<8x64xf32>
    %643 = arith.addf %632, %642 : vector<8x64xf32>
    %644 = vector.extract_strided_slice %598 {offsets = [4, 0], sizes = [1, 64], strides = [1, 1]} : vector<10x64xf32> to vector<1x64xf32>
    %645 = vector.broadcast %644 : vector<1x64xf32> to vector<8x64xf32>
    %646 = arith.mulf %597, %645 : vector<8x64xf32>
    %cst_215 = arith.constant dense<0.000000e+00> : vector<8xf32>
    %647 = vector.multi_reduction <add>, %646, %cst_215 [1] : vector<8x64xf32> to vector<8xf32>
    %648 = vector.shape_cast %647 : vector<8xf32> to vector<8x1xf32>
    %cst_216 = arith.constant 2.000000e-01 : f32
    %649 = vector.broadcast %cst_216 : f32 to vector<8x1xf32>
    %650 = arith.mulf %648, %649 : vector<8x1xf32>
    %651 = vector.broadcast %650 : vector<8x1xf32> to vector<8x64xf32>
    %652 = vector.broadcast %644 : vector<1x64xf32> to vector<8x64xf32>
    %653 = arith.mulf %651, %652 : vector<8x64xf32>
    %654 = arith.addf %643, %653 : vector<8x64xf32>
    %655 = vector.extract_strided_slice %598 {offsets = [5, 0], sizes = [1, 64], strides = [1, 1]} : vector<10x64xf32> to vector<1x64xf32>
    %656 = vector.broadcast %655 : vector<1x64xf32> to vector<8x64xf32>
    %657 = arith.mulf %597, %656 : vector<8x64xf32>
    %cst_217 = arith.constant dense<0.000000e+00> : vector<8xf32>
    %658 = vector.multi_reduction <add>, %657, %cst_217 [1] : vector<8x64xf32> to vector<8xf32>
    %659 = vector.shape_cast %658 : vector<8xf32> to vector<8x1xf32>
    %cst_218 = arith.constant 2.000000e-01 : f32
    %660 = vector.broadcast %cst_218 : f32 to vector<8x1xf32>
    %661 = arith.mulf %659, %660 : vector<8x1xf32>
    %662 = vector.broadcast %661 : vector<8x1xf32> to vector<8x64xf32>
    %663 = vector.broadcast %655 : vector<1x64xf32> to vector<8x64xf32>
    %664 = arith.mulf %662, %663 : vector<8x64xf32>
    %665 = arith.addf %654, %664 : vector<8x64xf32>
    %666 = vector.extract_strided_slice %598 {offsets = [6, 0], sizes = [1, 64], strides = [1, 1]} : vector<10x64xf32> to vector<1x64xf32>
    %667 = vector.broadcast %666 : vector<1x64xf32> to vector<8x64xf32>
    %668 = arith.mulf %597, %667 : vector<8x64xf32>
    %cst_219 = arith.constant dense<0.000000e+00> : vector<8xf32>
    %669 = vector.multi_reduction <add>, %668, %cst_219 [1] : vector<8x64xf32> to vector<8xf32>
    %670 = vector.shape_cast %669 : vector<8xf32> to vector<8x1xf32>
    %cst_220 = arith.constant 2.000000e-01 : f32
    %671 = vector.broadcast %cst_220 : f32 to vector<8x1xf32>
    %672 = arith.mulf %670, %671 : vector<8x1xf32>
    %673 = vector.broadcast %672 : vector<8x1xf32> to vector<8x64xf32>
    %674 = vector.broadcast %666 : vector<1x64xf32> to vector<8x64xf32>
    %675 = arith.mulf %673, %674 : vector<8x64xf32>
    %676 = arith.addf %665, %675 : vector<8x64xf32>
    %677 = vector.extract_strided_slice %598 {offsets = [7, 0], sizes = [1, 64], strides = [1, 1]} : vector<10x64xf32> to vector<1x64xf32>
    %678 = vector.broadcast %677 : vector<1x64xf32> to vector<8x64xf32>
    %679 = arith.mulf %597, %678 : vector<8x64xf32>
    %cst_221 = arith.constant dense<0.000000e+00> : vector<8xf32>
    %680 = vector.multi_reduction <add>, %679, %cst_221 [1] : vector<8x64xf32> to vector<8xf32>
    %681 = vector.shape_cast %680 : vector<8xf32> to vector<8x1xf32>
    %cst_222 = arith.constant 2.000000e-01 : f32
    %682 = vector.broadcast %cst_222 : f32 to vector<8x1xf32>
    %683 = arith.mulf %681, %682 : vector<8x1xf32>
    %684 = vector.broadcast %683 : vector<8x1xf32> to vector<8x64xf32>
    %685 = vector.broadcast %677 : vector<1x64xf32> to vector<8x64xf32>
    %686 = arith.mulf %684, %685 : vector<8x64xf32>
    %687 = arith.addf %676, %686 : vector<8x64xf32>
    %688 = vector.extract_strided_slice %598 {offsets = [8, 0], sizes = [1, 64], strides = [1, 1]} : vector<10x64xf32> to vector<1x64xf32>
    %689 = vector.broadcast %688 : vector<1x64xf32> to vector<8x64xf32>
    %690 = arith.mulf %597, %689 : vector<8x64xf32>
    %cst_223 = arith.constant dense<0.000000e+00> : vector<8xf32>
    %691 = vector.multi_reduction <add>, %690, %cst_223 [1] : vector<8x64xf32> to vector<8xf32>
    %692 = vector.shape_cast %691 : vector<8xf32> to vector<8x1xf32>
    %cst_224 = arith.constant 2.000000e-01 : f32
    %693 = vector.broadcast %cst_224 : f32 to vector<8x1xf32>
    %694 = arith.mulf %692, %693 : vector<8x1xf32>
    %695 = vector.broadcast %694 : vector<8x1xf32> to vector<8x64xf32>
    %696 = vector.broadcast %688 : vector<1x64xf32> to vector<8x64xf32>
    %697 = arith.mulf %695, %696 : vector<8x64xf32>
    %698 = arith.addf %687, %697 : vector<8x64xf32>
    %699 = vector.extract_strided_slice %598 {offsets = [9, 0], sizes = [1, 64], strides = [1, 1]} : vector<10x64xf32> to vector<1x64xf32>
    %700 = vector.broadcast %699 : vector<1x64xf32> to vector<8x64xf32>
    %701 = arith.mulf %597, %700 : vector<8x64xf32>
    %cst_225 = arith.constant dense<0.000000e+00> : vector<8xf32>
    %702 = vector.multi_reduction <add>, %701, %cst_225 [1] : vector<8x64xf32> to vector<8xf32>
    %703 = vector.shape_cast %702 : vector<8xf32> to vector<8x1xf32>
    %cst_226 = arith.constant 2.000000e-01 : f32
    %704 = vector.broadcast %cst_226 : f32 to vector<8x1xf32>
    %705 = arith.mulf %703, %704 : vector<8x1xf32>
    %706 = vector.broadcast %705 : vector<8x1xf32> to vector<8x64xf32>
    %707 = vector.broadcast %699 : vector<1x64xf32> to vector<8x64xf32>
    %708 = arith.mulf %706, %707 : vector<8x64xf32>
    %709 = arith.addf %698, %708 : vector<8x64xf32>
    %710 = arith.subf %597, %709 : vector<8x64xf32>
    %cst_227 = arith.constant 0.000000e+00 : f32
    %711 = vector.broadcast %cst_227 : f32 to vector<8x64xf32>
    %712 = vector.extract_strided_slice %598 {offsets = [0, 0], sizes = [1, 64], strides = [1, 1]} : vector<10x64xf32> to vector<1x64xf32>
    %713 = arith.mulf %710, %710 : vector<8x64xf32>
    %714 = vector.broadcast %712 : vector<1x64xf32> to vector<8x64xf32>
    %715 = arith.mulf %713, %714 : vector<8x64xf32>
    %cst_228 = arith.constant dense<0.000000e+00> : vector<8xf32>
    %716 = vector.multi_reduction <add>, %715, %cst_228 [1] : vector<8x64xf32> to vector<8xf32>
    %717 = vector.shape_cast %716 : vector<8xf32> to vector<8x1xf32>
    %cst_229 = arith.constant 2.000000e-01 : f32
    %718 = vector.broadcast %cst_229 : f32 to vector<8x1xf32>
    %719 = arith.mulf %717, %718 : vector<8x1xf32>
    %720 = vector.broadcast %719 : vector<8x1xf32> to vector<8x64xf32>
    %721 = vector.broadcast %712 : vector<1x64xf32> to vector<8x64xf32>
    %722 = arith.mulf %720, %721 : vector<8x64xf32>
    %723 = arith.addf %711, %722 : vector<8x64xf32>
    %724 = vector.extract_strided_slice %598 {offsets = [1, 0], sizes = [1, 64], strides = [1, 1]} : vector<10x64xf32> to vector<1x64xf32>
    %725 = arith.mulf %710, %710 : vector<8x64xf32>
    %726 = vector.broadcast %724 : vector<1x64xf32> to vector<8x64xf32>
    %727 = arith.mulf %725, %726 : vector<8x64xf32>
    %cst_230 = arith.constant dense<0.000000e+00> : vector<8xf32>
    %728 = vector.multi_reduction <add>, %727, %cst_230 [1] : vector<8x64xf32> to vector<8xf32>
    %729 = vector.shape_cast %728 : vector<8xf32> to vector<8x1xf32>
    %cst_231 = arith.constant 2.000000e-01 : f32
    %730 = vector.broadcast %cst_231 : f32 to vector<8x1xf32>
    %731 = arith.mulf %729, %730 : vector<8x1xf32>
    %732 = vector.broadcast %731 : vector<8x1xf32> to vector<8x64xf32>
    %733 = vector.broadcast %724 : vector<1x64xf32> to vector<8x64xf32>
    %734 = arith.mulf %732, %733 : vector<8x64xf32>
    %735 = arith.addf %723, %734 : vector<8x64xf32>
    %736 = vector.extract_strided_slice %598 {offsets = [2, 0], sizes = [1, 64], strides = [1, 1]} : vector<10x64xf32> to vector<1x64xf32>
    %737 = arith.mulf %710, %710 : vector<8x64xf32>
    %738 = vector.broadcast %736 : vector<1x64xf32> to vector<8x64xf32>
    %739 = arith.mulf %737, %738 : vector<8x64xf32>
    %cst_232 = arith.constant dense<0.000000e+00> : vector<8xf32>
    %740 = vector.multi_reduction <add>, %739, %cst_232 [1] : vector<8x64xf32> to vector<8xf32>
    %741 = vector.shape_cast %740 : vector<8xf32> to vector<8x1xf32>
    %cst_233 = arith.constant 2.000000e-01 : f32
    %742 = vector.broadcast %cst_233 : f32 to vector<8x1xf32>
    %743 = arith.mulf %741, %742 : vector<8x1xf32>
    %744 = vector.broadcast %743 : vector<8x1xf32> to vector<8x64xf32>
    %745 = vector.broadcast %736 : vector<1x64xf32> to vector<8x64xf32>
    %746 = arith.mulf %744, %745 : vector<8x64xf32>
    %747 = arith.addf %735, %746 : vector<8x64xf32>
    %748 = vector.extract_strided_slice %598 {offsets = [3, 0], sizes = [1, 64], strides = [1, 1]} : vector<10x64xf32> to vector<1x64xf32>
    %749 = arith.mulf %710, %710 : vector<8x64xf32>
    %750 = vector.broadcast %748 : vector<1x64xf32> to vector<8x64xf32>
    %751 = arith.mulf %749, %750 : vector<8x64xf32>
    %cst_234 = arith.constant dense<0.000000e+00> : vector<8xf32>
    %752 = vector.multi_reduction <add>, %751, %cst_234 [1] : vector<8x64xf32> to vector<8xf32>
    %753 = vector.shape_cast %752 : vector<8xf32> to vector<8x1xf32>
    %cst_235 = arith.constant 2.000000e-01 : f32
    %754 = vector.broadcast %cst_235 : f32 to vector<8x1xf32>
    %755 = arith.mulf %753, %754 : vector<8x1xf32>
    %756 = vector.broadcast %755 : vector<8x1xf32> to vector<8x64xf32>
    %757 = vector.broadcast %748 : vector<1x64xf32> to vector<8x64xf32>
    %758 = arith.mulf %756, %757 : vector<8x64xf32>
    %759 = arith.addf %747, %758 : vector<8x64xf32>
    %760 = vector.extract_strided_slice %598 {offsets = [4, 0], sizes = [1, 64], strides = [1, 1]} : vector<10x64xf32> to vector<1x64xf32>
    %761 = arith.mulf %710, %710 : vector<8x64xf32>
    %762 = vector.broadcast %760 : vector<1x64xf32> to vector<8x64xf32>
    %763 = arith.mulf %761, %762 : vector<8x64xf32>
    %cst_236 = arith.constant dense<0.000000e+00> : vector<8xf32>
    %764 = vector.multi_reduction <add>, %763, %cst_236 [1] : vector<8x64xf32> to vector<8xf32>
    %765 = vector.shape_cast %764 : vector<8xf32> to vector<8x1xf32>
    %cst_237 = arith.constant 2.000000e-01 : f32
    %766 = vector.broadcast %cst_237 : f32 to vector<8x1xf32>
    %767 = arith.mulf %765, %766 : vector<8x1xf32>
    %768 = vector.broadcast %767 : vector<8x1xf32> to vector<8x64xf32>
    %769 = vector.broadcast %760 : vector<1x64xf32> to vector<8x64xf32>
    %770 = arith.mulf %768, %769 : vector<8x64xf32>
    %771 = arith.addf %759, %770 : vector<8x64xf32>
    %772 = vector.extract_strided_slice %598 {offsets = [5, 0], sizes = [1, 64], strides = [1, 1]} : vector<10x64xf32> to vector<1x64xf32>
    %773 = arith.mulf %710, %710 : vector<8x64xf32>
    %774 = vector.broadcast %772 : vector<1x64xf32> to vector<8x64xf32>
    %775 = arith.mulf %773, %774 : vector<8x64xf32>
    %cst_238 = arith.constant dense<0.000000e+00> : vector<8xf32>
    %776 = vector.multi_reduction <add>, %775, %cst_238 [1] : vector<8x64xf32> to vector<8xf32>
    %777 = vector.shape_cast %776 : vector<8xf32> to vector<8x1xf32>
    %cst_239 = arith.constant 2.000000e-01 : f32
    %778 = vector.broadcast %cst_239 : f32 to vector<8x1xf32>
    %779 = arith.mulf %777, %778 : vector<8x1xf32>
    %780 = vector.broadcast %779 : vector<8x1xf32> to vector<8x64xf32>
    %781 = vector.broadcast %772 : vector<1x64xf32> to vector<8x64xf32>
    %782 = arith.mulf %780, %781 : vector<8x64xf32>
    %783 = arith.addf %771, %782 : vector<8x64xf32>
    %784 = vector.extract_strided_slice %598 {offsets = [6, 0], sizes = [1, 64], strides = [1, 1]} : vector<10x64xf32> to vector<1x64xf32>
    %785 = arith.mulf %710, %710 : vector<8x64xf32>
    %786 = vector.broadcast %784 : vector<1x64xf32> to vector<8x64xf32>
    %787 = arith.mulf %785, %786 : vector<8x64xf32>
    %cst_240 = arith.constant dense<0.000000e+00> : vector<8xf32>
    %788 = vector.multi_reduction <add>, %787, %cst_240 [1] : vector<8x64xf32> to vector<8xf32>
    %789 = vector.shape_cast %788 : vector<8xf32> to vector<8x1xf32>
    %cst_241 = arith.constant 2.000000e-01 : f32
    %790 = vector.broadcast %cst_241 : f32 to vector<8x1xf32>
    %791 = arith.mulf %789, %790 : vector<8x1xf32>
    %792 = vector.broadcast %791 : vector<8x1xf32> to vector<8x64xf32>
    %793 = vector.broadcast %784 : vector<1x64xf32> to vector<8x64xf32>
    %794 = arith.mulf %792, %793 : vector<8x64xf32>
    %795 = arith.addf %783, %794 : vector<8x64xf32>
    %796 = vector.extract_strided_slice %598 {offsets = [7, 0], sizes = [1, 64], strides = [1, 1]} : vector<10x64xf32> to vector<1x64xf32>
    %797 = arith.mulf %710, %710 : vector<8x64xf32>
    %798 = vector.broadcast %796 : vector<1x64xf32> to vector<8x64xf32>
    %799 = arith.mulf %797, %798 : vector<8x64xf32>
    %cst_242 = arith.constant dense<0.000000e+00> : vector<8xf32>
    %800 = vector.multi_reduction <add>, %799, %cst_242 [1] : vector<8x64xf32> to vector<8xf32>
    %801 = vector.shape_cast %800 : vector<8xf32> to vector<8x1xf32>
    %cst_243 = arith.constant 2.000000e-01 : f32
    %802 = vector.broadcast %cst_243 : f32 to vector<8x1xf32>
    %803 = arith.mulf %801, %802 : vector<8x1xf32>
    %804 = vector.broadcast %803 : vector<8x1xf32> to vector<8x64xf32>
    %805 = vector.broadcast %796 : vector<1x64xf32> to vector<8x64xf32>
    %806 = arith.mulf %804, %805 : vector<8x64xf32>
    %807 = arith.addf %795, %806 : vector<8x64xf32>
    %808 = vector.extract_strided_slice %598 {offsets = [8, 0], sizes = [1, 64], strides = [1, 1]} : vector<10x64xf32> to vector<1x64xf32>
    %809 = arith.mulf %710, %710 : vector<8x64xf32>
    %810 = vector.broadcast %808 : vector<1x64xf32> to vector<8x64xf32>
    %811 = arith.mulf %809, %810 : vector<8x64xf32>
    %cst_244 = arith.constant dense<0.000000e+00> : vector<8xf32>
    %812 = vector.multi_reduction <add>, %811, %cst_244 [1] : vector<8x64xf32> to vector<8xf32>
    %813 = vector.shape_cast %812 : vector<8xf32> to vector<8x1xf32>
    %cst_245 = arith.constant 2.000000e-01 : f32
    %814 = vector.broadcast %cst_245 : f32 to vector<8x1xf32>
    %815 = arith.mulf %813, %814 : vector<8x1xf32>
    %816 = vector.broadcast %815 : vector<8x1xf32> to vector<8x64xf32>
    %817 = vector.broadcast %808 : vector<1x64xf32> to vector<8x64xf32>
    %818 = arith.mulf %816, %817 : vector<8x64xf32>
    %819 = arith.addf %807, %818 : vector<8x64xf32>
    %820 = vector.extract_strided_slice %598 {offsets = [9, 0], sizes = [1, 64], strides = [1, 1]} : vector<10x64xf32> to vector<1x64xf32>
    %821 = arith.mulf %710, %710 : vector<8x64xf32>
    %822 = vector.broadcast %820 : vector<1x64xf32> to vector<8x64xf32>
    %823 = arith.mulf %821, %822 : vector<8x64xf32>
    %cst_246 = arith.constant dense<0.000000e+00> : vector<8xf32>
    %824 = vector.multi_reduction <add>, %823, %cst_246 [1] : vector<8x64xf32> to vector<8xf32>
    %825 = vector.shape_cast %824 : vector<8xf32> to vector<8x1xf32>
    %cst_247 = arith.constant 2.000000e-01 : f32
    %826 = vector.broadcast %cst_247 : f32 to vector<8x1xf32>
    %827 = arith.mulf %825, %826 : vector<8x1xf32>
    %828 = vector.broadcast %827 : vector<8x1xf32> to vector<8x64xf32>
    %829 = vector.broadcast %820 : vector<1x64xf32> to vector<8x64xf32>
    %830 = arith.mulf %828, %829 : vector<8x64xf32>
    %831 = arith.addf %819, %830 : vector<8x64xf32>
    %cst_248 = arith.constant 9.99999974E-6 : f32
    %832 = vector.broadcast %cst_248 : f32 to vector<8x64xf32>
    %833 = arith.addf %831, %832 : vector<8x64xf32>
    %834 = math.rsqrt %833 : vector<8x64xf32>
    %835 = arith.mulf %710, %834 : vector<8x64xf32>
    %c0_249 = arith.constant 0 : index
    %c0_250 = arith.constant 0 : index
    %836 = vector.load %arg18[%c0_249, %c0_250] : memref<1x64xf32, #tpu.memory_space<vmem>>, vector<1x64xf32>
    %837 = vector.broadcast %836 : vector<1x64xf32> to vector<8x64xf32>
    %838 = arith.mulf %835, %837 : vector<8x64xf32>
    %c0_251 = arith.constant 0 : index
    %c0_252 = arith.constant 0 : index
    %839 = vector.load %arg19[%c0_251, %c0_252] : memref<1x64xf32, #tpu.memory_space<vmem>>, vector<1x64xf32>
    %840 = vector.broadcast %839 : vector<1x64xf32> to vector<8x64xf32>
    %841 = arith.addf %838, %840 : vector<8x64xf32>
    %cst_253 = arith.constant 0.000000e+00 : f32
    %842 = vector.broadcast %cst_253 : f32 to vector<8x64xf32>
    %843 = arith.cmpf ogt, %841, %842 : vector<8x64xf32>
    %cst_254 = arith.constant 1.000000e-01 : f32
    %844 = vector.broadcast %cst_254 : f32 to vector<8x64xf32>
    %845 = arith.mulf %844, %841 : vector<8x64xf32>
    %846 = arith.select %843, %841, %845 : vector<8x64xi1>, vector<8x64xf32>
    %c0_255 = arith.constant 0 : index
    %c0_256 = arith.constant 0 : index
    %847 = vector.load %arg21[%c0_255, %c0_256] : memref<64x10xf32, #tpu.memory_space<vmem>>, vector<64x10xf32>
    %cst_257 = arith.constant dense<0.000000e+00> : vector<8x10xf32>
    %848 = tpu.matmul %846, %847, %cst_257 {dimension_numbers = #tpu.dot_dimension_numbers<[1], [0], [0], [1], [0, 0, 1, 1], [], []>} : vector<8x64xf32>, vector<64x10xf32>, vector<8x10xf32> -> vector<8x10xf32>
    %c0_258 = arith.constant 0 : index
    %c0_259 = arith.constant 0 : index
    %849 = vector.load %arg22[%c0_258, %c0_259] : memref<1x10xf32, #tpu.memory_space<vmem>>, vector<1x10xf32>
    %850 = vector.broadcast %849 : vector<1x10xf32> to vector<8x10xf32>
    %851 = arith.addf %848, %850 : vector<8x10xf32>
    %cst_260 = arith.constant dense<0xFF800000> : vector<8xf32>
    %852 = vector.multi_reduction <maximumf>, %851, %cst_260 [1] : vector<8x10xf32> to vector<8xf32>
    %853 = vector.shape_cast %852 : vector<8xf32> to vector<8x1xf32>
    %854 = vector.broadcast %853 : vector<8x1xf32> to vector<8x10xf32>
    %855 = arith.subf %851, %854 : vector<8x10xf32>
    %856 = math.exp %855 : vector<8x10xf32>
    %cst_261 = arith.constant dense<0.000000e+00> : vector<8xf32>
    %857 = vector.multi_reduction <add>, %856, %cst_261 [1] : vector<8x10xf32> to vector<8xf32>
    %858 = vector.shape_cast %857 : vector<8xf32> to vector<8x1xf32>
    %859 = math.log %858 : vector<8x1xf32>
    %860 = vector.broadcast %859 : vector<8x1xf32> to vector<8x10xf32>
    %861 = arith.subf %855, %860 : vector<8x10xf32>
    %c0_262 = arith.constant 0 : index
    %c0_263 = arith.constant 0 : index
    %862 = vector.load %arg23[%c0_262, %c0_263] : memref<8x10xf32, #tpu.memory_space<vmem>>, vector<8x10xf32>
    tpu.vector_store %arg23[%c0_262, %c0_263], %861 {strides = array<i32>} : memref<8x10xf32, #tpu.memory_space<vmem>>, vector<8x10xf32>,
    return
  }
  func.func @transform_0(%arg0: i32) -> (i32, i32, i32) {
    %c0_i32 = arith.constant 0 : i32
    %c0_i32_0 = arith.constant 0 : i32
    %c0_i32_1 = arith.constant 0 : i32
    return %c0_i32, %arg0, %c0_i32_0 : i32, i32, i32
  }
  func.func @transform_1(%arg0: i32) -> (i32, i32, i32) {
    %c0_i32 = arith.constant 0 : i32
    %c0_i32_0 = arith.constant 0 : i32
    %c0_i32_1 = arith.constant 0 : i32
    %c0_i32_2 = arith.constant 0 : i32
    return %c0_i32, %c0_i32_0, %c0_i32_1 : i32, i32, i32
  }
  func.func @transform_2(%arg0: i32) -> (i32, i32) {
    %c0_i32 = arith.constant 0 : i32
    %c0_i32_0 = arith.constant 0 : i32
    %c0_i32_1 = arith.constant 0 : i32
    return %c0_i32, %c0_i32_0 : i32, i32
  }
  func.func @transform_3(%arg0: i32) -> (i32, i32) {
    %c0_i32 = arith.constant 0 : i32
    %c0_i32_0 = arith.constant 0 : i32
    %c0_i32_1 = arith.constant 0 : i32
    return %c0_i32, %c0_i32_0 : i32, i32
  }
  func.func @transform_4(%arg0: i32) -> (i32, i32) {
    %c0_i32 = arith.constant 0 : i32
    %c0_i32_0 = arith.constant 0 : i32
    %c0_i32_1 = arith.constant 0 : i32
    return %c0_i32, %c0_i32_0 : i32, i32
  }
  func.func @transform_5(%arg0: i32) -> (i32, i32) {
    %c0_i32 = arith.constant 0 : i32
    %c0_i32_0 = arith.constant 0 : i32
    %c0_i32_1 = arith.constant 0 : i32
    return %c0_i32, %c0_i32_0 : i32, i32
  }
  func.func @transform_6(%arg0: i32) -> (i32, i32) {
    %c0_i32 = arith.constant 0 : i32
    %c0_i32_0 = arith.constant 0 : i32
    %c0_i32_1 = arith.constant 0 : i32
    return %c0_i32, %c0_i32_0 : i32, i32
  }
  func.func @transform_7(%arg0: i32) -> (i32, i32) {
    %c0_i32 = arith.constant 0 : i32
    %c0_i32_0 = arith.constant 0 : i32
    %c0_i32_1 = arith.constant 0 : i32
    return %c0_i32, %c0_i32_0 : i32, i32
  }
  func.func @transform_8(%arg0: i32) -> (i32, i32, i32) {
    %c0_i32 = arith.constant 0 : i32
    %c0_i32_0 = arith.constant 0 : i32
    %c0_i32_1 = arith.constant 0 : i32
    %c0_i32_2 = arith.constant 0 : i32
    return %c0_i32, %c0_i32_0, %c0_i32_1 : i32, i32, i32
  }
  func.func @transform_9(%arg0: i32) -> (i32, i32) {
    %c0_i32 = arith.constant 0 : i32
    %c0_i32_0 = arith.constant 0 : i32
    %c0_i32_1 = arith.constant 0 : i32
    return %c0_i32, %c0_i32_0 : i32, i32
  }
  func.func @transform_10(%arg0: i32) -> (i32, i32) {
    %c0_i32 = arith.constant 0 : i32
    %c0_i32_0 = arith.constant 0 : i32
    %c0_i32_1 = arith.constant 0 : i32
    return %c0_i32, %c0_i32_0 : i32, i32
  }
  func.func @transform_11(%arg0: i32) -> (i32, i32) {
    %c0_i32 = arith.constant 0 : i32
    %c0_i32_0 = arith.constant 0 : i32
    %c0_i32_1 = arith.constant 0 : i32
    return %c0_i32, %c0_i32_0 : i32, i32
  }
  func.func @transform_12(%arg0: i32) -> (i32, i32) {
    %c0_i32 = arith.constant 0 : i32
    %c0_i32_0 = arith.constant 0 : i32
    %c0_i32_1 = arith.constant 0 : i32
    return %c0_i32, %c0_i32_0 : i32, i32
  }
  func.func @transform_13(%arg0: i32) -> (i32, i32) {
    %c0_i32 = arith.constant 0 : i32
    %c0_i32_0 = arith.constant 0 : i32
    %c0_i32_1 = arith.constant 0 : i32
    return %c0_i32, %c0_i32_0 : i32, i32
  }
  func.func @transform_14(%arg0: i32) -> (i32, i32) {
    %c0_i32 = arith.constant 0 : i32
    %c0_i32_0 = arith.constant 0 : i32
    %c0_i32_1 = arith.constant 0 : i32
    return %c0_i32, %c0_i32_0 : i32, i32
  }
  func.func @transform_15(%arg0: i32) -> (i32, i32, i32) {
    %c0_i32 = arith.constant 0 : i32
    %c0_i32_0 = arith.constant 0 : i32
    %c0_i32_1 = arith.constant 0 : i32
    %c0_i32_2 = arith.constant 0 : i32
    return %c0_i32, %c0_i32_0, %c0_i32_1 : i32, i32, i32
  }
  func.func @transform_16(%arg0: i32) -> (i32, i32) {
    %c0_i32 = arith.constant 0 : i32
    %c0_i32_0 = arith.constant 0 : i32
    %c0_i32_1 = arith.constant 0 : i32
    return %c0_i32, %c0_i32_0 : i32, i32
  }
  func.func @transform_17(%arg0: i32) -> (i32, i32) {
    %c0_i32 = arith.constant 0 : i32
    %c0_i32_0 = arith.constant 0 : i32
    %c0_i32_1 = arith.constant 0 : i32
    return %c0_i32, %c0_i32_0 : i32, i32
  }
  func.func @transform_18(%arg0: i32) -> (i32, i32) {
    %c0_i32 = arith.constant 0 : i32
    %c0_i32_0 = arith.constant 0 : i32
    %c0_i32_1 = arith.constant 0 : i32
    return %c0_i32, %c0_i32_0 : i32, i32
  }
  func.func @transform_19(%arg0: i32) -> (i32, i32) {
    %c0_i32 = arith.constant 0 : i32
    %c0_i32_0 = arith.constant 0 : i32
    %c0_i32_1 = arith.constant 0 : i32
    return %c0_i32, %c0_i32_0 : i32, i32
  }
  func.func @transform_20(%arg0: i32) -> (i32, i32) {
    %c0_i32 = arith.constant 0 : i32
    %c0_i32_0 = arith.constant 0 : i32
    %c0_i32_1 = arith.constant 0 : i32
    return %c0_i32, %c0_i32_0 : i32, i32
  }
  func.func @transform_21(%arg0: i32) -> (i32, i32) {
    %c0_i32 = arith.constant 0 : i32
    %c0_i32_0 = arith.constant 0 : i32
    %c0_i32_1 = arith.constant 0 : i32
    return %c0_i32, %c0_i32_0 : i32, i32
  }
  func.func @transform_22(%arg0: i32) -> (i32, i32) {
    %c0_i32 = arith.constant 0 : i32
    %c0_i32_0 = arith.constant 0 : i32
    return %arg0, %c0_i32 : i32, i32
  }
}

</mosaic_0001>

<llo_original>
// kernel: tile.14
$region0: #{tile.14}
  #allocation0 [shape = 's32[1]{0}', space=sflag, size = 0x4, scoped, tag = 'scoped memory for tile.14']
  %s0 = inlined_call_operand.vmem [shape: f32[20], index: 0, kind: input, shape index: {}]
  %s1 = inlined_call_operand.vmem [shape: f32[8,20], index: 1, kind: output, shape index: {}]
  // Predicated region
  $region2: #{tile.14} parent=0 // pred_check
    _
  $region3: #{tile.14} parent=0 // pred_check_branch
    %3 = sbr.rel (0) target = $region5
  $region4: #{tile.14} parent=0 // pred_region
    _
  $region5: #{tile.14} parent=0 // pred_fallthru
    _
  %v4 = vld [vmem:[%s0] ss:$0 sm:$0xff]
  %5 = vst [vmem:[%s1] sm:$0xff] %v4

// kernel: tile.15
$region0: #{tile.15}
  %s0 = inlined_call_operand.vmem [shape: f32[8,20], index: 0, kind: input, shape index: {}]
  %s1 = inlined_call_operand.vmem [shape: f32[1,160], index: 1, kind: output, shape index: {}]
  $region1: #{tile.15} parent=0
    #allocation0 [shape = 'u8[8192]{0}', space=vmem, size = 0x2000, scoped, tag = 'scoped mem for output reshape']
    %v2 = vld [vmem:[%s0] sm:$0x1]
    %vm3 = vcmask 162816
    %4 = vst.msk [vmem:[#allocation0] sm:$0x1] %vm3, %v2
    %s5 = scalar_lea.vmem %s0, 6
    %v6 = vld [vmem:[%s5] sm:$0x1]
    %s7 = scalar_lea.vmem %s0, 6
    %v8 = vld [vmem:[%s7] sm:$0x1]
    %vm9 = vcmask 64512
    %v10 = vsel %vm9, %v8, %v6
    %11 = vrot.lane.b32.xlu0 %v10, 120
    %v12 = vpop.permute.xlu0 %11
    %vm13 = vcmask 97280
    %s14 = scalar_lea.vmem [#allocation0], 8
    %15 = vst.msk [vmem:[%s14] sm:$0x1] %vm13, %v12
    %vm16 = vcmask 1048512
    %17 = vst.msk [vmem:[#allocation0] sm:$0x1] %vm16, %v12
    %s18 = scalar_lea.vmem %s0, 5
    %v19 = vld [vmem:[%s18] sm:$0x1]
    %20 = vrot.lane.b32.xlu0 %v19, 100
    %v21 = vpop.permute.xlu0 %20
    %vm22 = vcmask 982816
    %23 = vst.msk [vmem:[#allocation0] sm:$0x1] %vm22, %v21
    %s24 = scalar_lea.vmem %s0, 4
    %v25 = vld [vmem:[%s24] sm:$0x1]
    %26 = vrot.lane.b32.xlu0 %v25, 80
    %v27 = vpop.permute.xlu0 %26
    %vm28 = vcmask 818816
    %29 = vst.msk [vmem:[#allocation0] sm:$0x1] %vm28, %v27
    %s30 = scalar_lea.vmem %s0, 3
    %v31 = vld [vmem:[%s30] sm:$0x1]
    %32 = vrot.lane.b32.xlu0 %v31, 60
    %v33 = vpop.permute.xlu0 %32
    %vm34 = vcmask 654816
    %35 = vst.msk [vmem:[#allocation0] sm:$0x1] %vm34, %v33
    %s36 = scalar_lea.vmem %s0, 2
    %v37 = vld [vmem:[%s36] sm:$0x1]
    %38 = vrot.lane.b32.xlu0 %v37, 40
    %v39 = vpop.permute.xlu0 %38
    %vm40 = vcmask 490816
    %41 = vst.msk [vmem:[#allocation0] sm:$0x1] %vm40, %v39
    %s42 = scalar_lea.vmem %s0, 1
    %v43 = vld [vmem:[%s42] sm:$0x1]
    %44 = vrot.lane.b32.xlu0 %v43, 20
    %v45 = vpop.permute.xlu0 %44
    %vm46 = vcmask 326816
    %47 = vst.msk [vmem:[#allocation0] sm:$0x1] %vm46, %v45
    %s48 = scalar_lea.vmem %s0, 7
    %v49 = vld [vmem:[%s48] sm:$0x1]
    %50 = vrot.lane.b32.xlu0 %v49, 12
    %v51 = vpop.permute.xlu0 %50
    %vm52 = vcmask 261216
    %s53 = scalar_lea.vmem [#allocation0], 8
    %54 = vst.msk [vmem:[%s53] sm:$0x1] %vm52, %v51
    %s56 = sshllo.u32 0, 1
    %v58 = vld [vmem:[#allocation0] sm:%s56]
    %s59 = sshllo.u32 0, 1
    %60 = vst [vmem:[%s1] sm:%s59] %v58
    %s61 = scalar_lea.vmem [#allocation0], 8
    %v62 = vld [vmem:[%s61] sm:%s56]
    %s63 = sshllo.u32 0, 1
    %s64 = scalar_lea.vmem %s1, 1
    %65 = vst [vmem:[%s64] sm:%s63] %v62

// kernel: tile.18
$region0: #{tile.18}
  #allocation0 [shape = 's32[1]{0}', space=sflag, size = 0x4, scoped, tag = 'scoped memory for tile.18']
  %s0 = inlined_call_operand.vmem [shape: f32[20], index: 0, kind: input, shape index: {}]
  %s1 = inlined_call_operand.vmem [shape: f32[4,20], index: 1, kind: output, shape index: {}]
  // Predicated region
  $region2: #{tile.18} parent=0 // pred_check
    _
  $region3: #{tile.18} parent=0 // pred_check_branch
    %3 = sbr.rel (0) target = $region5
  $region4: #{tile.18} parent=0 // pred_region
    _
  $region5: #{tile.18} parent=0 // pred_fallthru
    _
  %v4 = vld [vmem:[%s0] ss:$0 sm:$0xff]
  %5 = vst [vmem:[%s1] sm:$0xf] %v4

// kernel: tile.19
$region0: #{tile.19}
  %s0 = inlined_call_operand.vmem [shape: f32[4,20], index: 0, kind: input, shape index: {}]
  %s1 = inlined_call_operand.vmem [shape: f32[1,80], index: 1, kind: output, shape index: {}]
  $region1: #{tile.19} parent=0
    #allocation0 [shape = 'u8[4096]{0}', space=vmem, size = 0x1000, scoped, tag = 'scoped mem for output reshape']
    #allocation1 [shape = 'u8[4096]{0}', space=vmem, size = 0x1000, scoped, tag = 'scoped mem for input reshape']
    %s3 = sshllo.u32 0, 4
    %v4 = vld [vmem:[%s0] sm:%s3]
    %5 = vst [vmem:[#allocation1] sm:%s3] %v4
    %v6 = vld [vmem:[#allocation1] sm:$0x1]
    %vm7 = vcmask 162816
    %8 = vst.msk [vmem:[#allocation0] sm:$0x1] %vm7, %v6
    %s9 = scalar_lea.vmem [#allocation1], 3
    %v10 = vld [vmem:[%s9] sm:$0x1]
    %11 = vrot.lane.b32.xlu0 %v10, 60
    %v12 = vpop.permute.xlu0 %11
    %vm13 = vcmask 654816
    %14 = vst.msk [vmem:[#allocation0] sm:$0x1] %vm13, %v12
    %s15 = scalar_lea.vmem [#allocation1], 2
    %v16 = vld [vmem:[%s15] sm:$0x1]
    %17 = vrot.lane.b32.xlu0 %v16, 40
    %v18 = vpop.permute.xlu0 %17
    %vm19 = vcmask 490816
    %20 = vst.msk [vmem:[#allocation0] sm:$0x1] %vm19, %v18
    %s21 = scalar_lea.vmem [#allocation1], 1
    %v22 = vld [vmem:[%s21] sm:$0x1]
    %23 = vrot.lane.b32.xlu0 %v22, 20
    %v24 = vpop.permute.xlu0 %23
    %vm25 = vcmask 326816
    %26 = vst.msk [vmem:[#allocation0] sm:$0x1] %vm25, %v24
    %s28 = sshllo.u32 0, 1
    %v30 = vld [vmem:[#allocation0] sm:%s28]
    %s31 = sshllo.u32 0, 1
    %32 = vst [vmem:[%s1] sm:%s31] %v30

// kernel: net_forward.1
$region0: #{net_forward.1}
  #allocation0 [shape = 'u32[]', space=smem, size = 0x4, offset = 0x4, fixed_abs, tag = 'smem constant byte address 0x4 - core index']
  #allocation1 [shape = 'u32[144,128]{1,0:T(1,128)}', space=vmem, size = 0x12000, scoped, tag = 'internal scratch']
  #allocation2 [shape = 'f32[12,8,120]{2,1,0:T(8,128)}', space=vmem, size = 0xc000, scoped, tag = 'scratch operand']
  %s0 = inlined_call_operand.vmem [shape: f32[28,8,28], index: 0, kind: input, shape index: {}]
  %s1 = inlined_call_operand.vmem [shape: bf16[5,28,240], index: 1, kind: input, shape index: {}]
  %s2 = inlined_call_operand.vmem [shape: f32[240,120], index: 2, kind: input, shape index: {}]
  %s3 = inlined_call_operand.vmem [shape: f32[240,120], index: 3, kind: input, shape index: {}]
  %s4 = inlined_call_operand.vmem [shape: f32[1,240], index: 4, kind: input, shape index: {}]
  %s5 = inlined_call_operand.vmem [shape: f32[1,120], index: 5, kind: input, shape index: {}]
  %s6 = inlined_call_operand.vmem [shape: f32[1,120], index: 6, kind: input, shape index: {}]
  %s7 = inlined_call_operand.vmem [shape: f32[2,120], index: 7, kind: input, shape index: {}]
  %s8 = inlined_call_operand.vmem [shape: bf16[5,120,160], index: 8, kind: input, shape index: {}]
  %s9 = inlined_call_operand.vmem [shape: f32[160,80], index: 9, kind: input, shape index: {}]
  %s10 = inlined_call_operand.vmem [shape: f32[160,80], index: 10, kind: input, shape index: {}]
  %s11 = inlined_call_operand.vmem [shape: f32[1,160], index: 11, kind: input, shape index: {}]
  %s12 = inlined_call_operand.vmem [shape: f32[1,80], index: 12, kind: input, shape index: {}]
  %s13 = inlined_call_operand.vmem [shape: f32[1,80], index: 13, kind: input, shape index: {}]
  %s14 = inlined_call_operand.vmem [shape: f32[4,80], index: 14, kind: input, shape index: {}]
  %s15 = inlined_call_operand.vmem [shape: bf16[4,80,64], index: 15, kind: input, shape index: {}]
  %s16 = inlined_call_operand.vmem [shape: f32[1,64], index: 16, kind: input, shape index: {}]
  %s17 = inlined_call_operand.vmem [shape: f32[1,64], index: 17, kind: input, shape index: {}]
  %s18 = inlined_call_operand.vmem [shape: f32[1,64], index: 18, kind: input, shape index: {}]
  %s19 = inlined_call_operand.vmem [shape: f32[10,64], index: 19, kind: input, shape index: {}]
  %s20 = inlined_call_operand.vmem [shape: f32[64,10], index: 20, kind: input, shape index: {}]
  %s21 = inlined_call_operand.vmem [shape: f32[1,10], index: 21, kind: input, shape index: {}]
  %s22 = inlined_call_operand.vmem [shape: f32[8,10], index: 22, kind: output, shape index: {}]
  %s23 = sld [smem:[#allocation0]]
  $region98: #{net_forward.1} parent=0
    _
  %s25 = ssub.s32 1, %s23
  %s26 = scalar_select 0, %s25, %s23
  // Predicated region
  $region2: #{net_forward.1} parent=0 // pred_check
    _
  $region3: #{net_forward.1} parent=0 // pred_check_branch
    %28 = sbr.rel (0) target = $region5
  $region4: #{net_forward.1} parent=0 // pred_region
    _
  $region5: #{net_forward.1} parent=0 // pred_fallthru
    _
  // Predicated region
  $region6: #{net_forward.1} parent=0 // pred_check
    _
  $region7: #{net_forward.1} parent=0 // pred_check_branch
    %30 = sbr.rel (0) target = $region9
  $region8: #{net_forward.1} parent=0 // pred_region
    _
  $region9: #{net_forward.1} parent=0 // pred_fallthru
    _
  // Predicated region
  $region10: #{net_forward.1} parent=0 // pred_check
    _
  $region11: #{net_forward.1} parent=0 // pred_check_branch
    %32 = sbr.rel (0) target = $region13
  $region12: #{net_forward.1} parent=0 // pred_region
    _
  $region13: #{net_forward.1} parent=0 // pred_fallthru
    _
  // Predicated region
  $region14: #{net_forward.1} parent=0 // pred_check
    _
  $region15: #{net_forward.1} parent=0 // pred_check_branch
    %34 = sbr.rel (0) target = $region17
  $region16: #{net_forward.1} parent=0 // pred_region
    _
  $region17: #{net_forward.1} parent=0 // pred_fallthru
    _
  // Predicated region
  $region18: #{net_forward.1} parent=0 // pred_check
    _
  $region19: #{net_forward.1} parent=0 // pred_check_branch
    %36 = sbr.rel (0) target = $region21
  $region20: #{net_forward.1} parent=0 // pred_region
    _
  $region21: #{net_forward.1} parent=0 // pred_fallthru
    _
  // Predicated region
  $region22: #{net_forward.1} parent=0 // pred_check
    _
  $region23: #{net_forward.1} parent=0 // pred_check_branch
    %38 = sbr.rel (0) target = $region25
  $region24: #{net_forward.1} parent=0 // pred_region
    _
  $region25: #{net_forward.1} parent=0 // pred_fallthru
    _
  // Predicated region
  $region26: #{net_forward.1} parent=0 // pred_check
    _
  $region27: #{net_forward.1} parent=0 // pred_check_branch
    %40 = sbr.rel (0) target = $region29
  $region28: #{net_forward.1} parent=0 // pred_region
    _
  $region29: #{net_forward.1} parent=0 // pred_fallthru
    _
  // Predicated region
  $region30: #{net_forward.1} parent=0 // pred_check
    _
  $region31: #{net_forward.1} parent=0 // pred_check_branch
    %42 = sbr.rel (0) target = $region33
  $region32: #{net_forward.1} parent=0 // pred_region
    _
  $region33: #{net_forward.1} parent=0 // pred_fallthru
    _
  // Predicated region
  $region34: #{net_forward.1} parent=0 // pred_check
    _
  $region35: #{net_forward.1} parent=0 // pred_check_branch
    %44 = sbr.rel (0) target = $region37
  $region36: #{net_forward.1} parent=0 // pred_region
    _
  $region37: #{net_forward.1} parent=0 // pred_fallthru
    _
  // Predicated region
  $region38: #{net_forward.1} parent=0 // pred_check
    _
  $region39: #{net_forward.1} parent=0 // pred_check_branch
    %46 = sbr.rel (0) target = $region41
  $region40: #{net_forward.1} parent=0 // pred_region
    _
  $region41: #{net_forward.1} parent=0 // pred_fallthru
    _
  // Predicated region
  $region42: #{net_forward.1} parent=0 // pred_check
    _
  $region43: #{net_forward.1} parent=0 // pred_check_branch
    %48 = sbr.rel (0) target = $region45
  $region44: #{net_forward.1} parent=0 // pred_region
    _
  $region45: #{net_forward.1} parent=0 // pred_fallthru
    _
  // Predicated region
  $region46: #{net_forward.1} parent=0 // pred_check
    _
  $region47: #{net_forward.1} parent=0 // pred_check_branch
    %50 = sbr.rel (0) target = $region49
  $region48: #{net_forward.1} parent=0 // pred_region
    _
  $region49: #{net_forward.1} parent=0 // pred_fallthru
    _
  // Predicated region
  $region50: #{net_forward.1} parent=0 // pred_check
    _
  $region51: #{net_forward.1} parent=0 // pred_check_branch
    %52 = sbr.rel (0) target = $region53
  $region52: #{net_forward.1} parent=0 // pred_region
    _
  $region53: #{net_forward.1} parent=0 // pred_fallthru
    _
  // Predicated region
  $region54: #{net_forward.1} parent=0 // pred_check
    _
  $region55: #{net_forward.1} parent=0 // pred_check_branch
    %54 = sbr.rel (0) target = $region57
  $region56: #{net_forward.1} parent=0 // pred_region
    _
  $region57: #{net_forward.1} parent=0 // pred_fallthru
    _
  // Predicated region
  $region58: #{net_forward.1} parent=0 // pred_check
    _
  $region59: #{net_forward.1} parent=0 // pred_check_branch
    %56 = sbr.rel (0) target = $region61
  $region60: #{net_forward.1} parent=0 // pred_region
    _
  $region61: #{net_forward.1} parent=0 // pred_fallthru
    _
  // Predicated region
  $region62: #{net_forward.1} parent=0 // pred_check
    _
  $region63: #{net_forward.1} parent=0 // pred_check_branch
    %58 = sbr.rel (0) target = $region65
  $region64: #{net_forward.1} parent=0 // pred_region
    _
  $region65: #{net_forward.1} parent=0 // pred_fallthru
    _
  // Predicated region
  $region66: #{net_forward.1} parent=0 // pred_check
    _
  $region67: #{net_forward.1} parent=0 // pred_check_branch
    %60 = sbr.rel (0) target = $region69
  $region68: #{net_forward.1} parent=0 // pred_region
    _
  $region69: #{net_forward.1} parent=0 // pred_fallthru
    _
  // Predicated region
  $region70: #{net_forward.1} parent=0 // pred_check
    _
  $region71: #{net_forward.1} parent=0 // pred_check_branch
    %62 = sbr.rel (0) target = $region73
  $region72: #{net_forward.1} parent=0 // pred_region
    _
  $region73: #{net_forward.1} parent=0 // pred_fallthru
    _
  // Predicated region
  $region74: #{net_forward.1} parent=0 // pred_check
    _
  $region75: #{net_forward.1} parent=0 // pred_check_branch
    %64 = sbr.rel (0) target = $region77
  $region76: #{net_forward.1} parent=0 // pred_region
    _
  $region77: #{net_forward.1} parent=0 // pred_fallthru
    _
  // Predicated region
  $region78: #{net_forward.1} parent=0 // pred_check
    _
  $region79: #{net_forward.1} parent=0 // pred_check_branch
    %66 = sbr.rel (0) target = $region81
  $region80: #{net_forward.1} parent=0 // pred_region
    _
  $region81: #{net_forward.1} parent=0 // pred_fallthru
    _
  // Predicated region
  $region82: #{net_forward.1} parent=0 // pred_check
    _
  $region83: #{net_forward.1} parent=0 // pred_check_branch
    %68 = sbr.rel (0) target = $region85
  $region84: #{net_forward.1} parent=0 // pred_region
    _
  $region85: #{net_forward.1} parent=0 // pred_fallthru
    _
  // Predicated region
  $region86: #{net_forward.1} parent=0 // pred_check
    _
  $region87: #{net_forward.1} parent=0 // pred_check_branch
    %70 = sbr.rel (0) target = $region89
  $region88: #{net_forward.1} parent=0 // pred_region
    _
  $region89: #{net_forward.1} parent=0 // pred_fallthru
    _
  %v72 = vld [vmem:[%s0] sm:$0xff]
  %v73 = vld [vmem:[%s0 + $0x8] sm:$0xff]
  %v74 = vld [vmem:[%s0 + $0x10] sm:$0xff]
  %v75 = vld [vmem:[%s0 + $0x18] sm:$0xff]
  %v76 = vld [vmem:[%s0 + $0x20] sm:$0xff]
  %v77 = vld [vmem:[%s0 + $0x28] sm:$0xff]
  %v78 = vld [vmem:[%s0 + $0x30] sm:$0xff]
  %v79 = vld [vmem:[%s0 + $0x38] sm:$0xff]
  %v80 = vld [vmem:[%s0 + $0x40] sm:$0xff]
  %v81 = vld [vmem:[%s0 + $0x48] sm:$0xff]
  %v82 = vld [vmem:[%s0 + $0x50] sm:$0xff]
  %v83 = vld [vmem:[%s0 + $0x58] sm:$0xff]
  %v84 = vld [vmem:[%s0 + $0x60] sm:$0xff]
  %v85 = vld [vmem:[%s0 + $0x68] sm:$0xff]
  %v86 = vld [vmem:[%s0 + $0x70] sm:$0xff]
  %v87 = vld [vmem:[%s0 + $0x78] sm:$0xff]
  %v88 = vld [vmem:[%s0 + $0x80] sm:$0xff]
  %v89 = vld [vmem:[%s0 + $0x88] sm:$0xff]
  %v90 = vld [vmem:[%s0 + $0x90] sm:$0xff]
  %v91 = vld [vmem:[%s0 + $0x98] sm:$0xff]
  %v92 = vld [vmem:[%s0 + $0xa0] sm:$0xff]
  %v93 = vld [vmem:[%s0 + $0xa8] sm:$0xff]
  %v94 = vld [vmem:[%s0 + $0xb0] sm:$0xff]
  %v95 = vld [vmem:[%s0 + $0xb8] sm:$0xff]
  %v96 = vpack.c.bf16 %v73, %v72
  %v97 = vpack.c.bf16 %v75, %v74
  %v98 = vpack.c.bf16 %v77, %v76
  %v99 = vpack.c.bf16 %v79, %v78
  %v100 = vpack.c.bf16 %v81, %v80
  %v101 = vpack.c.bf16 %v83, %v82
  %v102 = vpack.c.bf16 %v85, %v84
  %v103 = vpack.c.bf16 %v87, %v86
  %v104 = vpack.c.bf16 %v89, %v88
  %v105 = vpack.c.bf16 %v91, %v90
  %v106 = vpack.c.bf16 %v93, %v92
  %v107 = vpack.c.bf16 %v95, %v94
  %v108 = vld [vmem:[%s1] sm:$0xff]
  %v109 = vld [vmem:[%s1 + $0x8] sm:$0xff]
  %v110 = vld [vmem:[%s1 + $0x10] sm:$0xff]
  %v111 = vld [vmem:[%s1 + $0x18] sm:$0x33]
  %s112 = scalar_lea.vmem %s0, 8
  %v113 = vld [vmem:[%s112] sm:$0xff]
  %v114 = vld [vmem:[%s112 + $0x8] sm:$0xff]
  %v115 = vld [vmem:[%s112 + $0x10] sm:$0xff]
  %v116 = vld [vmem:[%s112 + $0x18] sm:$0xff]
  %v117 = vld [vmem:[%s112 + $0x20] sm:$0xff]
  %v118 = vld [vmem:[%s112 + $0x28] sm:$0xff]
  %v119 = vld [vmem:[%s112 + $0x30] sm:$0xff]
  %v120 = vld [vmem:[%s112 + $0x38] sm:$0xff]
  %v121 = vld [vmem:[%s112 + $0x40] sm:$0xff]
  %v122 = vld [vmem:[%s112 + $0x48] sm:$0xff]
  %v123 = vld [vmem:[%s112 + $0x50] sm:$0xff]
  %v124 = vld [vmem:[%s112 + $0x58] sm:$0xff]
  %v125 = vld [vmem:[%s112 + $0x60] sm:$0xff]
  %v126 = vld [vmem:[%s112 + $0x68] sm:$0xff]
  %v127 = vld [vmem:[%s112 + $0x70] sm:$0xff]
  %v128 = vld [vmem:[%s112 + $0x78] sm:$0xff]
  %v129 = vld [vmem:[%s112 + $0x80] sm:$0xff]
  %v130 = vld [vmem:[%s112 + $0x88] sm:$0xff]
  %v131 = vld [vmem:[%s112 + $0x90] sm:$0xff]
  %v132 = vld [vmem:[%s112 + $0x98] sm:$0xff]
  %v133 = vld [vmem:[%s112 + $0xa0] sm:$0xff]
  %v134 = vld [vmem:[%s112 + $0xa8] sm:$0xff]
  %v135 = vld [vmem:[%s112 + $0xb0] sm:$0xff]
  %v136 = vld [vmem:[%s112 + $0xb8] sm:$0xff]
  %v137 = vpack.c.bf16 %v114, %v113
  %v138 = vpack.c.bf16 %v116, %v115
  %v139 = vpack.c.bf16 %v118, %v117
  %v140 = vpack.c.bf16 %v120, %v119
  %v141 = vpack.c.bf16 %v122, %v121
  %v142 = vpack.c.bf16 %v124, %v123
  %v143 = vpack.c.bf16 %v126, %v125
  %v144 = vpack.c.bf16 %v128, %v127
  %v145 = vpack.c.bf16 %v130, %v129
  %v146 = vpack.c.bf16 %v132, %v131
  %v147 = vpack.c.bf16 %v134, %v133
  %v148 = vpack.c.bf16 %v136, %v135
  %s149 = scalar_lea.vmem %s1, 32
  %v150 = vld [vmem:[%s149] sm:$0xff]
  %v151 = vld [vmem:[%s149 + $0x8] sm:$0xff]
  %v152 = vld [vmem:[%s149 + $0x10] sm:$0xff]
  %v153 = vld [vmem:[%s149 + $0x18] sm:$0x33]
  %v158 = vunpack.c.l.b16 %v150
  %v159 = vunpack.c.h.b16 %v150
  %v160 = vunpack.c.l.b16 %v151
  %v161 = vunpack.c.h.b16 %v151
  %v162 = vunpack.c.l.b16 %v152
  %v163 = vunpack.c.h.b16 %v152
  %v164 = vunpack.c.l.b16 %v153
  %v165 = vunpack.c.h.b16 %v153
  %v166 = vpack.c.b16 %v160, %v158
  %v167 = vpack.c.b16 %v161, %v159
  %v168 = vpack.c.b16 %v164, %v162
  %v169 = vpack.c.b16 %v165, %v163
  %vm172 = vcmask 228352
  %v174 = vsel %vm172, %v137, 0
  %v177 = vsel %vm172, %v138, 0
  %v180 = vsel %vm172, %v139, 0
  %v183 = vsel %vm172, %v140, 0
  %v186 = vsel %vm172, %v141, 0
  %v189 = vsel %vm172, %v142, 0
  %v192 = vsel %vm172, %v143, 0
  %v195 = vsel %vm172, %v144, 0
  %v198 = vsel %vm172, %v145, 0
  %v201 = vsel %vm172, %v146, 0
  %v204 = vsel %vm172, %v147, 0
  %v207 = vsel %vm172, %v148, 0
  %vm209 = vcmask 1045504
  %v211 = vsel %vm209, %v168, 0
  %v214 = vsel %vm209, %v169, 0
  %216 = vmatprep.subr.bf16.mxu0 %v167
  %217 = vmatpush1.bf16.msra.mxu0 %v166
  %218 = vmatprep.subr.bf16.mxu0 %v214
  %219 = vmatpush1.bf16.msra.mxu0 %v211
  %220 = vmatprep.subr.bf16.mxu0 0
  %221 = vmatpush1.bf16.msra.mxu0 0
  %222 = vmatprep.subr.bf16.mxu0 0
  %223 = vmatpush1.bf16.msra.mxu0 0
  %224 = vmatprep.subr.bf16.mxu0 0
  %225 = vmatpush1.bf16.msra.mxu0 0
  %226 = vmatprep.subr.bf16.mxu0 0
  %227 = vmatpush1.bf16.msra.mxu0 0
  %228 = vmatprep.subr.bf16.mxu0 0
  %229 = vmatpush1.bf16.msra.mxu0 0
  %230 = vmatprep.subr.bf16.mxu0 0
  %231 = vmatpush1.bf16.msra.mxu0 0
  %232 = vmatprep.subr.bf16.mxu0 0
  %233 = vmatpush1.bf16.msra.mxu0 0
  %234 = vmatprep.subr.bf16.mxu0 0
  %235 = vmatpush1.bf16.msra.mxu0 0
  %236 = vmatprep.subr.bf16.mxu0 0
  %237 = vmatpush1.bf16.msra.mxu0 0
  %238 = vmatprep.subr.bf16.mxu0 0
  %239 = vmatpush1.bf16.msra.mxu0 0
  %240 = vmatprep.subr.bf16.mxu0 0
  %241 = vmatpush1.bf16.msra.mxu0 0
  %242 = vmatprep.subr.bf16.mxu0 0
  %243 = vmatpush1.bf16.msra.mxu0 0
  %244 = vmatprep.subr.bf16.mxu0 0
  %245 = vmatpush1.bf16.msra.mxu0 0
  %246 = vmatprep.subr.bf16.mxu0 0
  %247 = vmatpush1.bf16.msra.mxu0 0
  %248 = vmatprep.mubr.bf16.mxu0 0
  %249 = vmatmul.mubr.bf16.gmra.mrb[0].mxu0 %v174
  %v250 = vpop.f32.mrb[0].mxu0
  %v251 = vadd.f32 0.0, %v250
  %v252 = vpop.f32.mrb[0].mxu0
  %v253 = vadd.f32 0.0, %v252
  %v254 = vpop.f32.mrb[0].mxu0
  %v255 = vadd.f32 0.0, %v254
  %v256 = vpop.f32.mrb[0].mxu0
  %v257 = vadd.f32 0.0, %v256
  %258 = vmatprep.mubr.bf16.mxu0 0
  %259 = vmatmul.mubr.bf16.gmra.mrb[0].mxu0 %v177
  %v260 = vpop.f32.mrb[0].mxu0
  %v261 = vadd.f32 0.0, %v260
  %v262 = vpop.f32.mrb[0].mxu0
  %v263 = vadd.f32 0.0, %v262
  %v264 = vpop.f32.mrb[0].mxu0
  %v265 = vadd.f32 0.0, %v264
  %v266 = vpop.f32.mrb[0].mxu0
  %v267 = vadd.f32 0.0, %v266
  %268 = vmatprep.mubr.bf16.mxu0 0
  %269 = vmatmul.mubr.bf16.gmra.mrb[0].mxu0 %v180
  %v270 = vpop.f32.mrb[0].mxu0
  %v271 = vadd.f32 0.0, %v270
  %v272 = vpop.f32.mrb[0].mxu0
  %v273 = vadd.f32 0.0, %v272
  %v274 = vpop.f32.mrb[0].mxu0
  %v275 = vadd.f32 0.0, %v274
  %v276 = vpop.f32.mrb[0].mxu0
  %v277 = vadd.f32 0.0, %v276
  %278 = vmatprep.mubr.bf16.mxu0 0
  %279 = vmatmul.mubr.bf16.gmra.mrb[0].mxu0 %v183
  %v280 = vpop.f32.mrb[0].mxu0
  %v281 = vadd.f32 0.0, %v280
  %v282 = vpop.f32.mrb[0].mxu0
  %v283 = vadd.f32 0.0, %v282
  %v284 = vpop.f32.mrb[0].mxu0
  %v285 = vadd.f32 0.0, %v284
  %v286 = vpop.f32.mrb[0].mxu0
  %v287 = vadd.f32 0.0, %v286
  %288 = vmatprep.mubr.bf16.mxu0 0
  %289 = vmatmul.mubr.bf16.gmra.mrb[0].mxu0 %v186
  %v290 = vpop.f32.mrb[0].mxu0
  %v291 = vadd.f32 0.0, %v290
  %v292 = vpop.f32.mrb[0].mxu0
  %v293 = vadd.f32 0.0, %v292
  %v294 = vpop.f32.mrb[0].mxu0
  %v295 = vadd.f32 0.0, %v294
  %v296 = vpop.f32.mrb[0].mxu0
  %v297 = vadd.f32 0.0, %v296
  %298 = vmatprep.mubr.bf16.mxu0 0
  %299 = vmatmul.mubr.bf16.gmra.mrb[0].mxu0 %v189
  %v300 = vpop.f32.mrb[0].mxu0
  %v301 = vadd.f32 0.0, %v300
  %v302 = vpop.f32.mrb[0].mxu0
  %v303 = vadd.f32 0.0, %v302
  %v304 = vpop.f32.mrb[0].mxu0
  %v305 = vadd.f32 0.0, %v304
  %v306 = vpop.f32.mrb[0].mxu0
  %v307 = vadd.f32 0.0, %v306
  %308 = vmatprep.mubr.bf16.mxu0 0
  %309 = vmatmul.mubr.bf16.gmra.mrb[0].mxu0 %v192
  %v310 = vpop.f32.mrb[0].mxu0
  %v311 = vadd.f32 0.0, %v310
  %v312 = vpop.f32.mrb[0].mxu0
  %v313 = vadd.f32 0.0, %v312
  %v314 = vpop.f32.mrb[0].mxu0
  %v315 = vadd.f32 0.0, %v314
  %v316 = vpop.f32.mrb[0].mxu0
  %v317 = vadd.f32 0.0, %v316
  %318 = vmatprep.mubr.bf16.mxu0 0
  %319 = vmatmul.mubr.bf16.gmra.mrb[0].mxu0 %v195
  %v320 = vpop.f32.mrb[0].mxu0
  %v321 = vadd.f32 0.0, %v320
  %v322 = vpop.f32.mrb[0].mxu0
  %v323 = vadd.f32 0.0, %v322
  %v324 = vpop.f32.mrb[0].mxu0
  %v325 = vadd.f32 0.0, %v324
  %v326 = vpop.f32.mrb[0].mxu0
  %v327 = vadd.f32 0.0, %v326
  %328 = vmatprep.mubr.bf16.mxu0 0
  %329 = vmatmul.mubr.bf16.gmra.mrb[0].mxu0 %v198
  %v330 = vpop.f32.mrb[0].mxu0
  %v331 = vadd.f32 0.0, %v330
  %v332 = vpop.f32.mrb[0].mxu0
  %v333 = vadd.f32 0.0, %v332
  %v334 = vpop.f32.mrb[0].mxu0
  %v335 = vadd.f32 0.0, %v334
  %v336 = vpop.f32.mrb[0].mxu0
  %v337 = vadd.f32 0.0, %v336
  %338 = vmatprep.mubr.bf16.mxu0 0
  %339 = vmatmul.mubr.bf16.gmra.mrb[0].mxu0 %v201
  %v340 = vpop.f32.mrb[0].mxu0
  %v341 = vadd.f32 0.0, %v340
  %v342 = vpop.f32.mrb[0].mxu0
  %v343 = vadd.f32 0.0, %v342
  %v344 = vpop.f32.mrb[0].mxu0
  %v345 = vadd.f32 0.0, %v344
  %v346 = vpop.f32.mrb[0].mxu0
  %v347 = vadd.f32 0.0, %v346
  %348 = vmatprep.mubr.bf16.mxu0 0
  %349 = vmatmul.mubr.bf16.gmra.mrb[0].mxu0 %v204
  %v350 = vpop.f32.mrb[0].mxu0
  %v351 = vadd.f32 0.0, %v350
  %v352 = vpop.f32.mrb[0].mxu0
  %v353 = vadd.f32 0.0, %v352
  %v354 = vpop.f32.mrb[0].mxu0
  %v355 = vadd.f32 0.0, %v354
  %v356 = vpop.f32.mrb[0].mxu0
  %v357 = vadd.f32 0.0, %v356
  %358 = vmatprep.mubr.bf16.mxu0 0
  %359 = vmatmul.mubr.bf16.gmra.mrb[0].mxu0 %v207
  %v360 = vpop.f32.mrb[0].mxu0
  %v361 = vadd.f32 0.0, %v360
  %v362 = vpop.f32.mrb[0].mxu0
  %v363 = vadd.f32 0.0, %v362
  %v364 = vpop.f32.mrb[0].mxu0
  %v365 = vadd.f32 0.0, %v364
  %v366 = vpop.f32.mrb[0].mxu0
  %v367 = vadd.f32 0.0, %v366
  %368 = vdwg.mxu0
  %v373 = vunpack.c.l.b16 %v108
  %v374 = vunpack.c.h.b16 %v108
  %v375 = vunpack.c.l.b16 %v109
  %v376 = vunpack.c.h.b16 %v109
  %v377 = vunpack.c.l.b16 %v110
  %v378 = vunpack.c.h.b16 %v110
  %v379 = vunpack.c.l.b16 %v111
  %v380 = vunpack.c.h.b16 %v111
  %v381 = vpack.c.b16 %v375, %v373
  %v382 = vpack.c.b16 %v376, %v374
  %v383 = vpack.c.b16 %v379, %v377
  %v384 = vpack.c.b16 %v380, %v378
  %v388 = vsel %vm172, %v96, 0
  %v391 = vsel %vm172, %v97, 0
  %v394 = vsel %vm172, %v98, 0
  %v397 = vsel %vm172, %v99, 0
  %v400 = vsel %vm172, %v100, 0
  %v403 = vsel %vm172, %v101, 0
  %v406 = vsel %vm172, %v102, 0
  %v409 = vsel %vm172, %v103, 0
  %v412 = vsel %vm172, %v104, 0
  %v415 = vsel %vm172, %v105, 0
  %v418 = vsel %vm172, %v106, 0
  %v421 = vsel %vm172, %v107, 0
  %v424 = vsel %vm209, %v383, 0
  %v427 = vsel %vm209, %v384, 0
  %429 = vmatprep.subr.bf16.mxu0 %v382
  %430 = vmatpush1.bf16.msra.mxu0 %v381
  %431 = vmatprep.subr.bf16.mxu0 %v427
  %432 = vmatpush1.bf16.msra.mxu0 %v424
  %433 = vmatprep.subr.bf16.mxu0 0
  %434 = vmatpush1.bf16.msra.mxu0 0
  %435 = vmatprep.subr.bf16.mxu0 0
  %436 = vmatpush1.bf16.msra.mxu0 0
  %437 = vmatprep.subr.bf16.mxu0 0
  %438 = vmatpush1.bf16.msra.mxu0 0
  %439 = vmatprep.subr.bf16.mxu0 0
  %440 = vmatpush1.bf16.msra.mxu0 0
  %441 = vmatprep.subr.bf16.mxu0 0
  %442 = vmatpush1.bf16.msra.mxu0 0
  %443 = vmatprep.subr.bf16.mxu0 0
  %444 = vmatpush1.bf16.msra.mxu0 0
  %445 = vmatprep.subr.bf16.mxu0 0
  %446 = vmatpush1.bf16.msra.mxu0 0
  %447 = vmatprep.subr.bf16.mxu0 0
  %448 = vmatpush1.bf16.msra.mxu0 0
  %449 = vmatprep.subr.bf16.mxu0 0
  %450 = vmatpush1.bf16.msra.mxu0 0
  %451 = vmatprep.subr.bf16.mxu0 0
  %452 = vmatpush1.bf16.msra.mxu0 0
  %453 = vmatprep.subr.bf16.mxu0 0
  %454 = vmatpush1.bf16.msra.mxu0 0
  %455 = vmatprep.subr.bf16.mxu0 0
  %456 = vmatpush1.bf16.msra.mxu0 0
  %457 = vmatprep.subr.bf16.mxu0 0
  %458 = vmatpush1.bf16.msra.mxu0 0
  %459 = vmatprep.subr.bf16.mxu0 0
  %460 = vmatpush1.bf16.msra.mxu0 0
  %461 = vmatprep.mubr.bf16.mxu0 0
  %462 = vmatmul.mubr.bf16.gmra.mrb[0].mxu0 %v388
  %v463 = vpop.f32.mrb[0].mxu0
  %v464 = vadd.f32 %v251, %v463
  %v465 = vpop.f32.mrb[0].mxu0
  %v466 = vadd.f32 %v253, %v465
  %v467 = vpop.f32.mrb[0].mxu0
  %v468 = vadd.f32 %v255, %v467
  %v469 = vpop.f32.mrb[0].mxu0
  %v470 = vadd.f32 %v257, %v469
  %471 = vmatprep.mubr.bf16.mxu0 0
  %472 = vmatmul.mubr.bf16.gmra.mrb[0].mxu0 %v391
  %v473 = vpop.f32.mrb[0].mxu0
  %v474 = vadd.f32 %v261, %v473
  %v475 = vpop.f32.mrb[0].mxu0
  %v476 = vadd.f32 %v263, %v475
  %v477 = vpop.f32.mrb[0].mxu0
  %v478 = vadd.f32 %v265, %v477
  %v479 = vpop.f32.mrb[0].mxu0
  %v480 = vadd.f32 %v267, %v479
  %481 = vmatprep.mubr.bf16.mxu0 0
  %482 = vmatmul.mubr.bf16.gmra.mrb[0].mxu0 %v394
  %v483 = vpop.f32.mrb[0].mxu0
  %v484 = vadd.f32 %v271, %v483
  %v485 = vpop.f32.mrb[0].mxu0
  %v486 = vadd.f32 %v273, %v485
  %v487 = vpop.f32.mrb[0].mxu0
  %v488 = vadd.f32 %v275, %v487
  %v489 = vpop.f32.mrb[0].mxu0
  %v490 = vadd.f32 %v277, %v489
  %491 = vmatprep.mubr.bf16.mxu0 0
  %492 = vmatmul.mubr.bf16.gmra.mrb[0].mxu0 %v397
  %v493 = vpop.f32.mrb[0].mxu0
  %v494 = vadd.f32 %v281, %v493
  %v495 = vpop.f32.mrb[0].mxu0
  %v496 = vadd.f32 %v283, %v495
  %v497 = vpop.f32.mrb[0].mxu0
  %v498 = vadd.f32 %v285, %v497
  %v499 = vpop.f32.mrb[0].mxu0
  %v500 = vadd.f32 %v287, %v499
  %501 = vmatprep.mubr.bf16.mxu0 0
  %502 = vmatmul.mubr.bf16.gmra.mrb[0].mxu0 %v400
  %v503 = vpop.f32.mrb[0].mxu0
  %v504 = vadd.f32 %v291, %v503
  %v505 = vpop.f32.mrb[0].mxu0
  %v506 = vadd.f32 %v293, %v505
  %v507 = vpop.f32.mrb[0].mxu0
  %v508 = vadd.f32 %v295, %v507
  %v509 = vpop.f32.mrb[0].mxu0
  %v510 = vadd.f32 %v297, %v509
  %511 = vmatprep.mubr.bf16.mxu0 0
  %512 = vmatmul.mubr.bf16.gmra.mrb[0].mxu0 %v403
  %v513 = vpop.f32.mrb[0].mxu0
  %v514 = vadd.f32 %v301, %v513
  %v515 = vpop.f32.mrb[0].mxu0
  %v516 = vadd.f32 %v303, %v515
  %v517 = vpop.f32.mrb[0].mxu0
  %v518 = vadd.f32 %v305, %v517
  %v519 = vpop.f32.mrb[0].mxu0
  %v520 = vadd.f32 %v307, %v519
  %521 = vmatprep.mubr.bf16.mxu0 0
  %522 = vmatmul.mubr.bf16.gmra.mrb[0].mxu0 %v406
  %v523 = vpop.f32.mrb[0].mxu0
  %v524 = vadd.f32 %v311, %v523
  %v525 = vpop.f32.mrb[0].mxu0
  %v526 = vadd.f32 %v313, %v525
  %v527 = vpop.f32.mrb[0].mxu0
  %v528 = vadd.f32 %v315, %v527
  %v529 = vpop.f32.mrb[0].mxu0
  %v530 = vadd.f32 %v317, %v529
  %531 = vmatprep.mubr.bf16.mxu0 0
  %532 = vmatmul.mubr.bf16.gmra.mrb[0].mxu0 %v409
  %v533 = vpop.f32.mrb[0].mxu0
  %v534 = vadd.f32 %v321, %v533
  %v535 = vpop.f32.mrb[0].mxu0
  %v536 = vadd.f32 %v323, %v535
  %v537 = vpop.f32.mrb[0].mxu0
  %v538 = vadd.f32 %v325, %v537
  %v539 = vpop.f32.mrb[0].mxu0
  %v540 = vadd.f32 %v327, %v539
  %541 = vmatprep.mubr.bf16.mxu0 0
  %542 = vmatmul.mubr.bf16.gmra.mrb[0].mxu0 %v412
  %v543 = vpop.f32.mrb[0].mxu0
  %v544 = vadd.f32 %v331, %v543
  %v545 = vpop.f32.mrb[0].mxu0
  %v546 = vadd.f32 %v333, %v545
  %v547 = vpop.f32.mrb[0].mxu0
  %v548 = vadd.f32 %v335, %v547
  %v549 = vpop.f32.mrb[0].mxu0
  %v550 = vadd.f32 %v337, %v549
  %551 = vmatprep.mubr.bf16.mxu0 0
  %552 = vmatmul.mubr.bf16.gmra.mrb[0].mxu0 %v415
  %v553 = vpop.f32.mrb[0].mxu0
  %v554 = vadd.f32 %v341, %v553
  %v555 = vpop.f32.mrb[0].mxu0
  %v556 = vadd.f32 %v343, %v555
  %v557 = vpop.f32.mrb[0].mxu0
  %v558 = vadd.f32 %v345, %v557
  %v559 = vpop.f32.mrb[0].mxu0
  %v560 = vadd.f32 %v347, %v559
  %561 = vmatprep.mubr.bf16.mxu0 0
  %562 = vmatmul.mubr.bf16.gmra.mrb[0].mxu0 %v418
  %v563 = vpop.f32.mrb[0].mxu0
  %v564 = vadd.f32 %v351, %v563
  %v565 = vpop.f32.mrb[0].mxu0
  %v566 = vadd.f32 %v353, %v565
  %v567 = vpop.f32.mrb[0].mxu0
  %v568 = vadd.f32 %v355, %v567
  %v569 = vpop.f32.mrb[0].mxu0
  %v570 = vadd.f32 %v357, %v569
  %571 = vmatprep.mubr.bf16.mxu0 0
  %572 = vmatmul.mubr.bf16.gmra.mrb[0].mxu0 %v421
  %v573 = vpop.f32.mrb[0].mxu0
  %v574 = vadd.f32 %v361, %v573
  %v575 = vpop.f32.mrb[0].mxu0
  %v576 = vadd.f32 %v363, %v575
  %v577 = vpop.f32.mrb[0].mxu0
  %v578 = vadd.f32 %v365, %v577
  %v579 = vpop.f32.mrb[0].mxu0
  %v580 = vadd.f32 %v367, %v579
  %581 = vdwg.mxu0
  %s582 = scalar_lea.vmem %s0, 16
  %v583 = vld [vmem:[%s582] sm:$0xff]
  %v584 = vld [vmem:[%s582 + $0x8] sm:$0xff]
  %v585 = vld [vmem:[%s582 + $0x10] sm:$0xff]
  %v586 = vld [vmem:[%s582 + $0x18] sm:$0xff]
  %v587 = vld [vmem:[%s582 + $0x20] sm:$0xff]
  %v588 = vld [vmem:[%s582 + $0x28] sm:$0xff]
  %v589 = vld [vmem:[%s582 + $0x30] sm:$0xff]
  %v590 = vld [vmem:[%s582 + $0x38] sm:$0xff]
  %v591 = vld [vmem:[%s582 + $0x40] sm:$0xff]
  %v592 = vld [vmem:[%s582 + $0x48] sm:$0xff]
  %v593 = vld [vmem:[%s582 + $0x50] sm:$0xff]
  %v594 = vld [vmem:[%s582 + $0x58] sm:$0xff]
  %v595 = vld [vmem:[%s582 + $0x60] sm:$0xff]
  %v596 = vld [vmem:[%s582 + $0x68] sm:$0xff]
  %v597 = vld [vmem:[%s582 + $0x70] sm:$0xff]
  %v598 = vld [vmem:[%s582 + $0x78] sm:$0xff]
  %v599 = vld [vmem:[%s582 + $0x80] sm:$0xff]
  %v600 = vld [vmem:[%s582 + $0x88] sm:$0xff]
  %v601 = vld [vmem:[%s582 + $0x90] sm:$0xff]
  %v602 = vld [vmem:[%s582 + $0x98] sm:$0xff]
  %v603 = vld [vmem:[%s582 + $0xa0] sm:$0xff]
  %v604 = vld [vmem:[%s582 + $0xa8] sm:$0xff]
  %v605 = vld [vmem:[%s582 + $0xb0] sm:$0xff]
  %v606 = vld [vmem:[%s582 + $0xb8] sm:$0xff]
  %v607 = vpack.c.bf16 %v584, %v583
  %v608 = vpack.c.bf16 %v586, %v585
  %v609 = vpack.c.bf16 %v588, %v587
  %v610 = vpack.c.bf16 %v590, %v589
  %v611 = vpack.c.bf16 %v592, %v591
  %v612 = vpack.c.bf16 %v594, %v593
  %v613 = vpack.c.bf16 %v596, %v595
  %v614 = vpack.c.bf16 %v598, %v597
  %v615 = vpack.c.bf16 %v600, %v599
  %v616 = vpack.c.bf16 %v602, %v601
  %v617 = vpack.c.bf16 %v604, %v603
  %v618 = vpack.c.bf16 %v606, %v605
  %s619 = scalar_lea.vmem %s1, 64
  %v620 = vld [vmem:[%s619] sm:$0xff]
  %v621 = vld [vmem:[%s619 + $0x8] sm:$0xff]
  %v622 = vld [vmem:[%s619 + $0x10] sm:$0xff]
  %v623 = vld [vmem:[%s619 + $0x18] sm:$0x33]
  %v628 = vunpack.c.l.b16 %v620
  %v629 = vunpack.c.h.b16 %v620
  %v630 = vunpack.c.l.b16 %v621
  %v631 = vunpack.c.h.b16 %v621
  %v632 = vunpack.c.l.b16 %v622
  %v633 = vunpack.c.h.b16 %v622
  %v634 = vunpack.c.l.b16 %v623
  %v635 = vunpack.c.h.b16 %v623
  %v636 = vpack.c.b16 %v630, %v628
  %v637 = vpack.c.b16 %v631, %v629
  %v638 = vpack.c.b16 %v634, %v632
  %v639 = vpack.c.b16 %v635, %v633
  %v643 = vsel %vm172, %v607, 0
  %v646 = vsel %vm172, %v608, 0
  %v649 = vsel %vm172, %v609, 0
  %v652 = vsel %vm172, %v610, 0
  %v655 = vsel %vm172, %v611, 0
  %v658 = vsel %vm172, %v612, 0
  %v661 = vsel %vm172, %v613, 0
  %v664 = vsel %vm172, %v614, 0
  %v667 = vsel %vm172, %v615, 0
  %v670 = vsel %vm172, %v616, 0
  %v673 = vsel %vm172, %v617, 0
  %v676 = vsel %vm172, %v618, 0
  %v679 = vsel %vm209, %v638, 0
  %v682 = vsel %vm209, %v639, 0
  %684 = vmatprep.subr.bf16.mxu0 %v637
  %685 = vmatpush1.bf16.msra.mxu0 %v636
  %686 = vmatprep.subr.bf16.mxu0 %v682
  %687 = vmatpush1.bf16.msra.mxu0 %v679
  %688 = vmatprep.subr.bf16.mxu0 0
  %689 = vmatpush1.bf16.msra.mxu0 0
  %690 = vmatprep.subr.bf16.mxu0 0
  %691 = vmatpush1.bf16.msra.mxu0 0
  %692 = vmatprep.subr.bf16.mxu0 0
  %693 = vmatpush1.bf16.msra.mxu0 0
  %694 = vmatprep.subr.bf16.mxu0 0
  %695 = vmatpush1.bf16.msra.mxu0 0
  %696 = vmatprep.subr.bf16.mxu0 0
  %697 = vmatpush1.bf16.msra.mxu0 0
  %698 = vmatprep.subr.bf16.mxu0 0
  %699 = vmatpush1.bf16.msra.mxu0 0
  %700 = vmatprep.subr.bf16.mxu0 0
  %701 = vmatpush1.bf16.msra.mxu0 0
  %702 = vmatprep.subr.bf16.mxu0 0
  %703 = vmatpush1.bf16.msra.mxu0 0
  %704 = vmatprep.subr.bf16.mxu0 0
  %705 = vmatpush1.bf16.msra.mxu0 0
  %706 = vmatprep.subr.bf16.mxu0 0
  %707 = vmatpush1.bf16.msra.mxu0 0
  %708 = vmatprep.subr.bf16.mxu0 0
  %709 = vmatpush1.bf16.msra.mxu0 0
  %710 = vmatprep.subr.bf16.mxu0 0
  %711 = vmatpush1.bf16.msra.mxu0 0
  %712 = vmatprep.subr.bf16.mxu0 0
  %713 = vmatpush1.bf16.msra.mxu0 0
  %714 = vmatprep.subr.bf16.mxu0 0
  %715 = vmatpush1.bf16.msra.mxu0 0
  %716 = vmatprep.mubr.bf16.mxu0 0
  %717 = vmatmul.mubr.bf16.gmra.mrb[0].mxu0 %v643
  %v718 = vpop.f32.mrb[0].mxu0
  %v719 = vadd.f32 0.0, %v718
  %v720 = vpop.f32.mrb[0].mxu0
  %v721 = vadd.f32 0.0, %v720
  %v722 = vpop.f32.mrb[0].mxu0
  %v723 = vadd.f32 0.0, %v722
  %v724 = vpop.f32.mrb[0].mxu0
  %v725 = vadd.f32 0.0, %v724
  %726 = vmatprep.mubr.bf16.mxu0 0
  %727 = vmatmul.mubr.bf16.gmra.mrb[0].mxu0 %v646
  %v728 = vpop.f32.mrb[0].mxu0
  %v729 = vadd.f32 0.0, %v728
  %v730 = vpop.f32.mrb[0].mxu0
  %v731 = vadd.f32 0.0, %v730
  %v732 = vpop.f32.mrb[0].mxu0
  %v733 = vadd.f32 0.0, %v732
  %v734 = vpop.f32.mrb[0].mxu0
  %v735 = vadd.f32 0.0, %v734
  %736 = vmatprep.mubr.bf16.mxu0 0
  %737 = vmatmul.mubr.bf16.gmra.mrb[0].mxu0 %v649
  %v738 = vpop.f32.mrb[0].mxu0
  %v739 = vadd.f32 0.0, %v738
  %v740 = vpop.f32.mrb[0].mxu0
  %v741 = vadd.f32 0.0, %v740
  %v742 = vpop.f32.mrb[0].mxu0
  %v743 = vadd.f32 0.0, %v742
  %v744 = vpop.f32.mrb[0].mxu0
  %v745 = vadd.f32 0.0, %v744
  %746 = vmatprep.mubr.bf16.mxu0 0
  %747 = vmatmul.mubr.bf16.gmra.mrb[0].mxu0 %v652
  %v748 = vpop.f32.mrb[0].mxu0
  %v749 = vadd.f32 0.0, %v748
  %v750 = vpop.f32.mrb[0].mxu0
  %v751 = vadd.f32 0.0, %v750
  %v752 = vpop.f32.mrb[0].mxu0
  %v753 = vadd.f32 0.0, %v752
  %v754 = vpop.f32.mrb[0].mxu0
  %v755 = vadd.f32 0.0, %v754
  %756 = vmatprep.mubr.bf16.mxu0 0
  %757 = vmatmul.mubr.bf16.gmra.mrb[0].mxu0 %v655
  %v758 = vpop.f32.mrb[0].mxu0
  %v759 = vadd.f32 0.0, %v758
  %v760 = vpop.f32.mrb[0].mxu0
  %v761 = vadd.f32 0.0, %v760
  %v762 = vpop.f32.mrb[0].mxu0
  %v763 = vadd.f32 0.0, %v762
  %v764 = vpop.f32.mrb[0].mxu0
  %v765 = vadd.f32 0.0, %v764
  %766 = vmatprep.mubr.bf16.mxu0 0
  %767 = vmatmul.mubr.bf16.gmra.mrb[0].mxu0 %v658
  %v768 = vpop.f32.mrb[0].mxu0
  %v769 = vadd.f32 0.0, %v768
  %v770 = vpop.f32.mrb[0].mxu0
  %v771 = vadd.f32 0.0, %v770
  %v772 = vpop.f32.mrb[0].mxu0
  %v773 = vadd.f32 0.0, %v772
  %v774 = vpop.f32.mrb[0].mxu0
  %v775 = vadd.f32 0.0, %v774
  %776 = vmatprep.mubr.bf16.mxu0 0
  %777 = vmatmul.mubr.bf16.gmra.mrb[0].mxu0 %v661
  %v778 = vpop.f32.mrb[0].mxu0
  %v779 = vadd.f32 0.0, %v778
  %v780 = vpop.f32.mrb[0].mxu0
  %v781 = vadd.f32 0.0, %v780
  %v782 = vpop.f32.mrb[0].mxu0
  %v783 = vadd.f32 0.0, %v782
  %v784 = vpop.f32.mrb[0].mxu0
  %v785 = vadd.f32 0.0, %v784
  %786 = vmatprep.mubr.bf16.mxu0 0
  %787 = vmatmul.mubr.bf16.gmra.mrb[0].mxu0 %v664
  %v788 = vpop.f32.mrb[0].mxu0
  %v789 = vadd.f32 0.0, %v788
  %v790 = vpop.f32.mrb[0].mxu0
  %v791 = vadd.f32 0.0, %v790
  %v792 = vpop.f32.mrb[0].mxu0
  %v793 = vadd.f32 0.0, %v792
  %v794 = vpop.f32.mrb[0].mxu0
  %v795 = vadd.f32 0.0, %v794
  %796 = vmatprep.mubr.bf16.mxu0 0
  %797 = vmatmul.mubr.bf16.gmra.mrb[0].mxu0 %v667
  %v798 = vpop.f32.mrb[0].mxu0
  %v799 = vadd.f32 0.0, %v798
  %v800 = vpop.f32.mrb[0].mxu0
  %v801 = vadd.f32 0.0, %v800
  %v802 = vpop.f32.mrb[0].mxu0
  %v803 = vadd.f32 0.0, %v802
  %v804 = vpop.f32.mrb[0].mxu0
  %v805 = vadd.f32 0.0, %v804
  %806 = vmatprep.mubr.bf16.mxu0 0
  %807 = vmatmul.mubr.bf16.gmra.mrb[0].mxu0 %v670
  %v808 = vpop.f32.mrb[0].mxu0
  %v809 = vadd.f32 0.0, %v808
  %v810 = vpop.f32.mrb[0].mxu0
  %v811 = vadd.f32 0.0, %v810
  %v812 = vpop.f32.mrb[0].mxu0
  %v813 = vadd.f32 0.0, %v812
  %v814 = vpop.f32.mrb[0].mxu0
  %v815 = vadd.f32 0.0, %v814
  %816 = vmatprep.mubr.bf16.mxu0 0
  %817 = vmatmul.mubr.bf16.gmra.mrb[0].mxu0 %v673
  %v818 = vpop.f32.mrb[0].mxu0
  %v819 = vadd.f32 0.0, %v818
  %v820 = vpop.f32.mrb[0].mxu0
  %v821 = vadd.f32 0.0, %v820
  %v822 = vpop.f32.mrb[0].mxu0
  %v823 = vadd.f32 0.0, %v822
  %v824 = vpop.f32.mrb[0].mxu0
  %v825 = vadd.f32 0.0, %v824
  %826 = vmatprep.mubr.bf16.mxu0 0
  %827 = vmatmul.mubr.bf16.gmra.mrb[0].mxu0 %v676
  %v828 = vpop.f32.mrb[0].mxu0
  %v829 = vadd.f32 0.0, %v828
  %v830 = vpop.f32.mrb[0].mxu0
  %v831 = vadd.f32 0.0, %v830
  %v832 = vpop.f32.mrb[0].mxu0
  %v833 = vadd.f32 0.0, %v832
  %v834 = vpop.f32.mrb[0].mxu0
  %v835 = vadd.f32 0.0, %v834
  %836 = vdwg.mxu0
  %v837 = vadd.f32 %v464, %v719
  %v838 = vadd.f32 %v466, %v721
  %v839 = vadd.f32 %v468, %v723
  %v840 = vadd.f32 %v470, %v725
  %v841 = vadd.f32 %v474, %v729
  %v842 = vadd.f32 %v476, %v731
  %v843 = vadd.f32 %v478, %v733
  %v844 = vadd.f32 %v480, %v735
  %v845 = vadd.f32 %v484, %v739
  %v846 = vadd.f32 %v486, %v741
  %v847 = vadd.f32 %v488, %v743
  %v848 = vadd.f32 %v490, %v745
  %v849 = vadd.f32 %v494, %v749
  %v850 = vadd.f32 %v496, %v751
  %v851 = vadd.f32 %v498, %v753
  %v852 = vadd.f32 %v500, %v755
  %v853 = vadd.f32 %v504, %v759
  %v854 = vadd.f32 %v506, %v761
  %v855 = vadd.f32 %v508, %v763
  %v856 = vadd.f32 %v510, %v765
  %v857 = vadd.f32 %v514, %v769
  %v858 = vadd.f32 %v516, %v771
  %v859 = vadd.f32 %v518, %v773
  %v860 = vadd.f32 %v520, %v775
  %v861 = vadd.f32 %v524, %v779
  %v862 = vadd.f32 %v526, %v781
  %v863 = vadd.f32 %v528, %v783
  %v864 = vadd.f32 %v530, %v785
  %v865 = vadd.f32 %v534, %v789
  %v866 = vadd.f32 %v536, %v791
  %v867 = vadd.f32 %v538, %v793
  %v868 = vadd.f32 %v540, %v795
  %v869 = vadd.f32 %v544, %v799
  %v870 = vadd.f32 %v546, %v801
  %v871 = vadd.f32 %v548, %v803
  %v872 = vadd.f32 %v550, %v805
  %v873 = vadd.f32 %v554, %v809
  %v874 = vadd.f32 %v556, %v811
  %v875 = vadd.f32 %v558, %v813
  %v876 = vadd.f32 %v560, %v815
  %v877 = vadd.f32 %v564, %v819
  %v878 = vadd.f32 %v566, %v821
  %v879 = vadd.f32 %v568, %v823
  %v880 = vadd.f32 %v570, %v825
  %v881 = vadd.f32 %v574, %v829
  %v882 = vadd.f32 %v576, %v831
  %v883 = vadd.f32 %v578, %v833
  %v884 = vadd.f32 %v580, %v835
  %s885 = scalar_lea.vmem %s0, 24
  %v886 = vld [vmem:[%s885] sm:$0xff]
  %v887 = vld [vmem:[%s885 + $0x8] sm:$0xff]
  %v888 = vld [vmem:[%s885 + $0x10] sm:$0xff]
  %v889 = vld [vmem:[%s885 + $0x18] sm:$0xff]
  %v890 = vld [vmem:[%s885 + $0x20] sm:$0xff]
  %v891 = vld [vmem:[%s885 + $0x28] sm:$0xff]
  %v892 = vld [vmem:[%s885 + $0x30] sm:$0xff]
  %v893 = vld [vmem:[%s885 + $0x38] sm:$0xff]
  %v894 = vld [vmem:[%s885 + $0x40] sm:$0xff]
  %v895 = vld [vmem:[%s885 + $0x48] sm:$0xff]
  %v896 = vld [vmem:[%s885 + $0x50] sm:$0xff]
  %v897 = vld [vmem:[%s885 + $0x58] sm:$0xff]
  %v898 = vld [vmem:[%s885 + $0x60] sm:$0xff]
  %v899 = vld [vmem:[%s885 + $0x68] sm:$0xff]
  %v900 = vld [vmem:[%s885 + $0x70] sm:$0xff]
  %v901 = vld [vmem:[%s885 + $0x78] sm:$0xff]
  %v902 = vld [vmem:[%s885 + $0x80] sm:$0xff]
  %v903 = vld [vmem:[%s885 + $0x88] sm:$0xff]
  %v904 = vld [vmem:[%s885 + $0x90] sm:$0xff]
  %v905 = vld [vmem:[%s885 + $0x98] sm:$0xff]
  %v906 = vld [vmem:[%s885 + $0xa0] sm:$0xff]
  %v907 = vld [vmem:[%s885 + $0xa8] sm:$0xff]
  %v908 = vld [vmem:[%s885 + $0xb0] sm:$0xff]
  %v909 = vld [vmem:[%s885 + $0xb8] sm:$0xff]
  %v910 = vpack.c.bf16 %v887, %v886
  %v911 = vpack.c.bf16 %v889, %v888
  %v912 = vpack.c.bf16 %v891, %v890
  %v913 = vpack.c.bf16 %v893, %v892
  %v914 = vpack.c.bf16 %v895, %v894
  %v915 = vpack.c.bf16 %v897, %v896
  %v916 = vpack.c.bf16 %v899, %v898
  %v917 = vpack.c.bf16 %v901, %v900
  %v918 = vpack.c.bf16 %v903, %v902
  %v919 = vpack.c.bf16 %v905, %v904
  %v920 = vpack.c.bf16 %v907, %v906
  %v921 = vpack.c.bf16 %v909, %v908
  %s922 = scalar_lea.vmem %s1, 96
  %v923 = vld [vmem:[%s922] sm:$0xff]
  %v924 = vld [vmem:[%s922 + $0x8] sm:$0xff]
  %v925 = vld [vmem:[%s922 + $0x10] sm:$0xff]
  %v926 = vld [vmem:[%s922 + $0x18] sm:$0x33]
  %v931 = vunpack.c.l.b16 %v923
  %v932 = vunpack.c.h.b16 %v923
  %v933 = vunpack.c.l.b16 %v924
  %v934 = vunpack.c.h.b16 %v924
  %v935 = vunpack.c.l.b16 %v925
  %v936 = vunpack.c.h.b16 %v925
  %v937 = vunpack.c.l.b16 %v926
  %v938 = vunpack.c.h.b16 %v926
  %v939 = vpack.c.b16 %v933, %v931
  %v940 = vpack.c.b16 %v934, %v932
  %v941 = vpack.c.b16 %v937, %v935
  %v942 = vpack.c.b16 %v938, %v936
  %v946 = vsel %vm172, %v910, 0
  %v949 = vsel %vm172, %v911, 0
  %v952 = vsel %vm172, %v912, 0
  %v955 = vsel %vm172, %v913, 0
  %v958 = vsel %vm172, %v914, 0
  %v961 = vsel %vm172, %v915, 0
  %v964 = vsel %vm172, %v916, 0
  %v967 = vsel %vm172, %v917, 0
  %v970 = vsel %vm172, %v918, 0
  %v973 = vsel %vm172, %v919, 0
  %v976 = vsel %vm172, %v920, 0
  %v979 = vsel %vm172, %v921, 0
  %v982 = vsel %vm209, %v941, 0
  %v985 = vsel %vm209, %v942, 0
  %987 = vmatprep.subr.bf16.mxu0 %v940
  %988 = vmatpush1.bf16.msra.mxu0 %v939
  %989 = vmatprep.subr.bf16.mxu0 %v985
  %990 = vmatpush1.bf16.msra.mxu0 %v982
  %991 = vmatprep.subr.bf16.mxu0 0
  %992 = vmatpush1.bf16.msra.mxu0 0
  %993 = vmatprep.subr.bf16.mxu0 0
  %994 = vmatpush1.bf16.msra.mxu0 0
  %995 = vmatprep.subr.bf16.mxu0 0
  %996 = vmatpush1.bf16.msra.mxu0 0
  %997 = vmatprep.subr.bf16.mxu0 0
  %998 = vmatpush1.bf16.msra.mxu0 0
  %999 = vmatprep.subr.bf16.mxu0 0
  %1000 = vmatpush1.bf16.msra.mxu0 0
  %1001 = vmatprep.subr.bf16.mxu0 0
  %1002 = vmatpush1.bf16.msra.mxu0 0
  %1003 = vmatprep.subr.bf16.mxu0 0
  %1004 = vmatpush1.bf16.msra.mxu0 0
  %1005 = vmatprep.subr.bf16.mxu0 0
  %1006 = vmatpush1.bf16.msra.mxu0 0
  %1007 = vmatprep.subr.bf16.mxu0 0
  %1008 = vmatpush1.bf16.msra.mxu0 0
  %1009 = vmatprep.subr.bf16.mxu0 0
  %1010 = vmatpush1.bf16.msra.mxu0 0
  %1011 = vmatprep.subr.bf16.mxu0 0
  %1012 = vmatpush1.bf16.msra.mxu0 0
  %1013 = vmatprep.subr.bf16.mxu0 0
  %1014 = vmatpush1.bf16.msra.mxu0 0
  %1015 = vmatprep.subr.bf16.mxu0 0
  %1016 = vmatpush1.bf16.msra.mxu0 0
  %1017 = vmatprep.subr.bf16.mxu0 0
  %1018 = vmatpush1.bf16.msra.mxu0 0
  %1019 = vmatprep.mubr.bf16.mxu0 0
  %1020 = vmatmul.mubr.bf16.gmra.mrb[0].mxu0 %v946
  %v1021 = vpop.f32.mrb[0].mxu0
  %v1022 = vadd.f32 0.0, %v1021
  %v1023 = vpop.f32.mrb[0].mxu0
  %v1024 = vadd.f32 0.0, %v1023
  %v1025 = vpop.f32.mrb[0].mxu0
  %v1026 = vadd.f32 0.0, %v1025
  %v1027 = vpop.f32.mrb[0].mxu0
  %v1028 = vadd.f32 0.0, %v1027
  %1029 = vmatprep.mubr.bf16.mxu0 0
  %1030 = vmatmul.mubr.bf16.gmra.mrb[0].mxu0 %v949
  %v1031 = vpop.f32.mrb[0].mxu0
  %v1032 = vadd.f32 0.0, %v1031
  %v1033 = vpop.f32.mrb[0].mxu0
  %v1034 = vadd.f32 0.0, %v1033
  %v1035 = vpop.f32.mrb[0].mxu0
  %v1036 = vadd.f32 0.0, %v1035
  %v1037 = vpop.f32.mrb[0].mxu0
  %v1038 = vadd.f32 0.0, %v1037
  %1039 = vmatprep.mubr.bf16.mxu0 0
  %1040 = vmatmul.mubr.bf16.gmra.mrb[0].mxu0 %v952
  %v1041 = vpop.f32.mrb[0].mxu0
  %v1042 = vadd.f32 0.0, %v1041
  %v1043 = vpop.f32.mrb[0].mxu0
  %v1044 = vadd.f32 0.0, %v1043
  %v1045 = vpop.f32.mrb[0].mxu0
  %v1046 = vadd.f32 0.0, %v1045
  %v1047 = vpop.f32.mrb[0].mxu0
  %v1048 = vadd.f32 0.0, %v1047
  %1049 = vmatprep.mubr.bf16.mxu0 0
  %1050 = vmatmul.mubr.bf16.gmra.mrb[0].mxu0 %v955
  %v1051 = vpop.f32.mrb[0].mxu0
  %v1052 = vadd.f32 0.0, %v1051
  %v1053 = vpop.f32.mrb[0].mxu0
  %v1054 = vadd.f32 0.0, %v1053
  %v1055 = vpop.f32.mrb[0].mxu0
  %v1056 = vadd.f32 0.0, %v1055
  %v1057 = vpop.f32.mrb[0].mxu0
  %v1058 = vadd.f32 0.0, %v1057
  %1059 = vmatprep.mubr.bf16.mxu0 0
  %1060 = vmatmul.mubr.bf16.gmra.mrb[0].mxu0 %v958
  %v1061 = vpop.f32.mrb[0].mxu0
  %v1062 = vadd.f32 0.0, %v1061
  %v1063 = vpop.f32.mrb[0].mxu0
  %v1064 = vadd.f32 0.0, %v1063
  %v1065 = vpop.f32.mrb[0].mxu0
  %v1066 = vadd.f32 0.0, %v1065
  %v1067 = vpop.f32.mrb[0].mxu0
  %v1068 = vadd.f32 0.0, %v1067
  %1069 = vmatprep.mubr.bf16.mxu0 0
  %1070 = vmatmul.mubr.bf16.gmra.mrb[0].mxu0 %v961
  %v1071 = vpop.f32.mrb[0].mxu0
  %v1072 = vadd.f32 0.0, %v1071
  %v1073 = vpop.f32.mrb[0].mxu0
  %v1074 = vadd.f32 0.0, %v1073
  %v1075 = vpop.f32.mrb[0].mxu0
  %v1076 = vadd.f32 0.0, %v1075
  %v1077 = vpop.f32.mrb[0].mxu0
  %v1078 = vadd.f32 0.0, %v1077
  %1079 = vmatprep.mubr.bf16.mxu0 0
  %1080 = vmatmul.mubr.bf16.gmra.mrb[0].mxu0 %v964
  %v1081 = vpop.f32.mrb[0].mxu0
  %v1082 = vadd.f32 0.0, %v1081
  %v1083 = vpop.f32.mrb[0].mxu0
  %v1084 = vadd.f32 0.0, %v1083
  %v1085 = vpop.f32.mrb[0].mxu0
  %v1086 = vadd.f32 0.0, %v1085
  %v1087 = vpop.f32.mrb[0].mxu0
  %v1088 = vadd.f32 0.0, %v1087
  %1089 = vmatprep.mubr.bf16.mxu0 0
  %1090 = vmatmul.mubr.bf16.gmra.mrb[0].mxu0 %v967
  %v1091 = vpop.f32.mrb[0].mxu0
  %v1092 = vadd.f32 0.0, %v1091
  %v1093 = vpop.f32.mrb[0].mxu0
  %v1094 = vadd.f32 0.0, %v1093
  %v1095 = vpop.f32.mrb[0].mxu0
  %v1096 = vadd.f32 0.0, %v1095
  %v1097 = vpop.f32.mrb[0].mxu0
  %v1098 = vadd.f32 0.0, %v1097
  %1099 = vmatprep.mubr.bf16.mxu0 0
  %1100 = vmatmul.mubr.bf16.gmra.mrb[0].mxu0 %v970
  %v1101 = vpop.f32.mrb[0].mxu0
  %v1102 = vadd.f32 0.0, %v1101
  %v1103 = vpop.f32.mrb[0].mxu0
  %v1104 = vadd.f32 0.0, %v1103
  %v1105 = vpop.f32.mrb[0].mxu0
  %v1106 = vadd.f32 0.0, %v1105
  %v1107 = vpop.f32.mrb[0].mxu0
  %v1108 = vadd.f32 0.0, %v1107
  %1109 = vmatprep.mubr.bf16.mxu0 0
  %1110 = vmatmul.mubr.bf16.gmra.mrb[0].mxu0 %v973
  %v1111 = vpop.f32.mrb[0].mxu0
  %v1112 = vadd.f32 0.0, %v1111
  %v1113 = vpop.f32.mrb[0].mxu0
  %v1114 = vadd.f32 0.0, %v1113
  %v1115 = vpop.f32.mrb[0].mxu0
  %v1116 = vadd.f32 0.0, %v1115
  %v1117 = vpop.f32.mrb[0].mxu0
  %v1118 = vadd.f32 0.0, %v1117
  %1119 = vmatprep.mubr.bf16.mxu0 0
  %1120 = vmatmul.mubr.bf16.gmra.mrb[0].mxu0 %v976
  %v1121 = vpop.f32.mrb[0].mxu0
  %v1122 = vadd.f32 0.0, %v1121
  %v1123 = vpop.f32.mrb[0].mxu0
  %v1124 = vadd.f32 0.0, %v1123
  %v1125 = vpop.f32.mrb[0].mxu0
  %v1126 = vadd.f32 0.0, %v1125
  %v1127 = vpop.f32.mrb[0].mxu0
  %v1128 = vadd.f32 0.0, %v1127
  %1129 = vmatprep.mubr.bf16.mxu0 0
  %1130 = vmatmul.mubr.bf16.gmra.mrb[0].mxu0 %v979
  %v1131 = vpop.f32.mrb[0].mxu0
  %v1132 = vadd.f32 0.0, %v1131
  %v1133 = vpop.f32.mrb[0].mxu0
  %v1134 = vadd.f32 0.0, %v1133
  %v1135 = vpop.f32.mrb[0].mxu0
  %v1136 = vadd.f32 0.0, %v1135
  %v1137 = vpop.f32.mrb[0].mxu0
  %v1138 = vadd.f32 0.0, %v1137
  %1139 = vdwg.mxu0
  %v1140 = vadd.f32 %v837, %v1022
  %v1141 = vadd.f32 %v838, %v1024
  %v1142 = vadd.f32 %v839, %v1026
  %v1143 = vadd.f32 %v840, %v1028
  %v1144 = vadd.f32 %v841, %v1032
  %v1145 = vadd.f32 %v842, %v1034
  %v1146 = vadd.f32 %v843, %v1036
  %v1147 = vadd.f32 %v844, %v1038
  %v1148 = vadd.f32 %v845, %v1042
  %v1149 = vadd.f32 %v846, %v1044
  %v1150 = vadd.f32 %v847, %v1046
  %v1151 = vadd.f32 %v848, %v1048
  %v1152 = vadd.f32 %v849, %v1052
  %v1153 = vadd.f32 %v850, %v1054
  %v1154 = vadd.f32 %v851, %v1056
  %v1155 = vadd.f32 %v852, %v1058
  %v1156 = vadd.f32 %v853, %v1062
  %v1157 = vadd.f32 %v854, %v1064
  %v1158 = vadd.f32 %v855, %v1066
  %v1159 = vadd.f32 %v856, %v1068
  %v1160 = vadd.f32 %v857, %v1072
  %v1161 = vadd.f32 %v858, %v1074
  %v1162 = vadd.f32 %v859, %v1076
  %v1163 = vadd.f32 %v860, %v1078
  %v1164 = vadd.f32 %v861, %v1082
  %v1165 = vadd.f32 %v862, %v1084
  %v1166 = vadd.f32 %v863, %v1086
  %v1167 = vadd.f32 %v864, %v1088
  %v1168 = vadd.f32 %v865, %v1092
  %v1169 = vadd.f32 %v866, %v1094
  %v1170 = vadd.f32 %v867, %v1096
  %v1171 = vadd.f32 %v868, %v1098
  %v1172 = vadd.f32 %v869, %v1102
  %v1173 = vadd.f32 %v870, %v1104
  %v1174 = vadd.f32 %v871, %v1106
  %v1175 = vadd.f32 %v872, %v1108
  %v1176 = vadd.f32 %v873, %v1112
  %v1177 = vadd.f32 %v874, %v1114
  %v1178 = vadd.f32 %v875, %v1116
  %v1179 = vadd.f32 %v876, %v1118
  %v1180 = vadd.f32 %v877, %v1122
  %v1181 = vadd.f32 %v878, %v1124
  %v1182 = vadd.f32 %v879, %v1126
  %v1183 = vadd.f32 %v880, %v1128
  %v1184 = vadd.f32 %v881, %v1132
  %v1185 = vadd.f32 %v882, %v1134
  %v1186 = vadd.f32 %v883, %v1136
  %v1187 = vadd.f32 %v884, %v1138
  %s1188 = scalar_lea.vmem %s0, 32
  %v1189 = vld [vmem:[%s1188] sm:$0xff]
  %v1190 = vld [vmem:[%s1188 + $0x8] sm:$0xff]
  %v1191 = vld [vmem:[%s1188 + $0x10] sm:$0xff]
  %v1192 = vld [vmem:[%s1188 + $0x18] sm:$0xff]
  %v1193 = vld [vmem:[%s1188 + $0x20] sm:$0xff]
  %v1194 = vld [vmem:[%s1188 + $0x28] sm:$0xff]
  %v1195 = vld [vmem:[%s1188 + $0x30] sm:$0xff]
  %v1196 = vld [vmem:[%s1188 + $0x38] sm:$0xff]
  %v1197 = vld [vmem:[%s1188 + $0x40] sm:$0xff]
  %v1198 = vld [vmem:[%s1188 + $0x48] sm:$0xff]
  %v1199 = vld [vmem:[%s1188 + $0x50] sm:$0xff]
  %v1200 = vld [vmem:[%s1188 + $0x58] sm:$0xff]
  %v1201 = vld [vmem:[%s1188 + $0x60] sm:$0xff]
  %v1202 = vld [vmem:[%s1188 + $0x68] sm:$0xff]
  %v1203 = vld [vmem:[%s1188 + $0x70] sm:$0xff]
  %v1204 = vld [vmem:[%s1188 + $0x78] sm:$0xff]
  %v1205 = vld [vmem:[%s1188 + $0x80] sm:$0xff]
  %v1206 = vld [vmem:[%s1188 + $0x88] sm:$0xff]
  %v1207 = vld [vmem:[%s1188 + $0x90] sm:$0xff]
  %v1208 = vld [vmem:[%s1188 + $0x98] sm:$0xff]
  %v1209 = vld [vmem:[%s1188 + $0xa0] sm:$0xff]
  %v1210 = vld [vmem:[%s1188 + $0xa8] sm:$0xff]
  %v1211 = vld [vmem:[%s1188 + $0xb0] sm:$0xff]
  %v1212 = vld [vmem:[%s1188 + $0xb8] sm:$0xff]
  %v1213 = vpack.c.bf16 %v1190, %v1189
  %v1214 = vpack.c.bf16 %v1192, %v1191
  %v1215 = vpack.c.bf16 %v1194, %v1193
  %v1216 = vpack.c.bf16 %v1196, %v1195
  %v1217 = vpack.c.bf16 %v1198, %v1197
  %v1218 = vpack.c.bf16 %v1200, %v1199
  %v1219 = vpack.c.bf16 %v1202, %v1201
  %v1220 = vpack.c.bf16 %v1204, %v1203
  %v1221 = vpack.c.bf16 %v1206, %v1205
  %v1222 = vpack.c.bf16 %v1208, %v1207
  %v1223 = vpack.c.bf16 %v1210, %v1209
  %v1224 = vpack.c.bf16 %v1212, %v1211
  %s1225 = scalar_lea.vmem %s1, 128
  %v1226 = vld [vmem:[%s1225] sm:$0xff]
  %v1227 = vld [vmem:[%s1225 + $0x8] sm:$0xff]
  %v1228 = vld [vmem:[%s1225 + $0x10] sm:$0xff]
  %v1229 = vld [vmem:[%s1225 + $0x18] sm:$0x33]
  %v1234 = vunpack.c.l.b16 %v1226
  %v1235 = vunpack.c.h.b16 %v1226
  %v1236 = vunpack.c.l.b16 %v1227
  %v1237 = vunpack.c.h.b16 %v1227
  %v1238 = vunpack.c.l.b16 %v1228
  %v1239 = vunpack.c.h.b16 %v1228
  %v1240 = vunpack.c.l.b16 %v1229
  %v1241 = vunpack.c.h.b16 %v1229
  %v1242 = vpack.c.b16 %v1236, %v1234
  %v1243 = vpack.c.b16 %v1237, %v1235
  %v1244 = vpack.c.b16 %v1240, %v1238
  %v1245 = vpack.c.b16 %v1241, %v1239
  %v1249 = vsel %vm172, %v1213, 0
  %v1252 = vsel %vm172, %v1214, 0
  %v1255 = vsel %vm172, %v1215, 0
  %v1258 = vsel %vm172, %v1216, 0
  %v1261 = vsel %vm172, %v1217, 0
  %v1264 = vsel %vm172, %v1218, 0
  %v1267 = vsel %vm172, %v1219, 0
  %v1270 = vsel %vm172, %v1220, 0
  %v1273 = vsel %vm172, %v1221, 0
  %v1276 = vsel %vm172, %v1222, 0
  %v1279 = vsel %vm172, %v1223, 0
  %v1282 = vsel %vm172, %v1224, 0
  %v1285 = vsel %vm209, %v1244, 0
  %v1288 = vsel %vm209, %v1245, 0
  %1290 = vmatprep.subr.bf16.mxu0 %v1243
  %1291 = vmatpush1.bf16.msra.mxu0 %v1242
  %1292 = vmatprep.subr.bf16.mxu0 %v1288
  %1293 = vmatpush1.bf16.msra.mxu0 %v1285
  %1294 = vmatprep.subr.bf16.mxu0 0
  %1295 = vmatpush1.bf16.msra.mxu0 0
  %1296 = vmatprep.subr.bf16.mxu0 0
  %1297 = vmatpush1.bf16.msra.mxu0 0
  %1298 = vmatprep.subr.bf16.mxu0 0
  %1299 = vmatpush1.bf16.msra.mxu0 0
  %1300 = vmatprep.subr.bf16.mxu0 0
  %1301 = vmatpush1.bf16.msra.mxu0 0
  %1302 = vmatprep.subr.bf16.mxu0 0
  %1303 = vmatpush1.bf16.msra.mxu0 0
  %1304 = vmatprep.subr.bf16.mxu0 0
  %1305 = vmatpush1.bf16.msra.mxu0 0
  %1306 = vmatprep.subr.bf16.mxu0 0
  %1307 = vmatpush1.bf16.msra.mxu0 0
  %1308 = vmatprep.subr.bf16.mxu0 0
  %1309 = vmatpush1.bf16.msra.mxu0 0
  %1310 = vmatprep.subr.bf16.mxu0 0
  %1311 = vmatpush1.bf16.msra.mxu0 0
  %1312 = vmatprep.subr.bf16.mxu0 0
  %1313 = vmatpush1.bf16.msra.mxu0 0
  %1314 = vmatprep.subr.bf16.mxu0 0
  %1315 = vmatpush1.bf16.msra.mxu0 0
  %1316 = vmatprep.subr.bf16.mxu0 0
  %1317 = vmatpush1.bf16.msra.mxu0 0
  %1318 = vmatprep.subr.bf16.mxu0 0
  %1319 = vmatpush1.bf16.msra.mxu0 0
  %1320 = vmatprep.subr.bf16.mxu0 0
  %1321 = vmatpush1.bf16.msra.mxu0 0
  %1322 = vmatprep.mubr.bf16.mxu0 0
  %1323 = vmatmul.mubr.bf16.gmra.mrb[0].mxu0 %v1249
  %v1324 = vpop.f32.mrb[0].mxu0
  %v1325 = vadd.f32 0.0, %v1324
  %v1326 = vpop.f32.mrb[0].mxu0
  %v1327 = vadd.f32 0.0, %v1326
  %v1328 = vpop.f32.mrb[0].mxu0
  %v1329 = vadd.f32 0.0, %v1328
  %v1330 = vpop.f32.mrb[0].mxu0
  %v1331 = vadd.f32 0.0, %v1330
  %1332 = vmatprep.mubr.bf16.mxu0 0
  %1333 = vmatmul.mubr.bf16.gmra.mrb[0].mxu0 %v1252
  %v1334 = vpop.f32.mrb[0].mxu0
  %v1335 = vadd.f32 0.0, %v1334
  %v1336 = vpop.f32.mrb[0].mxu0
  %v1337 = vadd.f32 0.0, %v1336
  %v1338 = vpop.f32.mrb[0].mxu0
  %v1339 = vadd.f32 0.0, %v1338
  %v1340 = vpop.f32.mrb[0].mxu0
  %v1341 = vadd.f32 0.0, %v1340
  %1342 = vmatprep.mubr.bf16.mxu0 0
  %1343 = vmatmul.mubr.bf16.gmra.mrb[0].mxu0 %v1255
  %v1344 = vpop.f32.mrb[0].mxu0
  %v1345 = vadd.f32 0.0, %v1344
  %v1346 = vpop.f32.mrb[0].mxu0
  %v1347 = vadd.f32 0.0, %v1346
  %v1348 = vpop.f32.mrb[0].mxu0
  %v1349 = vadd.f32 0.0, %v1348
  %v1350 = vpop.f32.mrb[0].mxu0
  %v1351 = vadd.f32 0.0, %v1350
  %1352 = vmatprep.mubr.bf16.mxu0 0
  %1353 = vmatmul.mubr.bf16.gmra.mrb[0].mxu0 %v1258
  %v1354 = vpop.f32.mrb[0].mxu0
  %v1355 = vadd.f32 0.0, %v1354
  %v1356 = vpop.f32.mrb[0].mxu0
  %v1357 = vadd.f32 0.0, %v1356
  %v1358 = vpop.f32.mrb[0].mxu0
  %v1359 = vadd.f32 0.0, %v1358
  %v1360 = vpop.f32.mrb[0].mxu0
  %v1361 = vadd.f32 0.0, %v1360
  %1362 = vmatprep.mubr.bf16.mxu0 0
  %1363 = vmatmul.mubr.bf16.gmra.mrb[0].mxu0 %v1261
  %v1364 = vpop.f32.mrb[0].mxu0
  %v1365 = vadd.f32 0.0, %v1364
  %v1366 = vpop.f32.mrb[0].mxu0
  %v1367 = vadd.f32 0.0, %v1366
  %v1368 = vpop.f32.mrb[0].mxu0
  %v1369 = vadd.f32 0.0, %v1368
  %v1370 = vpop.f32.mrb[0].mxu0
  %v1371 = vadd.f32 0.0, %v1370
  %1372 = vmatprep.mubr.bf16.mxu0 0
  %1373 = vmatmul.mubr.bf16.gmra.mrb[0].mxu0 %v1264
  %v1374 = vpop.f32.mrb[0].mxu0
  %v1375 = vadd.f32 0.0, %v1374
  %v1376 = vpop.f32.mrb[0].mxu0
  %v1377 = vadd.f32 0.0, %v1376
  %v1378 = vpop.f32.mrb[0].mxu0
  %v1379 = vadd.f32 0.0, %v1378
  %v1380 = vpop.f32.mrb[0].mxu0
  %v1381 = vadd.f32 0.0, %v1380
  %1382 = vmatprep.mubr.bf16.mxu0 0
  %1383 = vmatmul.mubr.bf16.gmra.mrb[0].mxu0 %v1267
  %v1384 = vpop.f32.mrb[0].mxu0
  %v1385 = vadd.f32 0.0, %v1384
  %v1386 = vpop.f32.mrb[0].mxu0
  %v1387 = vadd.f32 0.0, %v1386
  %v1388 = vpop.f32.mrb[0].mxu0
  %v1389 = vadd.f32 0.0, %v1388
  %v1390 = vpop.f32.mrb[0].mxu0
  %v1391 = vadd.f32 0.0, %v1390
  %1392 = vmatprep.mubr.bf16.mxu0 0
  %1393 = vmatmul.mubr.bf16.gmra.mrb[0].mxu0 %v1270
  %v1394 = vpop.f32.mrb[0].mxu0
  %v1395 = vadd.f32 0.0, %v1394
  %v1396 = vpop.f32.mrb[0].mxu0
  %v1397 = vadd.f32 0.0, %v1396
  %v1398 = vpop.f32.mrb[0].mxu0
  %v1399 = vadd.f32 0.0, %v1398
  %v1400 = vpop.f32.mrb[0].mxu0
  %v1401 = vadd.f32 0.0, %v1400
  %1402 = vmatprep.mubr.bf16.mxu0 0
  %1403 = vmatmul.mubr.bf16.gmra.mrb[0].mxu0 %v1273
  %v1404 = vpop.f32.mrb[0].mxu0
  %v1405 = vadd.f32 0.0, %v1404
  %v1406 = vpop.f32.mrb[0].mxu0
  %v1407 = vadd.f32 0.0, %v1406
  %v1408 = vpop.f32.mrb[0].mxu0
  %v1409 = vadd.f32 0.0, %v1408
  %v1410 = vpop.f32.mrb[0].mxu0
  %v1411 = vadd.f32 0.0, %v1410
  %1412 = vmatprep.mubr.bf16.mxu0 0
  %1413 = vmatmul.mubr.bf16.gmra.mrb[0].mxu0 %v1276
  %v1414 = vpop.f32.mrb[0].mxu0
  %v1415 = vadd.f32 0.0, %v1414
  %v1416 = vpop.f32.mrb[0].mxu0
  %v1417 = vadd.f32 0.0, %v1416
  %v1418 = vpop.f32.mrb[0].mxu0
  %v1419 = vadd.f32 0.0, %v1418
  %v1420 = vpop.f32.mrb[0].mxu0
  %v1421 = vadd.f32 0.0, %v1420
  %1422 = vmatprep.mubr.bf16.mxu0 0
  %1423 = vmatmul.mubr.bf16.gmra.mrb[0].mxu0 %v1279
  %v1424 = vpop.f32.mrb[0].mxu0
  %v1425 = vadd.f32 0.0, %v1424
  %v1426 = vpop.f32.mrb[0].mxu0
  %v1427 = vadd.f32 0.0, %v1426
  %v1428 = vpop.f32.mrb[0].mxu0
  %v1429 = vadd.f32 0.0, %v1428
  %v1430 = vpop.f32.mrb[0].mxu0
  %v1431 = vadd.f32 0.0, %v1430
  %1432 = vmatprep.mubr.bf16.mxu0 0
  %1433 = vmatmul.mubr.bf16.gmra.mrb[0].mxu0 %v1282
  %v1434 = vpop.f32.mrb[0].mxu0
  %v1435 = vadd.f32 0.0, %v1434
  %v1436 = vpop.f32.mrb[0].mxu0
  %v1437 = vadd.f32 0.0, %v1436
  %v1438 = vpop.f32.mrb[0].mxu0
  %v1439 = vadd.f32 0.0, %v1438
  %v1440 = vpop.f32.mrb[0].mxu0
  %v1441 = vadd.f32 0.0, %v1440
  %1442 = vdwg.mxu0
  %v1443 = vadd.f32 %v1140, %v1325
  %v1444 = vadd.f32 %v1141, %v1327
  %v1445 = vadd.f32 %v1142, %v1329
  %v1446 = vadd.f32 %v1143, %v1331
  %v1447 = vadd.f32 %v1144, %v1335
  %v1448 = vadd.f32 %v1145, %v1337
  %v1449 = vadd.f32 %v1146, %v1339
  %v1450 = vadd.f32 %v1147, %v1341
  %v1451 = vadd.f32 %v1148, %v1345
  %v1452 = vadd.f32 %v1149, %v1347
  %v1453 = vadd.f32 %v1150, %v1349
  %v1454 = vadd.f32 %v1151, %v1351
  %v1455 = vadd.f32 %v1152, %v1355
  %v1456 = vadd.f32 %v1153, %v1357
  %v1457 = vadd.f32 %v1154, %v1359
  %v1458 = vadd.f32 %v1155, %v1361
  %v1459 = vadd.f32 %v1156, %v1365
  %v1460 = vadd.f32 %v1157, %v1367
  %v1461 = vadd.f32 %v1158, %v1369
  %v1462 = vadd.f32 %v1159, %v1371
  %v1463 = vadd.f32 %v1160, %v1375
  %v1464 = vadd.f32 %v1161, %v1377
  %v1465 = vadd.f32 %v1162, %v1379
  %v1466 = vadd.f32 %v1163, %v1381
  %v1467 = vadd.f32 %v1164, %v1385
  %v1468 = vadd.f32 %v1165, %v1387
  %v1469 = vadd.f32 %v1166, %v1389
  %v1470 = vadd.f32 %v1167, %v1391
  %v1471 = vadd.f32 %v1168, %v1395
  %v1472 = vadd.f32 %v1169, %v1397
  %v1473 = vadd.f32 %v1170, %v1399
  %v1474 = vadd.f32 %v1171, %v1401
  %v1475 = vadd.f32 %v1172, %v1405
  %v1476 = vadd.f32 %v1173, %v1407
  %v1477 = vadd.f32 %v1174, %v1409
  %v1478 = vadd.f32 %v1175, %v1411
  %v1479 = vadd.f32 %v1176, %v1415
  %v1480 = vadd.f32 %v1177, %v1417
  %v1481 = vadd.f32 %v1178, %v1419
  %v1482 = vadd.f32 %v1179, %v1421
  %v1483 = vadd.f32 %v1180, %v1425
  %v1484 = vadd.f32 %v1181, %v1427
  %v1485 = vadd.f32 %v1182, %v1429
  %v1486 = vadd.f32 %v1183, %v1431
  %v1487 = vadd.f32 %v1184, %v1435
  %v1488 = vadd.f32 %v1185, %v1437
  %v1489 = vadd.f32 %v1186, %v1439
  %v1490 = vadd.f32 %v1187, %v1441
  %v1491 = vld [vmem:[%s4] sm:$0x3]
  %v1493 = vlaneseq
  %v1494 = vshrl.u32 %v1493, 7
  %v1495 = vsub.s32 0, %v1494
  %v1496 = vrot.slane %v1491, %v1495
  %v1497 = vlaneseq
  %v1498 = vshrl.u32 %v1497, 7
  %v1499 = vsub.s32 1, %v1498
  %v1500 = vrot.slane %v1491, %v1499
  %v1503 = vadd.f32 %v1443, %v1496
  %v1504 = vadd.f32 %v1444, %v1500
  %v1505 = vadd.f32 %v1445, %v1496
  %v1506 = vadd.f32 %v1446, %v1500
  %v1507 = vadd.f32 %v1447, %v1496
  %v1508 = vadd.f32 %v1448, %v1500
  %v1509 = vadd.f32 %v1449, %v1496
  %v1510 = vadd.f32 %v1450, %v1500
  %v1511 = vadd.f32 %v1451, %v1496
  %v1512 = vadd.f32 %v1452, %v1500
  %v1513 = vadd.f32 %v1453, %v1496
  %v1514 = vadd.f32 %v1454, %v1500
  %v1515 = vadd.f32 %v1455, %v1496
  %v1516 = vadd.f32 %v1456, %v1500
  %v1517 = vadd.f32 %v1457, %v1496
  %v1518 = vadd.f32 %v1458, %v1500
  %v1519 = vadd.f32 %v1459, %v1496
  %v1520 = vadd.f32 %v1460, %v1500
  %v1521 = vadd.f32 %v1461, %v1496
  %v1522 = vadd.f32 %v1462, %v1500
  %v1523 = vadd.f32 %v1463, %v1496
  %v1524 = vadd.f32 %v1464, %v1500
  %v1525 = vadd.f32 %v1465, %v1496
  %v1526 = vadd.f32 %v1466, %v1500
  %v1527 = vadd.f32 %v1467, %v1496
  %v1528 = vadd.f32 %v1468, %v1500
  %v1529 = vadd.f32 %v1469, %v1496
  %v1530 = vadd.f32 %v1470, %v1500
  %v1531 = vadd.f32 %v1471, %v1496
  %v1532 = vadd.f32 %v1472, %v1500
  %v1533 = vadd.f32 %v1473, %v1496
  %v1534 = vadd.f32 %v1474, %v1500
  %v1535 = vadd.f32 %v1475, %v1496
  %v1536 = vadd.f32 %v1476, %v1500
  %v1537 = vadd.f32 %v1477, %v1496
  %v1538 = vadd.f32 %v1478, %v1500
  %v1539 = vadd.f32 %v1479, %v1496
  %v1540 = vadd.f32 %v1480, %v1500
  %v1541 = vadd.f32 %v1481, %v1496
  %v1542 = vadd.f32 %v1482, %v1500
  %v1543 = vadd.f32 %v1483, %v1496
  %v1544 = vadd.f32 %v1484, %v1500
  %v1545 = vadd.f32 %v1485, %v1496
  %v1546 = vadd.f32 %v1486, %v1500
  %v1547 = vadd.f32 %v1487, %v1496
  %v1548 = vadd.f32 %v1488, %v1500
  %v1549 = vadd.f32 %v1489, %v1496
  %v1550 = vadd.f32 %v1490, %v1500
  %v1551 = vld [vmem:[%s2] sm:$0xff]
  %v1552 = vld [vmem:[%s2 + $0x8] sm:$0xff]
  %v1553 = vld [vmem:[%s2 + $0x10] sm:$0xff]
  %v1554 = vld [vmem:[%s2 + $0x18] sm:$0xff]
  %v1555 = vld [vmem:[%s2 + $0x20] sm:$0xff]
  %v1556 = vld [vmem:[%s2 + $0x28] sm:$0xff]
  %v1557 = vld [vmem:[%s2 + $0x30] sm:$0xff]
  %v1558 = vld [vmem:[%s2 + $0x38] sm:$0xff]
  %v1559 = vld [vmem:[%s2 + $0x40] sm:$0xff]
  %v1560 = vld [vmem:[%s2 + $0x48] sm:$0xff]
  %v1561 = vld [vmem:[%s2 + $0x50] sm:$0xff]
  %v1562 = vld [vmem:[%s2 + $0x58] sm:$0xff]
  %v1563 = vld [vmem:[%s2 + $0x60] sm:$0xff]
  %v1564 = vld [vmem:[%s2 + $0x68] sm:$0xff]
  %v1565 = vld [vmem:[%s2 + $0x70] sm:$0xff]
  %v1566 = vld [vmem:[%s2 + $0x78] sm:$0xff]
  %v1567 = vld [vmem:[%s2 + $0x80] sm:$0xff]
  %v1568 = vld [vmem:[%s2 + $0x88] sm:$0xff]
  %v1569 = vld [vmem:[%s2 + $0x90] sm:$0xff]
  %v1570 = vld [vmem:[%s2 + $0x98] sm:$0xff]
  %v1571 = vld [vmem:[%s2 + $0xa0] sm:$0xff]
  %v1572 = vld [vmem:[%s2 + $0xa8] sm:$0xff]
  %v1573 = vld [vmem:[%s2 + $0xb0] sm:$0xff]
  %v1574 = vld [vmem:[%s2 + $0xb8] sm:$0xff]
  %v1575 = vld [vmem:[%s2 + $0xc0] sm:$0xff]
  %v1576 = vld [vmem:[%s2 + $0xc8] sm:$0xff]
  %v1577 = vld [vmem:[%s2 + $0xd0] sm:$0xff]
  %v1578 = vld [vmem:[%s2 + $0xd8] sm:$0xff]
  %v1579 = vld [vmem:[%s2 + $0xe0] sm:$0xff]
  %v1580 = vld [vmem:[%s2 + $0xe8] sm:$0xff]
  %vm1581 = vcmask 916480
  %v1583 = vsel %vm1581, %v1504, 0
  %v1586 = vsel %vm1581, %v1506, 0
  %v1589 = vsel %vm1581, %v1508, 0
  %v1592 = vsel %vm1581, %v1510, 0
  %v1595 = vsel %vm1581, %v1512, 0
  %v1598 = vsel %vm1581, %v1514, 0
  %v1601 = vsel %vm1581, %v1516, 0
  %v1604 = vsel %vm1581, %v1518, 0
  %v1607 = vsel %vm1581, %v1520, 0
  %v1610 = vsel %vm1581, %v1522, 0
  %v1613 = vsel %vm1581, %v1524, 0
  %v1616 = vsel %vm1581, %v1526, 0
  %v1619 = vsel %vm1581, %v1528, 0
  %v1622 = vsel %vm1581, %v1530, 0
  %v1625 = vsel %vm1581, %v1532, 0
  %v1628 = vsel %vm1581, %v1534, 0
  %v1631 = vsel %vm1581, %v1536, 0
  %v1634 = vsel %vm1581, %v1538, 0
  %v1637 = vsel %vm1581, %v1540, 0
  %v1640 = vsel %vm1581, %v1542, 0
  %v1643 = vsel %vm1581, %v1544, 0
  %v1646 = vsel %vm1581, %v1546, 0
  %v1649 = vsel %vm1581, %v1548, 0
  %v1652 = vsel %vm1581, %v1550, 0
  %1654 = vmatprep.subr.mxu0 0.0
  %1655 = vmatpush1.msra.mxu0 %v1551
  %1656 = vmatprep.subr.mxu0 0.0
  %1657 = vmatpush1.msra.mxu0 %v1552
  %1658 = vmatprep.subr.mxu0 0.0
  %1659 = vmatpush1.msra.mxu0 %v1553
  %1660 = vmatprep.subr.mxu0 0.0
  %1661 = vmatpush1.msra.mxu0 %v1554
  %1662 = vmatprep.subr.mxu0 0.0
  %1663 = vmatpush1.msra.mxu0 %v1555
  %1664 = vmatprep.subr.mxu0 0.0
  %1665 = vmatpush1.msra.mxu0 %v1556
  %1666 = vmatprep.subr.mxu0 0.0
  %1667 = vmatpush1.msra.mxu0 %v1557
  %1668 = vmatprep.subr.mxu0 0.0
  %1669 = vmatpush1.msra.mxu0 %v1558
  %1670 = vmatprep.subr.mxu0 0.0
  %1671 = vmatpush1.msra.mxu0 %v1559
  %1672 = vmatprep.subr.mxu0 0.0
  %1673 = vmatpush1.msra.mxu0 %v1560
  %1674 = vmatprep.subr.mxu0 0.0
  %1675 = vmatpush1.msra.mxu0 %v1561
  %1676 = vmatprep.subr.mxu0 0.0
  %1677 = vmatpush1.msra.mxu0 %v1562
  %1678 = vmatprep.subr.mxu0 0.0
  %1679 = vmatpush1.msra.mxu0 %v1563
  %1680 = vmatprep.subr.mxu0 0.0
  %1681 = vmatpush1.msra.mxu0 %v1564
  %1682 = vmatprep.subr.mxu0 0.0
  %1683 = vmatpush1.msra.mxu0 %v1565
  %1684 = vmatprep.subr.mxu0 0.0
  %1685 = vmatpush1.msra.mxu0 %v1566
  %1686 = vmatprep.subr.mxu0 0.0
  %1687 = vmatpush1.msra.mxu0 %v1567
  %1688 = vmatprep.subr.mxu0 0.0
  %1689 = vmatpush1.msra.mxu0 %v1568
  %1690 = vmatprep.subr.mxu0 0.0
  %1691 = vmatpush1.msra.mxu0 %v1569
  %1692 = vmatprep.subr.mxu0 0.0
  %1693 = vmatpush1.msra.mxu0 %v1570
  %1694 = vmatprep.subr.mxu0 0.0
  %1695 = vmatpush1.msra.mxu0 %v1571
  %1696 = vmatprep.subr.mxu0 0.0
  %1697 = vmatpush1.msra.mxu0 %v1572
  %1698 = vmatprep.subr.mxu0 0.0
  %1699 = vmatpush1.msra.mxu0 %v1573
  %1700 = vmatprep.subr.mxu0 0.0
  %1701 = vmatpush1.msra.mxu0 %v1574
  %1702 = vmatprep.subr.mxu0 0.0
  %1703 = vmatpush1.msra.mxu0 %v1575
  %1704 = vmatprep.subr.mxu0 0.0
  %1705 = vmatpush1.msra.mxu0 %v1576
  %1706 = vmatprep.subr.mxu0 0.0
  %1707 = vmatpush1.msra.mxu0 %v1577
  %1708 = vmatprep.subr.mxu0 0.0
  %1709 = vmatpush1.msra.mxu0 %v1578
  %1710 = vmatprep.subr.mxu0 0.0
  %1711 = vmatpush1.msra.mxu0 %v1579
  %1712 = vmatprep.subr.mxu0 0.0
  %1713 = vmatpush1.msra.mxu0 %v1580
  %1714 = vmatprep.subr.mxu0 0.0
  %1715 = vmatpush1.msra.mxu0 0.0
  %1716 = vmatprep.subr.mxu0 0.0
  %1717 = vmatpush1.msra.mxu0 0.0
  %1718 = vmatprep.mubr.f32.mxu0 %v1583
  %1719 = vmatmul.mubr.f32.gmra.mrb[0].mxu0 %v1503
  %v1720 = vpop.f32.mrb[0].mxu0
  %v1721 = vadd.f32 0.0, %v1720
  %v1722 = vpop.f32.mrb[0].mxu0
  %1723 = vmatprep.mubr.f32.mxu0 %v1586
  %1724 = vmatmul.mubr.f32.gmra.mrb[0].mxu0 %v1505
  %v1725 = vpop.f32.mrb[0].mxu0
  %v1726 = vadd.f32 0.0, %v1725
  %v1727 = vpop.f32.mrb[0].mxu0
  %1728 = vmatprep.mubr.f32.mxu0 %v1589
  %1729 = vmatmul.mubr.f32.gmra.mrb[0].mxu0 %v1507
  %v1730 = vpop.f32.mrb[0].mxu0
  %v1731 = vadd.f32 0.0, %v1730
  %v1732 = vpop.f32.mrb[0].mxu0
  %1733 = vmatprep.mubr.f32.mxu0 %v1592
  %1734 = vmatmul.mubr.f32.gmra.mrb[0].mxu0 %v1509
  %v1735 = vpop.f32.mrb[0].mxu0
  %v1736 = vadd.f32 0.0, %v1735
  %v1737 = vpop.f32.mrb[0].mxu0
  %1738 = vmatprep.mubr.f32.mxu0 %v1595
  %1739 = vmatmul.mubr.f32.gmra.mrb[0].mxu0 %v1511
  %v1740 = vpop.f32.mrb[0].mxu0
  %v1741 = vadd.f32 0.0, %v1740
  %v1742 = vpop.f32.mrb[0].mxu0
  %1743 = vmatprep.mubr.f32.mxu0 %v1598
  %1744 = vmatmul.mubr.f32.gmra.mrb[0].mxu0 %v1513
  %v1745 = vpop.f32.mrb[0].mxu0
  %v1746 = vadd.f32 0.0, %v1745
  %v1747 = vpop.f32.mrb[0].mxu0
  %1748 = vmatprep.mubr.f32.mxu0 %v1601
  %1749 = vmatmul.mubr.f32.gmra.mrb[0].mxu0 %v1515
  %v1750 = vpop.f32.mrb[0].mxu0
  %v1751 = vadd.f32 0.0, %v1750
  %v1752 = vpop.f32.mrb[0].mxu0
  %1753 = vmatprep.mubr.f32.mxu0 %v1604
  %1754 = vmatmul.mubr.f32.gmra.mrb[0].mxu0 %v1517
  %v1755 = vpop.f32.mrb[0].mxu0
  %v1756 = vadd.f32 0.0, %v1755
  %v1757 = vpop.f32.mrb[0].mxu0
  %1758 = vmatprep.mubr.f32.mxu0 %v1607
  %1759 = vmatmul.mubr.f32.gmra.mrb[0].mxu0 %v1519
  %v1760 = vpop.f32.mrb[0].mxu0
  %v1761 = vadd.f32 0.0, %v1760
  %v1762 = vpop.f32.mrb[0].mxu0
  %1763 = vmatprep.mubr.f32.mxu0 %v1610
  %1764 = vmatmul.mubr.f32.gmra.mrb[0].mxu0 %v1521
  %v1765 = vpop.f32.mrb[0].mxu0
  %v1766 = vadd.f32 0.0, %v1765
  %v1767 = vpop.f32.mrb[0].mxu0
  %1768 = vmatprep.mubr.f32.mxu0 %v1613
  %1769 = vmatmul.mubr.f32.gmra.mrb[0].mxu0 %v1523
  %v1770 = vpop.f32.mrb[0].mxu0
  %v1771 = vadd.f32 0.0, %v1770
  %v1772 = vpop.f32.mrb[0].mxu0
  %1773 = vmatprep.mubr.f32.mxu0 %v1616
  %1774 = vmatmul.mubr.f32.gmra.mrb[0].mxu0 %v1525
  %v1775 = vpop.f32.mrb[0].mxu0
  %v1776 = vadd.f32 0.0, %v1775
  %v1777 = vpop.f32.mrb[0].mxu0
  %1778 = vmatprep.mubr.f32.mxu0 %v1619
  %1779 = vmatmul.mubr.f32.gmra.mrb[0].mxu0 %v1527
  %v1780 = vpop.f32.mrb[0].mxu0
  %v1781 = vadd.f32 0.0, %v1780
  %v1782 = vpop.f32.mrb[0].mxu0
  %1783 = vmatprep.mubr.f32.mxu0 %v1622
  %1784 = vmatmul.mubr.f32.gmra.mrb[0].mxu0 %v1529
  %v1785 = vpop.f32.mrb[0].mxu0
  %v1786 = vadd.f32 0.0, %v1785
  %v1787 = vpop.f32.mrb[0].mxu0
  %1788 = vmatprep.mubr.f32.mxu0 %v1625
  %1789 = vmatmul.mubr.f32.gmra.mrb[0].mxu0 %v1531
  %v1790 = vpop.f32.mrb[0].mxu0
  %v1791 = vadd.f32 0.0, %v1790
  %v1792 = vpop.f32.mrb[0].mxu0
  %1793 = vmatprep.mubr.f32.mxu0 %v1628
  %1794 = vmatmul.mubr.f32.gmra.mrb[0].mxu0 %v1533
  %v1795 = vpop.f32.mrb[0].mxu0
  %v1796 = vadd.f32 0.0, %v1795
  %v1797 = vpop.f32.mrb[0].mxu0
  %1798 = vmatprep.mubr.f32.mxu0 %v1631
  %1799 = vmatmul.mubr.f32.gmra.mrb[0].mxu0 %v1535
  %v1800 = vpop.f32.mrb[0].mxu0
  %v1801 = vadd.f32 0.0, %v1800
  %v1802 = vpop.f32.mrb[0].mxu0
  %1803 = vmatprep.mubr.f32.mxu0 %v1634
  %1804 = vmatmul.mubr.f32.gmra.mrb[0].mxu0 %v1537
  %v1805 = vpop.f32.mrb[0].mxu0
  %v1806 = vadd.f32 0.0, %v1805
  %v1807 = vpop.f32.mrb[0].mxu0
  %1808 = vmatprep.mubr.f32.mxu0 %v1637
  %1809 = vmatmul.mubr.f32.gmra.mrb[0].mxu0 %v1539
  %v1810 = vpop.f32.mrb[0].mxu0
  %v1811 = vadd.f32 0.0, %v1810
  %v1812 = vpop.f32.mrb[0].mxu0
  %1813 = vmatprep.mubr.f32.mxu0 %v1640
  %1814 = vmatmul.mubr.f32.gmra.mrb[0].mxu0 %v1541
  %v1815 = vpop.f32.mrb[0].mxu0
  %v1816 = vadd.f32 0.0, %v1815
  %v1817 = vpop.f32.mrb[0].mxu0
  %1818 = vmatprep.mubr.f32.mxu0 %v1643
  %1819 = vmatmul.mubr.f32.gmra.mrb[0].mxu0 %v1543
  %v1820 = vpop.f32.mrb[0].mxu0
  %v1821 = vadd.f32 0.0, %v1820
  %v1822 = vpop.f32.mrb[0].mxu0
  %1823 = vmatprep.mubr.f32.mxu0 %v1646
  %1824 = vmatmul.mubr.f32.gmra.mrb[0].mxu0 %v1545
  %v1825 = vpop.f32.mrb[0].mxu0
  %v1826 = vadd.f32 0.0, %v1825
  %v1827 = vpop.f32.mrb[0].mxu0
  %1828 = vmatprep.mubr.f32.mxu0 %v1649
  %1829 = vmatmul.mubr.f32.gmra.mrb[0].mxu0 %v1547
  %v1830 = vpop.f32.mrb[0].mxu0
  %v1831 = vadd.f32 0.0, %v1830
  %v1832 = vpop.f32.mrb[0].mxu0
  %1833 = vmatprep.mubr.f32.mxu0 %v1652
  %1834 = vmatmul.mubr.f32.gmra.mrb[0].mxu0 %v1549
  %v1835 = vpop.f32.mrb[0].mxu0
  %v1836 = vadd.f32 0.0, %v1835
  %v1837 = vpop.f32.mrb[0].mxu0
  %1838 = vdwg.mxu0
  %v1839 = vld [vmem:[%s3] sm:$0xff]
  %v1840 = vld [vmem:[%s3 + $0x8] sm:$0xff]
  %v1841 = vld [vmem:[%s3 + $0x10] sm:$0xff]
  %v1842 = vld [vmem:[%s3 + $0x18] sm:$0xff]
  %v1843 = vld [vmem:[%s3 + $0x20] sm:$0xff]
  %v1844 = vld [vmem:[%s3 + $0x28] sm:$0xff]
  %v1845 = vld [vmem:[%s3 + $0x30] sm:$0xff]
  %v1846 = vld [vmem:[%s3 + $0x38] sm:$0xff]
  %v1847 = vld [vmem:[%s3 + $0x40] sm:$0xff]
  %v1848 = vld [vmem:[%s3 + $0x48] sm:$0xff]
  %v1849 = vld [vmem:[%s3 + $0x50] sm:$0xff]
  %v1850 = vld [vmem:[%s3 + $0x58] sm:$0xff]
  %v1851 = vld [vmem:[%s3 + $0x60] sm:$0xff]
  %v1852 = vld [vmem:[%s3 + $0x68] sm:$0xff]
  %v1853 = vld [vmem:[%s3 + $0x70] sm:$0xff]
  %v1854 = vld [vmem:[%s3 + $0x78] sm:$0xff]
  %v1855 = vld [vmem:[%s3 + $0x80] sm:$0xff]
  %v1856 = vld [vmem:[%s3 + $0x88] sm:$0xff]
  %v1857 = vld [vmem:[%s3 + $0x90] sm:$0xff]
  %v1858 = vld [vmem:[%s3 + $0x98] sm:$0xff]
  %v1859 = vld [vmem:[%s3 + $0xa0] sm:$0xff]
  %v1860 = vld [vmem:[%s3 + $0xa8] sm:$0xff]
  %v1861 = vld [vmem:[%s3 + $0xb0] sm:$0xff]
  %v1862 = vld [vmem:[%s3 + $0xb8] sm:$0xff]
  %v1863 = vld [vmem:[%s3 + $0xc0] sm:$0xff]
  %v1864 = vld [vmem:[%s3 + $0xc8] sm:$0xff]
  %v1865 = vld [vmem:[%s3 + $0xd0] sm:$0xff]
  %v1866 = vld [vmem:[%s3 + $0xd8] sm:$0xff]
  %v1867 = vld [vmem:[%s3 + $0xe0] sm:$0xff]
  %v1868 = vld [vmem:[%s3 + $0xe8] sm:$0xff]
  %1869 = vmatprep.subr.mxu0 0.0
  %1870 = vmatpush1.msra.mxu0 %v1839
  %1871 = vmatprep.subr.mxu0 0.0
  %1872 = vmatpush1.msra.mxu0 %v1840
  %1873 = vmatprep.subr.mxu0 0.0
  %1874 = vmatpush1.msra.mxu0 %v1841
  %1875 = vmatprep.subr.mxu0 0.0
  %1876 = vmatpush1.msra.mxu0 %v1842
  %1877 = vmatprep.subr.mxu0 0.0
  %1878 = vmatpush1.msra.mxu0 %v1843
  %1879 = vmatprep.subr.mxu0 0.0
  %1880 = vmatpush1.msra.mxu0 %v1844
  %1881 = vmatprep.subr.mxu0 0.0
  %1882 = vmatpush1.msra.mxu0 %v1845
  %1883 = vmatprep.subr.mxu0 0.0
  %1884 = vmatpush1.msra.mxu0 %v1846
  %1885 = vmatprep.subr.mxu0 0.0
  %1886 = vmatpush1.msra.mxu0 %v1847
  %1887 = vmatprep.subr.mxu0 0.0
  %1888 = vmatpush1.msra.mxu0 %v1848
  %1889 = vmatprep.subr.mxu0 0.0
  %1890 = vmatpush1.msra.mxu0 %v1849
  %1891 = vmatprep.subr.mxu0 0.0
  %1892 = vmatpush1.msra.mxu0 %v1850
  %1893 = vmatprep.subr.mxu0 0.0
  %1894 = vmatpush1.msra.mxu0 %v1851
  %1895 = vmatprep.subr.mxu0 0.0
  %1896 = vmatpush1.msra.mxu0 %v1852
  %1897 = vmatprep.subr.mxu0 0.0
  %1898 = vmatpush1.msra.mxu0 %v1853
  %1899 = vmatprep.subr.mxu0 0.0
  %1900 = vmatpush1.msra.mxu0 %v1854
  %1901 = vmatprep.subr.mxu0 0.0
  %1902 = vmatpush1.msra.mxu0 %v1855
  %1903 = vmatprep.subr.mxu0 0.0
  %1904 = vmatpush1.msra.mxu0 %v1856
  %1905 = vmatprep.subr.mxu0 0.0
  %1906 = vmatpush1.msra.mxu0 %v1857
  %1907 = vmatprep.subr.mxu0 0.0
  %1908 = vmatpush1.msra.mxu0 %v1858
  %1909 = vmatprep.subr.mxu0 0.0
  %1910 = vmatpush1.msra.mxu0 %v1859
  %1911 = vmatprep.subr.mxu0 0.0
  %1912 = vmatpush1.msra.mxu0 %v1860
  %1913 = vmatprep.subr.mxu0 0.0
  %1914 = vmatpush1.msra.mxu0 %v1861
  %1915 = vmatprep.subr.mxu0 0.0
  %1916 = vmatpush1.msra.mxu0 %v1862
  %1917 = vmatprep.subr.mxu0 0.0
  %1918 = vmatpush1.msra.mxu0 %v1863
  %1919 = vmatprep.subr.mxu0 0.0
  %1920 = vmatpush1.msra.mxu0 %v1864
  %1921 = vmatprep.subr.mxu0 0.0
  %1922 = vmatpush1.msra.mxu0 %v1865
  %1923 = vmatprep.subr.mxu0 0.0
  %1924 = vmatpush1.msra.mxu0 %v1866
  %1925 = vmatprep.subr.mxu0 0.0
  %1926 = vmatpush1.msra.mxu0 %v1867
  %1927 = vmatprep.subr.mxu0 0.0
  %1928 = vmatpush1.msra.mxu0 %v1868
  %1929 = vmatprep.subr.mxu0 0.0
  %1930 = vmatpush1.msra.mxu0 0.0
  %1931 = vmatprep.subr.mxu0 0.0
  %1932 = vmatpush1.msra.mxu0 0.0
  %1933 = vmatprep.mubr.f32.mxu0 %v1583
  %1934 = vmatmul.mubr.f32.gmra.mrb[0].mxu0 %v1503
  %v1935 = vpop.f32.mrb[0].mxu0
  %v1936 = vadd.f32 0.0, %v1935
  %v1937 = vpop.f32.mrb[0].mxu0
  %1938 = vmatprep.mubr.f32.mxu0 %v1586
  %1939 = vmatmul.mubr.f32.gmra.mrb[0].mxu0 %v1505
  %v1940 = vpop.f32.mrb[0].mxu0
  %v1941 = vadd.f32 0.0, %v1940
  %v1942 = vpop.f32.mrb[0].mxu0
  %1943 = vmatprep.mubr.f32.mxu0 %v1589
  %1944 = vmatmul.mubr.f32.gmra.mrb[0].mxu0 %v1507
  %v1945 = vpop.f32.mrb[0].mxu0
  %v1946 = vadd.f32 0.0, %v1945
  %v1947 = vpop.f32.mrb[0].mxu0
  %1948 = vmatprep.mubr.f32.mxu0 %v1592
  %1949 = vmatmul.mubr.f32.gmra.mrb[0].mxu0 %v1509
  %v1950 = vpop.f32.mrb[0].mxu0
  %v1951 = vadd.f32 0.0, %v1950
  %v1952 = vpop.f32.mrb[0].mxu0
  %1953 = vmatprep.mubr.f32.mxu0 %v1595
  %1954 = vmatmul.mubr.f32.gmra.mrb[0].mxu0 %v1511
  %v1955 = vpop.f32.mrb[0].mxu0
  %v1956 = vadd.f32 0.0, %v1955
  %v1957 = vpop.f32.mrb[0].mxu0
  %1958 = vmatprep.mubr.f32.mxu0 %v1598
  %1959 = vmatmul.mubr.f32.gmra.mrb[0].mxu0 %v1513
  %v1960 = vpop.f32.mrb[0].mxu0
  %v1961 = vadd.f32 0.0, %v1960
  %v1962 = vpop.f32.mrb[0].mxu0
  %1963 = vmatprep.mubr.f32.mxu0 %v1601
  %1964 = vmatmul.mubr.f32.gmra.mrb[0].mxu0 %v1515
  %v1965 = vpop.f32.mrb[0].mxu0
  %v1966 = vadd.f32 0.0, %v1965
  %v1967 = vpop.f32.mrb[0].mxu0
  %1968 = vmatprep.mubr.f32.mxu0 %v1604
  %1969 = vmatmul.mubr.f32.gmra.mrb[0].mxu0 %v1517
  %v1970 = vpop.f32.mrb[0].mxu0
  %v1971 = vadd.f32 0.0, %v1970
  %v1972 = vpop.f32.mrb[0].mxu0
  %1973 = vmatprep.mubr.f32.mxu0 %v1607
  %1974 = vmatmul.mubr.f32.gmra.mrb[0].mxu0 %v1519
  %v1975 = vpop.f32.mrb[0].mxu0
  %v1976 = vadd.f32 0.0, %v1975
  %v1977 = vpop.f32.mrb[0].mxu0
  %1978 = vmatprep.mubr.f32.mxu0 %v1610
  %1979 = vmatmul.mubr.f32.gmra.mrb[0].mxu0 %v1521
  %v1980 = vpop.f32.mrb[0].mxu0
  %v1981 = vadd.f32 0.0, %v1980
  %v1982 = vpop.f32.mrb[0].mxu0
  %1983 = vmatprep.mubr.f32.mxu0 %v1613
  %1984 = vmatmul.mubr.f32.gmra.mrb[0].mxu0 %v1523
  %v1985 = vpop.f32.mrb[0].mxu0
  %v1986 = vadd.f32 0.0, %v1985
  %v1987 = vpop.f32.mrb[0].mxu0
  %1988 = vmatprep.mubr.f32.mxu0 %v1616
  %1989 = vmatmul.mubr.f32.gmra.mrb[0].mxu0 %v1525
  %v1990 = vpop.f32.mrb[0].mxu0
  %v1991 = vadd.f32 0.0, %v1990
  %v1992 = vpop.f32.mrb[0].mxu0
  %1993 = vmatprep.mubr.f32.mxu0 %v1619
  %1994 = vmatmul.mubr.f32.gmra.mrb[0].mxu0 %v1527
  %v1995 = vpop.f32.mrb[0].mxu0
  %v1996 = vadd.f32 0.0, %v1995
  %v1997 = vpop.f32.mrb[0].mxu0
  %1998 = vmatprep.mubr.f32.mxu0 %v1622
  %1999 = vmatmul.mubr.f32.gmra.mrb[0].mxu0 %v1529
  %v2000 = vpop.f32.mrb[0].mxu0
  %v2001 = vadd.f32 0.0, %v2000
  %v2002 = vpop.f32.mrb[0].mxu0
  %2003 = vmatprep.mubr.f32.mxu0 %v1625
  %2004 = vmatmul.mubr.f32.gmra.mrb[0].mxu0 %v1531
  %v2005 = vpop.f32.mrb[0].mxu0
  %v2006 = vadd.f32 0.0, %v2005
  %v2007 = vpop.f32.mrb[0].mxu0
  %2008 = vmatprep.mubr.f32.mxu0 %v1628
  %2009 = vmatmul.mubr.f32.gmra.mrb[0].mxu0 %v1533
  %v2010 = vpop.f32.mrb[0].mxu0
  %v2011 = vadd.f32 0.0, %v2010
  %v2012 = vpop.f32.mrb[0].mxu0
  %2013 = vmatprep.mubr.f32.mxu0 %v1631
  %2014 = vmatmul.mubr.f32.gmra.mrb[0].mxu0 %v1535
  %v2015 = vpop.f32.mrb[0].mxu0
  %v2016 = vadd.f32 0.0, %v2015
  %v2017 = vpop.f32.mrb[0].mxu0
  %2018 = vmatprep.mubr.f32.mxu0 %v1634
  %2019 = vmatmul.mubr.f32.gmra.mrb[0].mxu0 %v1537
  %v2020 = vpop.f32.mrb[0].mxu0
  %v2021 = vadd.f32 0.0, %v2020
  %v2022 = vpop.f32.mrb[0].mxu0
  %2023 = vmatprep.mubr.f32.mxu0 %v1637
  %2024 = vmatmul.mubr.f32.gmra.mrb[0].mxu0 %v1539
  %v2025 = vpop.f32.mrb[0].mxu0
  %v2026 = vadd.f32 0.0, %v2025
  %v2027 = vpop.f32.mrb[0].mxu0
  %2028 = vmatprep.mubr.f32.mxu0 %v1640
  %2029 = vmatmul.mubr.f32.gmra.mrb[0].mxu0 %v1541
  %v2030 = vpop.f32.mrb[0].mxu0
  %v2031 = vadd.f32 0.0, %v2030
  %v2032 = vpop.f32.mrb[0].mxu0
  %2033 = vmatprep.mubr.f32.mxu0 %v1643
  %2034 = vmatmul.mubr.f32.gmra.mrb[0].mxu0 %v1543
  %v2035 = vpop.f32.mrb[0].mxu0
  %v2036 = vadd.f32 0.0, %v2035
  %v2037 = vpop.f32.mrb[0].mxu0
  %2038 = vmatprep.mubr.f32.mxu0 %v1646
  %2039 = vmatmul.mubr.f32.gmra.mrb[0].mxu0 %v1545
  %v2040 = vpop.f32.mrb[0].mxu0
  %v2041 = vadd.f32 0.0, %v2040
  %v2042 = vpop.f32.mrb[0].mxu0
  %2043 = vmatprep.mubr.f32.mxu0 %v1649
  %2044 = vmatmul.mubr.f32.gmra.mrb[0].mxu0 %v1547
  %v2045 = vpop.f32.mrb[0].mxu0
  %v2046 = vadd.f32 0.0, %v2045
  %v2047 = vpop.f32.mrb[0].mxu0
  %2048 = vmatprep.mubr.f32.mxu0 %v1652
  %2049 = vmatmul.mubr.f32.gmra.mrb[0].mxu0 %v1549
  %v2050 = vpop.f32.mrb[0].mxu0
  %v2051 = vadd.f32 0.0, %v2050
  %v2052 = vpop.f32.mrb[0].mxu0
  %2053 = vdwg.mxu0
  %v2054 = vmax.f32 %v1721, %v1936
  %v2055 = vmax.f32 %v1726, %v1941
  %v2056 = vmax.f32 %v1731, %v1946
  %v2057 = vmax.f32 %v1736, %v1951
  %v2058 = vmax.f32 %v1741, %v1956
  %v2059 = vmax.f32 %v1746, %v1961
  %v2060 = vmax.f32 %v1751, %v1966
  %v2061 = vmax.f32 %v1756, %v1971
  %v2062 = vmax.f32 %v1761, %v1976
  %v2063 = vmax.f32 %v1766, %v1981
  %v2064 = vmax.f32 %v1771, %v1986
  %v2065 = vmax.f32 %v1776, %v1991
  %v2066 = vmax.f32 %v1781, %v1996
  %v2067 = vmax.f32 %v1786, %v2001
  %v2068 = vmax.f32 %v1791, %v2006
  %v2069 = vmax.f32 %v1796, %v2011
  %v2070 = vmax.f32 %v1801, %v2016
  %v2071 = vmax.f32 %v1806, %v2021
  %v2072 = vmax.f32 %v1811, %v2026
  %v2073 = vmax.f32 %v1816, %v2031
  %v2074 = vmax.f32 %v1821, %v2036
  %v2075 = vmax.f32 %v1826, %v2041
  %v2076 = vmax.f32 %v1831, %v2046
  %v2077 = vmax.f32 %v1836, %v2051
  %v2078 = vmax.f32 %v2054, %v2055
  %v2079 = vmax.f32 %v2056, %v2057
  %v2080 = vmax.f32 %v2058, %v2059
  %v2081 = vmax.f32 %v2060, %v2061
  %v2082 = vmax.f32 %v2062, %v2063
  %v2083 = vmax.f32 %v2064, %v2065
  %v2084 = vmax.f32 %v2066, %v2067
  %v2085 = vmax.f32 %v2068, %v2069
  %v2086 = vmax.f32 %v2070, %v2071
  %v2087 = vmax.f32 %v2072, %v2073
  %v2088 = vmax.f32 %v2074, %v2075
  %v2089 = vmax.f32 %v2076, %v2077
  %v2090 = vld [vmem:[%s7] sm:$0x3]
  %v2091 = vadd.f32 %v2078, %v2079
  %v2092 = vadd.f32 %v2091, %v2080
  %v2093 = vadd.f32 %v2092, %v2081
  %v2094 = vadd.f32 %v2093, %v2082
  %v2095 = vadd.f32 %v2094, %v2083
  %v2096 = vadd.f32 %v2095, %v2084
  %v2097 = vadd.f32 %v2096, %v2085
  %v2098 = vadd.f32 %v2097, %v2086
  %v2099 = vadd.f32 %v2098, %v2087
  %v2100 = vadd.f32 %v2099, %v2088
  %v2101 = vadd.f32 %v2100, %v2089
  %v2102 = vlaneseq
  %v2103 = vshrl.u32 %v2102, 7
  %v2104 = vsub.s32 0, %v2103
  %v2105 = vrot.slane %v2090, %v2104
  %v2106 = vmul.f32 %v2101, %v2105
  %vm2107 = vcmask 982016
  %v2108 = vsel %vm2107, %v2106, 0.0
  %2109 = vadd.xlane.f32.xlu0 %v2108
  %v2110 = vpop.xlane.xlu0 %2109
  %v2111 = vmul.f32 %v2110, 0.0013888889
  %v2112 = vmul.f32 %v2111, %v2105
  %v2113 = vadd.f32 %v2112, 0.0
  %v2114 = vlaneseq
  %v2115 = vshrl.u32 %v2114, 7
  %v2116 = vsub.s32 1, %v2115
  %v2117 = vrot.slane %v2090, %v2116
  %v2118 = vmul.f32 %v2101, %v2117
  %v2119 = vsel %vm2107, %v2118, 0.0
  %2120 = vadd.xlane.f32.xlu0 %v2119
  %v2121 = vpop.xlane.xlu0 %2120
  %v2122 = vmul.f32 %v2121, 0.0013888889
  %v2123 = vmul.f32 %v2122, %v2117
  %v2124 = vadd.f32 %v2113, %v2123
  %v2125 = vsub.f32 %v2078, %v2124
  %v2126 = vsub.f32 %v2079, %v2124
  %v2127 = vsub.f32 %v2080, %v2124
  %v2128 = vsub.f32 %v2081, %v2124
  %v2129 = vsub.f32 %v2082, %v2124
  %v2130 = vsub.f32 %v2083, %v2124
  %v2131 = vsub.f32 %v2084, %v2124
  %v2132 = vsub.f32 %v2085, %v2124
  %v2133 = vsub.f32 %v2086, %v2124
  %v2134 = vsub.f32 %v2087, %v2124
  %v2135 = vsub.f32 %v2088, %v2124
  %v2136 = vsub.f32 %v2089, %v2124
  %v2137 = vmul.f32 %v2125, %v2125
  %v2138 = vmul.f32 %v2126, %v2126
  %v2139 = vadd.f32 %v2137, %v2138
  %v2140 = vmul.f32 %v2127, %v2127
  %v2141 = vadd.f32 %v2139, %v2140
  %v2142 = vmul.f32 %v2128, %v2128
  %v2143 = vadd.f32 %v2141, %v2142
  %v2144 = vmul.f32 %v2129, %v2129
  %v2145 = vadd.f32 %v2143, %v2144
  %v2146 = vmul.f32 %v2130, %v2130
  %v2147 = vadd.f32 %v2145, %v2146
  %v2148 = vmul.f32 %v2131, %v2131
  %v2149 = vadd.f32 %v2147, %v2148
  %v2150 = vmul.f32 %v2132, %v2132
  %v2151 = vadd.f32 %v2149, %v2150
  %v2152 = vmul.f32 %v2133, %v2133
  %v2153 = vadd.f32 %v2151, %v2152
  %v2154 = vmul.f32 %v2134, %v2134
  %v2155 = vadd.f32 %v2153, %v2154
  %v2156 = vmul.f32 %v2135, %v2135
  %v2157 = vadd.f32 %v2155, %v2156
  %v2158 = vmul.f32 %v2136, %v2136
  %v2159 = vadd.f32 %v2157, %v2158
  %v2160 = vmul.f32 %v2159, %v2105
  %v2161 = vsel %vm2107, %v2160, 0.0
  %2162 = vadd.xlane.f32.xlu0 %v2161
  %v2163 = vpop.xlane.xlu0 %2162
  %v2164 = vmul.f32 %v2163, 0.0013888889
  %v2165 = vmul.f32 %v2164, %v2105
  %v2166 = vadd.f32 %v2165, 0.0
  %v2167 = vmul.f32 %v2159, %v2117
  %v2168 = vsel %vm2107, %v2167, 0.0
  %2169 = vadd.xlane.f32.xlu0 %v2168
  %v2170 = vpop.xlane.xlu0 %2169
  %v2171 = vmul.f32 %v2170, 0.0013888889
  %v2172 = vmul.f32 %v2171, %v2117
  %v2173 = vadd.f32 %v2166, %v2172
  %v2174 = vadd.f32 %v2173, 1e-05
  %v2175 = vrsqrt.pop %v2174
  %v2176 = vld [vmem:[%s5] sm:$0x1]
  %v2177 = vld [vmem:[%s6] sm:$0x1]
  %v2178 = vmul.f32 %v2125, %v2175
  %v2180 = vlaneseq
  %v2181 = vshrl.u32 %v2180, 7
  %v2182 = vsub.s32 0, %v2181
  %v2183 = vrot.slane %v2176, %v2182
  %v2185 = vmul.f32 %v2178, %v2183
  %v2187 = vlaneseq
  %v2188 = vshrl.u32 %v2187, 7
  %v2189 = vsub.s32 0, %v2188
  %v2190 = vrot.slane %v2177, %v2189
  %v2192 = vadd.f32 %v2185, %v2190
  %vm2193 = vcmp.gt.f32.partialorder %v2192, 0.0
  %v2194 = vmul.f32 %v2192, 0.1
  %v2195 = vsel %vm2193, %v2192, %v2194
  %2196 = vst.msk [vmem:[#allocation2] sm:$0xff] %vm2107, %v2195
  %v2197 = vmul.f32 %v2126, %v2175
  %v2198 = vmul.f32 %v2197, %v2183
  %v2199 = vadd.f32 %v2198, %v2190
  %vm2200 = vcmp.gt.f32.partialorder %v2199, 0.0
  %v2201 = vmul.f32 %v2199, 0.1
  %v2202 = vsel %vm2200, %v2199, %v2201
  %s2203 = scalar_lea.vmem [#allocation2], 8
  %2204 = vst.msk [vmem:[%s2203] sm:$0xff] %vm2107, %v2202
  %v2205 = vmul.f32 %v2127, %v2175
  %v2206 = vmul.f32 %v2205, %v2183
  %v2207 = vadd.f32 %v2206, %v2190
  %vm2208 = vcmp.gt.f32.partialorder %v2207, 0.0
  %v2209 = vmul.f32 %v2207, 0.1
  %v2210 = vsel %vm2208, %v2207, %v2209
  %s2211 = scalar_lea.vmem [#allocation2], 16
  %2212 = vst.msk [vmem:[%s2211] sm:$0xff] %vm2107, %v2210
  %v2213 = vmul.f32 %v2128, %v2175
  %v2214 = vmul.f32 %v2213, %v2183
  %v2215 = vadd.f32 %v2214, %v2190
  %vm2216 = vcmp.gt.f32.partialorder %v2215, 0.0
  %v2217 = vmul.f32 %v2215, 0.1
  %v2218 = vsel %vm2216, %v2215, %v2217
  %s2219 = scalar_lea.vmem [#allocation2], 24
  %2220 = vst.msk [vmem:[%s2219] sm:$0xff] %vm2107, %v2218
  %v2221 = vmul.f32 %v2129, %v2175
  %v2222 = vmul.f32 %v2221, %v2183
  %v2223 = vadd.f32 %v2222, %v2190
  %vm2224 = vcmp.gt.f32.partialorder %v2223, 0.0
  %v2225 = vmul.f32 %v2223, 0.1
  %v2226 = vsel %vm2224, %v2223, %v2225
  %s2227 = scalar_lea.vmem [#allocation2], 32
  %2228 = vst.msk [vmem:[%s2227] sm:$0xff] %vm2107, %v2226
  %v2229 = vmul.f32 %v2130, %v2175
  %v2230 = vmul.f32 %v2229, %v2183
  %v2231 = vadd.f32 %v2230, %v2190
  %vm2232 = vcmp.gt.f32.partialorder %v2231, 0.0
  %v2233 = vmul.f32 %v2231, 0.1
  %v2234 = vsel %vm2232, %v2231, %v2233
  %s2235 = scalar_lea.vmem [#allocation2], 40
  %2236 = vst.msk [vmem:[%s2235] sm:$0xff] %vm2107, %v2234
  %v2237 = vmul.f32 %v2131, %v2175
  %v2238 = vmul.f32 %v2237, %v2183
  %v2239 = vadd.f32 %v2238, %v2190
  %vm2240 = vcmp.gt.f32.partialorder %v2239, 0.0
  %v2241 = vmul.f32 %v2239, 0.1
  %v2242 = vsel %vm2240, %v2239, %v2241
  %s2243 = scalar_lea.vmem [#allocation2], 48
  %2244 = vst.msk [vmem:[%s2243] sm:$0xff] %vm2107, %v2242
  %v2245 = vmul.f32 %v2132, %v2175
  %v2246 = vmul.f32 %v2245, %v2183
  %v2247 = vadd.f32 %v2246, %v2190
  %vm2248 = vcmp.gt.f32.partialorder %v2247, 0.0
  %v2249 = vmul.f32 %v2247, 0.1
  %v2250 = vsel %vm2248, %v2247, %v2249
  %s2251 = scalar_lea.vmem [#allocation2], 56
  %2252 = vst.msk [vmem:[%s2251] sm:$0xff] %vm2107, %v2250
  %v2253 = vmul.f32 %v2133, %v2175
  %v2254 = vmul.f32 %v2253, %v2183
  %v2255 = vadd.f32 %v2254, %v2190
  %vm2256 = vcmp.gt.f32.partialorder %v2255, 0.0
  %v2257 = vmul.f32 %v2255, 0.1
  %v2258 = vsel %vm2256, %v2255, %v2257
  %s2259 = scalar_lea.vmem [#allocation2], 64
  %2260 = vst.msk [vmem:[%s2259] sm:$0xff] %vm2107, %v2258
  %v2261 = vmul.f32 %v2134, %v2175
  %v2262 = vmul.f32 %v2261, %v2183
  %v2263 = vadd.f32 %v2262, %v2190
  %vm2264 = vcmp.gt.f32.partialorder %v2263, 0.0
  %v2265 = vmul.f32 %v2263, 0.1
  %v2266 = vsel %vm2264, %v2263, %v2265
  %s2267 = scalar_lea.vmem [#allocation2], 72
  %2268 = vst.msk [vmem:[%s2267] sm:$0xff] %vm2107, %v2266
  %v2269 = vmul.f32 %v2135, %v2175
  %v2270 = vmul.f32 %v2269, %v2183
  %v2271 = vadd.f32 %v2270, %v2190
  %vm2272 = vcmp.gt.f32.partialorder %v2271, 0.0
  %v2273 = vmul.f32 %v2271, 0.1
  %v2274 = vsel %vm2272, %v2271, %v2273
  %s2275 = scalar_lea.vmem [#allocation2], 80
  %2276 = vst.msk [vmem:[%s2275] sm:$0xff] %vm2107, %v2274
  %v2277 = vmul.f32 %v2136, %v2175
  %v2278 = vmul.f32 %v2277, %v2183
  %v2279 = vadd.f32 %v2278, %v2190
  %vm2280 = vcmp.gt.f32.partialorder %v2279, 0.0
  %v2281 = vmul.f32 %v2279, 0.1
  %v2282 = vsel %vm2280, %v2279, %v2281
  %s2283 = scalar_lea.vmem [#allocation2], 88
  %2284 = vst.msk [vmem:[%s2283] sm:$0xff] %vm2107, %v2282
  %v2285 = vld [vmem:[#allocation2] sm:$0xff]
  %v2286 = vld [vmem:[#allocation2 + $0x8] sm:$0xff]
  %v2287 = vld [vmem:[#allocation2 + $0x10] sm:$0xff]
  %v2288 = vld [vmem:[#allocation2 + $0x18] sm:$0xff]
  %v2289 = vld [vmem:[#allocation2 + $0x20] sm:$0xff]
  %v2290 = vld [vmem:[#allocation2 + $0x28] sm:$0xff]
  %v2291 = vld [vmem:[#allocation2 + $0x30] sm:$0xff]
  %v2292 = vld [vmem:[#allocation2 + $0x38] sm:$0xff]
  %v2293 = vpack.c.bf16 %v2286, %v2285
  %v2294 = vpack.c.bf16 %v2288, %v2287
  %v2295 = vpack.c.bf16 %v2290, %v2289
  %v2296 = vpack.c.bf16 %v2292, %v2291
  %v2297 = vld [vmem:[%s8] sm:$0xff]
  %v2298 = vld [vmem:[%s8 + $0x8] sm:$0xff]
  %v2299 = vld [vmem:[%s8 + $0x10] sm:$0xff]
  %v2300 = vld [vmem:[%s8 + $0x18] sm:$0xff]
  %v2301 = vld [vmem:[%s8 + $0x20] sm:$0xff]
  %v2302 = vld [vmem:[%s8 + $0x28] sm:$0xff]
  %v2303 = vld [vmem:[%s8 + $0x30] sm:$0xff]
  %v2304 = vld [vmem:[%s8 + $0x38] sm:$0xff]
  %v2305 = vld [vmem:[%s8 + $0x40] sm:$0xff]
  %v2306 = vld [vmem:[%s8 + $0x48] sm:$0xff]
  %v2307 = vld [vmem:[%s8 + $0x50] sm:$0xff]
  %v2308 = vld [vmem:[%s8 + $0x58] sm:$0xff]
  %v2309 = vld [vmem:[%s8 + $0x60] sm:$0xff]
  %v2310 = vld [vmem:[%s8 + $0x68] sm:$0xff]
  %v2311 = vld [vmem:[%s8 + $0x70] sm:$0xff]
  %v2312 = vld [vmem:[%s2203] sm:$0xff]
  %v2313 = vld [vmem:[%s2203 + $0x8] sm:$0xff]
  %v2314 = vld [vmem:[%s2203 + $0x10] sm:$0xff]
  %v2315 = vld [vmem:[%s2203 + $0x18] sm:$0xff]
  %v2316 = vld [vmem:[%s2203 + $0x20] sm:$0xff]
  %v2317 = vld [vmem:[%s2203 + $0x28] sm:$0xff]
  %v2318 = vld [vmem:[%s2203 + $0x30] sm:$0xff]
  %v2319 = vld [vmem:[%s2203 + $0x38] sm:$0xff]
  %v2320 = vpack.c.bf16 %v2313, %v2312
  %v2321 = vpack.c.bf16 %v2315, %v2314
  %v2322 = vpack.c.bf16 %v2317, %v2316
  %v2323 = vpack.c.bf16 %v2319, %v2318
  %s2324 = scalar_lea.vmem %s8, 120
  %v2325 = vld [vmem:[%s2324] sm:$0xff]
  %v2326 = vld [vmem:[%s2324 + $0x8] sm:$0xff]
  %v2327 = vld [vmem:[%s2324 + $0x10] sm:$0xff]
  %v2328 = vld [vmem:[%s2324 + $0x18] sm:$0xff]
  %v2329 = vld [vmem:[%s2324 + $0x20] sm:$0xff]
  %v2330 = vld [vmem:[%s2324 + $0x28] sm:$0xff]
  %v2331 = vld [vmem:[%s2324 + $0x30] sm:$0xff]
  %v2332 = vld [vmem:[%s2324 + $0x38] sm:$0xff]
  %v2333 = vld [vmem:[%s2324 + $0x40] sm:$0xff]
  %v2334 = vld [vmem:[%s2324 + $0x48] sm:$0xff]
  %v2335 = vld [vmem:[%s2324 + $0x50] sm:$0xff]
  %v2336 = vld [vmem:[%s2324 + $0x58] sm:$0xff]
  %v2337 = vld [vmem:[%s2324 + $0x60] sm:$0xff]
  %v2338 = vld [vmem:[%s2324 + $0x68] sm:$0xff]
  %v2339 = vld [vmem:[%s2324 + $0x70] sm:$0xff]
  %v2355 = vunpack.c.l.b16 %v2325
  %v2356 = vunpack.c.h.b16 %v2325
  %v2357 = vunpack.c.l.b16 %v2326
  %v2358 = vunpack.c.h.b16 %v2326
  %v2359 = vunpack.c.l.b16 %v2327
  %v2360 = vunpack.c.h.b16 %v2327
  %v2361 = vunpack.c.l.b16 %v2328
  %v2362 = vunpack.c.h.b16 %v2328
  %v2363 = vunpack.c.l.b16 %v2329
  %v2364 = vunpack.c.h.b16 %v2329
  %v2365 = vunpack.c.l.b16 %v2330
  %v2366 = vunpack.c.h.b16 %v2330
  %v2367 = vunpack.c.l.b16 %v2331
  %v2368 = vunpack.c.h.b16 %v2331
  %v2369 = vunpack.c.l.b16 %v2332
  %v2370 = vunpack.c.h.b16 %v2332
  %v2371 = vunpack.c.l.b16 %v2333
  %v2372 = vunpack.c.h.b16 %v2333
  %v2373 = vunpack.c.l.b16 %v2334
  %v2374 = vunpack.c.h.b16 %v2334
  %v2375 = vunpack.c.l.b16 %v2335
  %v2376 = vunpack.c.h.b16 %v2335
  %v2377 = vunpack.c.l.b16 %v2336
  %v2378 = vunpack.c.h.b16 %v2336
  %v2379 = vunpack.c.l.b16 %v2337
  %v2380 = vunpack.c.h.b16 %v2337
  %v2381 = vunpack.c.l.b16 %v2338
  %v2382 = vunpack.c.h.b16 %v2338
  %v2383 = vunpack.c.l.b16 %v2339
  %v2384 = vunpack.c.h.b16 %v2339
  %v2385 = vpack.c.b16 %v2357, %v2355
  %v2386 = vpack.c.b16 %v2358, %v2356
  %v2387 = vpack.c.b16 %v2361, %v2359
  %v2388 = vpack.c.b16 %v2362, %v2360
  %v2389 = vpack.c.b16 %v2365, %v2363
  %v2390 = vpack.c.b16 %v2366, %v2364
  %v2391 = vpack.c.b16 %v2369, %v2367
  %v2392 = vpack.c.b16 %v2370, %v2368
  %v2393 = vpack.c.b16 %v2373, %v2371
  %v2394 = vpack.c.b16 %v2374, %v2372
  %v2395 = vpack.c.b16 %v2377, %v2375
  %v2396 = vpack.c.b16 %v2378, %v2376
  %v2397 = vpack.c.b16 %v2381, %v2379
  %v2398 = vpack.c.b16 %v2382, %v2380
  %v2399 = vpack.c.b16 %v2383, %v2383
  %v2400 = vpack.c.b16 %v2384, %v2384
  %v2416 = vsel %vm2107, %v2320, 0
  %v2419 = vsel %vm2107, %v2321, 0
  %v2422 = vsel %vm2107, %v2322, 0
  %v2425 = vsel %vm2107, %v2323, 0
  %vm2427 = vcmask 1043456
  %v2429 = vsel %vm2427, %v2399, 0
  %v2432 = vsel %vm2427, %v2400, 0
  %2434 = vmatprep.subr.bf16.mxu0 %v2386
  %2435 = vmatpush1.bf16.msra.mxu0 %v2385
  %2436 = vmatprep.subr.bf16.mxu0 %v2388
  %2437 = vmatpush1.bf16.msra.mxu0 %v2387
  %2438 = vmatprep.subr.bf16.mxu0 %v2390
  %2439 = vmatpush1.bf16.msra.mxu0 %v2389
  %2440 = vmatprep.subr.bf16.mxu0 %v2392
  %2441 = vmatpush1.bf16.msra.mxu0 %v2391
  %2442 = vmatprep.subr.bf16.mxu0 %v2394
  %2443 = vmatpush1.bf16.msra.mxu0 %v2393
  %2444 = vmatprep.subr.bf16.mxu0 %v2396
  %2445 = vmatpush1.bf16.msra.mxu0 %v2395
  %2446 = vmatprep.subr.bf16.mxu0 %v2398
  %2447 = vmatpush1.bf16.msra.mxu0 %v2397
  %2448 = vmatprep.subr.bf16.mxu0 %v2432
  %2449 = vmatpush1.bf16.msra.mxu0 %v2429
  %2450 = vmatprep.subr.bf16.mxu0 0
  %2451 = vmatpush1.bf16.msra.mxu0 0
  %2452 = vmatprep.subr.bf16.mxu0 0
  %2453 = vmatpush1.bf16.msra.mxu0 0
  %2454 = vmatprep.subr.bf16.mxu0 0
  %2455 = vmatpush1.bf16.msra.mxu0 0
  %2456 = vmatprep.subr.bf16.mxu0 0
  %2457 = vmatpush1.bf16.msra.mxu0 0
  %2458 = vmatprep.subr.bf16.mxu0 0
  %2459 = vmatpush1.bf16.msra.mxu0 0
  %2460 = vmatprep.subr.bf16.mxu0 0
  %2461 = vmatpush1.bf16.msra.mxu0 0
  %2462 = vmatprep.subr.bf16.mxu0 0
  %2463 = vmatpush1.bf16.msra.mxu0 0
  %2464 = vmatprep.subr.bf16.mxu0 0
  %2465 = vmatpush1.bf16.msra.mxu0 0
  %2466 = vmatprep.mubr.bf16.mxu0 0
  %2467 = vmatmul.mubr.bf16.gmra.mrb[0].mxu0 %v2416
  %v2468 = vpop.f32.mrb[0].mxu0
  %v2469 = vadd.f32 0.0, %v2468
  %v2470 = vpop.f32.mrb[0].mxu0
  %v2471 = vadd.f32 0.0, %v2470
  %v2472 = vpop.f32.mrb[0].mxu0
  %v2473 = vadd.f32 0.0, %v2472
  %v2474 = vpop.f32.mrb[0].mxu0
  %v2475 = vadd.f32 0.0, %v2474
  %2476 = vmatprep.mubr.bf16.mxu0 0
  %2477 = vmatmul.mubr.bf16.gmra.mrb[0].mxu0 %v2419
  %v2478 = vpop.f32.mrb[0].mxu0
  %v2479 = vadd.f32 0.0, %v2478
  %v2480 = vpop.f32.mrb[0].mxu0
  %v2481 = vadd.f32 0.0, %v2480
  %v2482 = vpop.f32.mrb[0].mxu0
  %v2483 = vadd.f32 0.0, %v2482
  %v2484 = vpop.f32.mrb[0].mxu0
  %v2485 = vadd.f32 0.0, %v2484
  %2486 = vmatprep.mubr.bf16.mxu0 0
  %2487 = vmatmul.mubr.bf16.gmra.mrb[0].mxu0 %v2422
  %v2488 = vpop.f32.mrb[0].mxu0
  %v2489 = vadd.f32 0.0, %v2488
  %v2490 = vpop.f32.mrb[0].mxu0
  %v2491 = vadd.f32 0.0, %v2490
  %v2492 = vpop.f32.mrb[0].mxu0
  %v2493 = vadd.f32 0.0, %v2492
  %v2494 = vpop.f32.mrb[0].mxu0
  %v2495 = vadd.f32 0.0, %v2494
  %2496 = vmatprep.mubr.bf16.mxu0 0
  %2497 = vmatmul.mubr.bf16.gmra.mrb[0].mxu0 %v2425
  %v2498 = vpop.f32.mrb[0].mxu0
  %v2499 = vadd.f32 0.0, %v2498
  %v2500 = vpop.f32.mrb[0].mxu0
  %v2501 = vadd.f32 0.0, %v2500
  %v2502 = vpop.f32.mrb[0].mxu0
  %v2503 = vadd.f32 0.0, %v2502
  %v2504 = vpop.f32.mrb[0].mxu0
  %v2505 = vadd.f32 0.0, %v2504
  %2506 = vdwg.mxu0
  %v2522 = vunpack.c.l.b16 %v2297
  %v2523 = vunpack.c.h.b16 %v2297
  %v2524 = vunpack.c.l.b16 %v2298
  %v2525 = vunpack.c.h.b16 %v2298
  %v2526 = vunpack.c.l.b16 %v2299
  %v2527 = vunpack.c.h.b16 %v2299
  %v2528 = vunpack.c.l.b16 %v2300
  %v2529 = vunpack.c.h.b16 %v2300
  %v2530 = vunpack.c.l.b16 %v2301
  %v2531 = vunpack.c.h.b16 %v2301
  %v2532 = vunpack.c.l.b16 %v2302
  %v2533 = vunpack.c.h.b16 %v2302
  %v2534 = vunpack.c.l.b16 %v2303
  %v2535 = vunpack.c.h.b16 %v2303
  %v2536 = vunpack.c.l.b16 %v2304
  %v2537 = vunpack.c.h.b16 %v2304
  %v2538 = vunpack.c.l.b16 %v2305
  %v2539 = vunpack.c.h.b16 %v2305
  %v2540 = vunpack.c.l.b16 %v2306
  %v2541 = vunpack.c.h.b16 %v2306
  %v2542 = vunpack.c.l.b16 %v2307
  %v2543 = vunpack.c.h.b16 %v2307
  %v2544 = vunpack.c.l.b16 %v2308
  %v2545 = vunpack.c.h.b16 %v2308
  %v2546 = vunpack.c.l.b16 %v2309
  %v2547 = vunpack.c.h.b16 %v2309
  %v2548 = vunpack.c.l.b16 %v2310
  %v2549 = vunpack.c.h.b16 %v2310
  %v2550 = vunpack.c.l.b16 %v2311
  %v2551 = vunpack.c.h.b16 %v2311
  %v2552 = vpack.c.b16 %v2524, %v2522
  %v2553 = vpack.c.b16 %v2525, %v2523
  %v2554 = vpack.c.b16 %v2528, %v2526
  %v2555 = vpack.c.b16 %v2529, %v2527
  %v2556 = vpack.c.b16 %v2532, %v2530
  %v2557 = vpack.c.b16 %v2533, %v2531
  %v2558 = vpack.c.b16 %v2536, %v2534
  %v2559 = vpack.c.b16 %v2537, %v2535
  %v2560 = vpack.c.b16 %v2540, %v2538
  %v2561 = vpack.c.b16 %v2541, %v2539
  %v2562 = vpack.c.b16 %v2544, %v2542
  %v2563 = vpack.c.b16 %v2545, %v2543
  %v2564 = vpack.c.b16 %v2548, %v2546
  %v2565 = vpack.c.b16 %v2549, %v2547
  %v2566 = vpack.c.b16 %v2550, %v2550
  %v2567 = vpack.c.b16 %v2551, %v2551
  %v2583 = vsel %vm2107, %v2293, 0
  %v2586 = vsel %vm2107, %v2294, 0
  %v2589 = vsel %vm2107, %v2295, 0
  %v2592 = vsel %vm2107, %v2296, 0
  %v2595 = vsel %vm2427, %v2566, 0
  %v2598 = vsel %vm2427, %v2567, 0
  %2600 = vmatprep.subr.bf16.mxu0 %v2553
  %2601 = vmatpush1.bf16.msra.mxu0 %v2552
  %2602 = vmatprep.subr.bf16.mxu0 %v2555
  %2603 = vmatpush1.bf16.msra.mxu0 %v2554
  %2604 = vmatprep.subr.bf16.mxu0 %v2557
  %2605 = vmatpush1.bf16.msra.mxu0 %v2556
  %2606 = vmatprep.subr.bf16.mxu0 %v2559
  %2607 = vmatpush1.bf16.msra.mxu0 %v2558
  %2608 = vmatprep.subr.bf16.mxu0 %v2561
  %2609 = vmatpush1.bf16.msra.mxu0 %v2560
  %2610 = vmatprep.subr.bf16.mxu0 %v2563
  %2611 = vmatpush1.bf16.msra.mxu0 %v2562
  %2612 = vmatprep.subr.bf16.mxu0 %v2565
  %2613 = vmatpush1.bf16.msra.mxu0 %v2564
  %2614 = vmatprep.subr.bf16.mxu0 %v2598
  %2615 = vmatpush1.bf16.msra.mxu0 %v2595
  %2616 = vmatprep.subr.bf16.mxu0 0
  %2617 = vmatpush1.bf16.msra.mxu0 0
  %2618 = vmatprep.subr.bf16.mxu0 0
  %2619 = vmatpush1.bf16.msra.mxu0 0
  %2620 = vmatprep.subr.bf16.mxu0 0
  %2621 = vmatpush1.bf16.msra.mxu0 0
  %2622 = vmatprep.subr.bf16.mxu0 0
  %2623 = vmatpush1.bf16.msra.mxu0 0
  %2624 = vmatprep.subr.bf16.mxu0 0
  %2625 = vmatpush1.bf16.msra.mxu0 0
  %2626 = vmatprep.subr.bf16.mxu0 0
  %2627 = vmatpush1.bf16.msra.mxu0 0
  %2628 = vmatprep.subr.bf16.mxu0 0
  %2629 = vmatpush1.bf16.msra.mxu0 0
  %2630 = vmatprep.subr.bf16.mxu0 0
  %2631 = vmatpush1.bf16.msra.mxu0 0
  %2632 = vmatprep.mubr.bf16.mxu0 0
  %2633 = vmatmul.mubr.bf16.gmra.mrb[0].mxu0 %v2583
  %v2634 = vpop.f32.mrb[0].mxu0
  %v2635 = vadd.f32 %v2469, %v2634
  %v2636 = vpop.f32.mrb[0].mxu0
  %v2637 = vadd.f32 %v2471, %v2636
  %v2638 = vpop.f32.mrb[0].mxu0
  %v2639 = vadd.f32 %v2473, %v2638
  %v2640 = vpop.f32.mrb[0].mxu0
  %v2641 = vadd.f32 %v2475, %v2640
  %2642 = vmatprep.mubr.bf16.mxu0 0
  %2643 = vmatmul.mubr.bf16.gmra.mrb[0].mxu0 %v2586
  %v2644 = vpop.f32.mrb[0].mxu0
  %v2645 = vadd.f32 %v2479, %v2644
  %v2646 = vpop.f32.mrb[0].mxu0
  %v2647 = vadd.f32 %v2481, %v2646
  %v2648 = vpop.f32.mrb[0].mxu0
  %v2649 = vadd.f32 %v2483, %v2648
  %v2650 = vpop.f32.mrb[0].mxu0
  %v2651 = vadd.f32 %v2485, %v2650
  %2652 = vmatprep.mubr.bf16.mxu0 0
  %2653 = vmatmul.mubr.bf16.gmra.mrb[0].mxu0 %v2589
  %v2654 = vpop.f32.mrb[0].mxu0
  %v2655 = vadd.f32 %v2489, %v2654
  %v2656 = vpop.f32.mrb[0].mxu0
  %v2657 = vadd.f32 %v2491, %v2656
  %v2658 = vpop.f32.mrb[0].mxu0
  %v2659 = vadd.f32 %v2493, %v2658
  %v2660 = vpop.f32.mrb[0].mxu0
  %v2661 = vadd.f32 %v2495, %v2660
  %2662 = vmatprep.mubr.bf16.mxu0 0
  %2663 = vmatmul.mubr.bf16.gmra.mrb[0].mxu0 %v2592
  %v2664 = vpop.f32.mrb[0].mxu0
  %v2665 = vadd.f32 %v2499, %v2664
  %v2666 = vpop.f32.mrb[0].mxu0
  %v2667 = vadd.f32 %v2501, %v2666
  %v2668 = vpop.f32.mrb[0].mxu0
  %v2669 = vadd.f32 %v2503, %v2668
  %v2670 = vpop.f32.mrb[0].mxu0
  %v2671 = vadd.f32 %v2505, %v2670
  %2672 = vdwg.mxu0
  %v2673 = vld [vmem:[%s2211] sm:$0xff]
  %v2674 = vld [vmem:[%s2211 + $0x8] sm:$0xff]
  %v2675 = vld [vmem:[%s2211 + $0x10] sm:$0xff]
  %v2676 = vld [vmem:[%s2211 + $0x18] sm:$0xff]
  %v2677 = vld [vmem:[%s2211 + $0x20] sm:$0xff]
  %v2678 = vld [vmem:[%s2211 + $0x28] sm:$0xff]
  %v2679 = vld [vmem:[%s2211 + $0x30] sm:$0xff]
  %v2680 = vld [vmem:[%s2211 + $0x38] sm:$0xff]
  %v2681 = vpack.c.bf16 %v2674, %v2673
  %v2682 = vpack.c.bf16 %v2676, %v2675
  %v2683 = vpack.c.bf16 %v2678, %v2677
  %v2684 = vpack.c.bf16 %v2680, %v2679
  %s2685 = scalar_lea.vmem %s8, 240
  %v2686 = vld [vmem:[%s2685] sm:$0xff]
  %v2687 = vld [vmem:[%s2685 + $0x8] sm:$0xff]
  %v2688 = vld [vmem:[%s2685 + $0x10] sm:$0xff]
  %v2689 = vld [vmem:[%s2685 + $0x18] sm:$0xff]
  %v2690 = vld [vmem:[%s2685 + $0x20] sm:$0xff]
  %v2691 = vld [vmem:[%s2685 + $0x28] sm:$0xff]
  %v2692 = vld [vmem:[%s2685 + $0x30] sm:$0xff]
  %v2693 = vld [vmem:[%s2685 + $0x38] sm:$0xff]
  %v2694 = vld [vmem:[%s2685 + $0x40] sm:$0xff]
  %v2695 = vld [vmem:[%s2685 + $0x48] sm:$0xff]
  %v2696 = vld [vmem:[%s2685 + $0x50] sm:$0xff]
  %v2697 = vld [vmem:[%s2685 + $0x58] sm:$0xff]
  %v2698 = vld [vmem:[%s2685 + $0x60] sm:$0xff]
  %v2699 = vld [vmem:[%s2685 + $0x68] sm:$0xff]
  %v2700 = vld [vmem:[%s2685 + $0x70] sm:$0xff]
  %v2716 = vunpack.c.l.b16 %v2686
  %v2717 = vunpack.c.h.b16 %v2686
  %v2718 = vunpack.c.l.b16 %v2687
  %v2719 = vunpack.c.h.b16 %v2687
  %v2720 = vunpack.c.l.b16 %v2688
  %v2721 = vunpack.c.h.b16 %v2688
  %v2722 = vunpack.c.l.b16 %v2689
  %v2723 = vunpack.c.h.b16 %v2689
  %v2724 = vunpack.c.l.b16 %v2690
  %v2725 = vunpack.c.h.b16 %v2690
  %v2726 = vunpack.c.l.b16 %v2691
  %v2727 = vunpack.c.h.b16 %v2691
  %v2728 = vunpack.c.l.b16 %v2692
  %v2729 = vunpack.c.h.b16 %v2692
  %v2730 = vunpack.c.l.b16 %v2693
  %v2731 = vunpack.c.h.b16 %v2693
  %v2732 = vunpack.c.l.b16 %v2694
  %v2733 = vunpack.c.h.b16 %v2694
  %v2734 = vunpack.c.l.b16 %v2695
  %v2735 = vunpack.c.h.b16 %v2695
  %v2736 = vunpack.c.l.b16 %v2696
  %v2737 = vunpack.c.h.b16 %v2696
  %v2738 = vunpack.c.l.b16 %v2697
  %v2739 = vunpack.c.h.b16 %v2697
  %v2740 = vunpack.c.l.b16 %v2698
  %v2741 = vunpack.c.h.b16 %v2698
  %v2742 = vunpack.c.l.b16 %v2699
  %v2743 = vunpack.c.h.b16 %v2699
  %v2744 = vunpack.c.l.b16 %v2700
  %v2745 = vunpack.c.h.b16 %v2700
  %v2746 = vpack.c.b16 %v2718, %v2716
  %v2747 = vpack.c.b16 %v2719, %v2717
  %v2748 = vpack.c.b16 %v2722, %v2720
  %v2749 = vpack.c.b16 %v2723, %v2721
  %v2750 = vpack.c.b16 %v2726, %v2724
  %v2751 = vpack.c.b16 %v2727, %v2725
  %v2752 = vpack.c.b16 %v2730, %v2728
  %v2753 = vpack.c.b16 %v2731, %v2729
  %v2754 = vpack.c.b16 %v2734, %v2732
  %v2755 = vpack.c.b16 %v2735, %v2733
  %v2756 = vpack.c.b16 %v2738, %v2736
  %v2757 = vpack.c.b16 %v2739, %v2737
  %v2758 = vpack.c.b16 %v2742, %v2740
  %v2759 = vpack.c.b16 %v2743, %v2741
  %v2760 = vpack.c.b16 %v2744, %v2744
  %v2761 = vpack.c.b16 %v2745, %v2745
  %v2777 = vsel %vm2107, %v2681, 0
  %v2780 = vsel %vm2107, %v2682, 0
  %v2783 = vsel %vm2107, %v2683, 0
  %v2786 = vsel %vm2107, %v2684, 0
  %v2789 = vsel %vm2427, %v2760, 0
  %v2792 = vsel %vm2427, %v2761, 0
  %2794 = vmatprep.subr.bf16.mxu0 %v2747
  %2795 = vmatpush1.bf16.msra.mxu0 %v2746
  %2796 = vmatprep.subr.bf16.mxu0 %v2749
  %2797 = vmatpush1.bf16.msra.mxu0 %v2748
  %2798 = vmatprep.subr.bf16.mxu0 %v2751
  %2799 = vmatpush1.bf16.msra.mxu0 %v2750
  %2800 = vmatprep.subr.bf16.mxu0 %v2753
  %2801 = vmatpush1.bf16.msra.mxu0 %v2752
  %2802 = vmatprep.subr.bf16.mxu0 %v2755
  %2803 = vmatpush1.bf16.msra.mxu0 %v2754
  %2804 = vmatprep.subr.bf16.mxu0 %v2757
  %2805 = vmatpush1.bf16.msra.mxu0 %v2756
  %2806 = vmatprep.subr.bf16.mxu0 %v2759
  %2807 = vmatpush1.bf16.msra.mxu0 %v2758
  %2808 = vmatprep.subr.bf16.mxu0 %v2792
  %2809 = vmatpush1.bf16.msra.mxu0 %v2789
  %2810 = vmatprep.subr.bf16.mxu0 0
  %2811 = vmatpush1.bf16.msra.mxu0 0
  %2812 = vmatprep.subr.bf16.mxu0 0
  %2813 = vmatpush1.bf16.msra.mxu0 0
  %2814 = vmatprep.subr.bf16.mxu0 0
  %2815 = vmatpush1.bf16.msra.mxu0 0
  %2816 = vmatprep.subr.bf16.mxu0 0
  %2817 = vmatpush1.bf16.msra.mxu0 0
  %2818 = vmatprep.subr.bf16.mxu0 0
  %2819 = vmatpush1.bf16.msra.mxu0 0
  %2820 = vmatprep.subr.bf16.mxu0 0
  %2821 = vmatpush1.bf16.msra.mxu0 0
  %2822 = vmatprep.subr.bf16.mxu0 0
  %2823 = vmatpush1.bf16.msra.mxu0 0
  %2824 = vmatprep.subr.bf16.mxu0 0
  %2825 = vmatpush1.bf16.msra.mxu0 0
  %2826 = vmatprep.mubr.bf16.mxu0 0
  %2827 = vmatmul.mubr.bf16.gmra.mrb[0].mxu0 %v2777
  %v2828 = vpop.f32.mrb[0].mxu0
  %v2829 = vadd.f32 0.0, %v2828
  %v2830 = vpop.f32.mrb[0].mxu0
  %v2831 = vadd.f32 0.0, %v2830
  %v2832 = vpop.f32.mrb[0].mxu0
  %v2833 = vadd.f32 0.0, %v2832
  %v2834 = vpop.f32.mrb[0].mxu0
  %v2835 = vadd.f32 0.0, %v2834
  %2836 = vmatprep.mubr.bf16.mxu0 0
  %2837 = vmatmul.mubr.bf16.gmra.mrb[0].mxu0 %v2780
  %v2838 = vpop.f32.mrb[0].mxu0
  %v2839 = vadd.f32 0.0, %v2838
  %v2840 = vpop.f32.mrb[0].mxu0
  %v2841 = vadd.f32 0.0, %v2840
  %v2842 = vpop.f32.mrb[0].mxu0
  %v2843 = vadd.f32 0.0, %v2842
  %v2844 = vpop.f32.mrb[0].mxu0
  %v2845 = vadd.f32 0.0, %v2844
  %2846 = vmatprep.mubr.bf16.mxu0 0
  %2847 = vmatmul.mubr.bf16.gmra.mrb[0].mxu0 %v2783
  %v2848 = vpop.f32.mrb[0].mxu0
  %v2849 = vadd.f32 0.0, %v2848
  %v2850 = vpop.f32.mrb[0].mxu0
  %v2851 = vadd.f32 0.0, %v2850
  %v2852 = vpop.f32.mrb[0].mxu0
  %v2853 = vadd.f32 0.0, %v2852
  %v2854 = vpop.f32.mrb[0].mxu0
  %v2855 = vadd.f32 0.0, %v2854
  %2856 = vmatprep.mubr.bf16.mxu0 0
  %2857 = vmatmul.mubr.bf16.gmra.mrb[0].mxu0 %v2786
  %v2858 = vpop.f32.mrb[0].mxu0
  %v2859 = vadd.f32 0.0, %v2858
  %v2860 = vpop.f32.mrb[0].mxu0
  %v2861 = vadd.f32 0.0, %v2860
  %v2862 = vpop.f32.mrb[0].mxu0
  %v2863 = vadd.f32 0.0, %v2862
  %v2864 = vpop.f32.mrb[0].mxu0
  %v2865 = vadd.f32 0.0, %v2864
  %2866 = vdwg.mxu0
  %v2867 = vadd.f32 %v2635, %v2829
  %v2868 = vadd.f32 %v2637, %v2831
  %v2869 = vadd.f32 %v2639, %v2833
  %v2870 = vadd.f32 %v2641, %v2835
  %v2871 = vadd.f32 %v2645, %v2839
  %v2872 = vadd.f32 %v2647, %v2841
  %v2873 = vadd.f32 %v2649, %v2843
  %v2874 = vadd.f32 %v2651, %v2845
  %v2875 = vadd.f32 %v2655, %v2849
  %v2876 = vadd.f32 %v2657, %v2851
  %v2877 = vadd.f32 %v2659, %v2853
  %v2878 = vadd.f32 %v2661, %v2855
  %v2879 = vadd.f32 %v2665, %v2859
  %v2880 = vadd.f32 %v2667, %v2861
  %v2881 = vadd.f32 %v2669, %v2863
  %v2882 = vadd.f32 %v2671, %v2865
  %v2883 = vld [vmem:[%s2219] sm:$0xff]
  %v2884 = vld [vmem:[%s2219 + $0x8] sm:$0xff]
  %v2885 = vld [vmem:[%s2219 + $0x10] sm:$0xff]
  %v2886 = vld [vmem:[%s2219 + $0x18] sm:$0xff]
  %v2887 = vld [vmem:[%s2219 + $0x20] sm:$0xff]
  %v2888 = vld [vmem:[%s2219 + $0x28] sm:$0xff]
  %v2889 = vld [vmem:[%s2219 + $0x30] sm:$0xff]
  %v2890 = vld [vmem:[%s2219 + $0x38] sm:$0xff]
  %v2891 = vpack.c.bf16 %v2884, %v2883
  %v2892 = vpack.c.bf16 %v2886, %v2885
  %v2893 = vpack.c.bf16 %v2888, %v2887
  %v2894 = vpack.c.bf16 %v2890, %v2889
  %s2895 = scalar_lea.vmem %s8, 360
  %v2896 = vld [vmem:[%s2895] sm:$0xff]
  %v2897 = vld [vmem:[%s2895 + $0x8] sm:$0xff]
  %v2898 = vld [vmem:[%s2895 + $0x10] sm:$0xff]
  %v2899 = vld [vmem:[%s2895 + $0x18] sm:$0xff]
  %v2900 = vld [vmem:[%s2895 + $0x20] sm:$0xff]
  %v2901 = vld [vmem:[%s2895 + $0x28] sm:$0xff]
  %v2902 = vld [vmem:[%s2895 + $0x30] sm:$0xff]
  %v2903 = vld [vmem:[%s2895 + $0x38] sm:$0xff]
  %v2904 = vld [vmem:[%s2895 + $0x40] sm:$0xff]
  %v2905 = vld [vmem:[%s2895 + $0x48] sm:$0xff]
  %v2906 = vld [vmem:[%s2895 + $0x50] sm:$0xff]
  %v2907 = vld [vmem:[%s2895 + $0x58] sm:$0xff]
  %v2908 = vld [vmem:[%s2895 + $0x60] sm:$0xff]
  %v2909 = vld [vmem:[%s2895 + $0x68] sm:$0xff]
  %v2910 = vld [vmem:[%s2895 + $0x70] sm:$0xff]
  %v2926 = vunpack.c.l.b16 %v2896
  %v2927 = vunpack.c.h.b16 %v2896
  %v2928 = vunpack.c.l.b16 %v2897
  %v2929 = vunpack.c.h.b16 %v2897
  %v2930 = vunpack.c.l.b16 %v2898
  %v2931 = vunpack.c.h.b16 %v2898
  %v2932 = vunpack.c.l.b16 %v2899
  %v2933 = vunpack.c.h.b16 %v2899
  %v2934 = vunpack.c.l.b16 %v2900
  %v2935 = vunpack.c.h.b16 %v2900
  %v2936 = vunpack.c.l.b16 %v2901
  %v2937 = vunpack.c.h.b16 %v2901
  %v2938 = vunpack.c.l.b16 %v2902
  %v2939 = vunpack.c.h.b16 %v2902
  %v2940 = vunpack.c.l.b16 %v2903
  %v2941 = vunpack.c.h.b16 %v2903
  %v2942 = vunpack.c.l.b16 %v2904
  %v2943 = vunpack.c.h.b16 %v2904
  %v2944 = vunpack.c.l.b16 %v2905
  %v2945 = vunpack.c.h.b16 %v2905
  %v2946 = vunpack.c.l.b16 %v2906
  %v2947 = vunpack.c.h.b16 %v2906
  %v2948 = vunpack.c.l.b16 %v2907
  %v2949 = vunpack.c.h.b16 %v2907
  %v2950 = vunpack.c.l.b16 %v2908
  %v2951 = vunpack.c.h.b16 %v2908
  %v2952 = vunpack.c.l.b16 %v2909
  %v2953 = vunpack.c.h.b16 %v2909
  %v2954 = vunpack.c.l.b16 %v2910
  %v2955 = vunpack.c.h.b16 %v2910
  %v2956 = vpack.c.b16 %v2928, %v2926
  %v2957 = vpack.c.b16 %v2929, %v2927
  %v2958 = vpack.c.b16 %v2932, %v2930
  %v2959 = vpack.c.b16 %v2933, %v2931
  %v2960 = vpack.c.b16 %v2936, %v2934
  %v2961 = vpack.c.b16 %v2937, %v2935
  %v2962 = vpack.c.b16 %v2940, %v2938
  %v2963 = vpack.c.b16 %v2941, %v2939
  %v2964 = vpack.c.b16 %v2944, %v2942
  %v2965 = vpack.c.b16 %v2945, %v2943
  %v2966 = vpack.c.b16 %v2948, %v2946
  %v2967 = vpack.c.b16 %v2949, %v2947
  %v2968 = vpack.c.b16 %v2952, %v2950
  %v2969 = vpack.c.b16 %v2953, %v2951
  %v2970 = vpack.c.b16 %v2954, %v2954
  %v2971 = vpack.c.b16 %v2955, %v2955
  %v2987 = vsel %vm2107, %v2891, 0
  %v2990 = vsel %vm2107, %v2892, 0
  %v2993 = vsel %vm2107, %v2893, 0
  %v2996 = vsel %vm2107, %v2894, 0
  %v2999 = vsel %vm2427, %v2970, 0
  %v3002 = vsel %vm2427, %v2971, 0
  %3004 = vmatprep.subr.bf16.mxu0 %v2957
  %3005 = vmatpush1.bf16.msra.mxu0 %v2956
  %3006 = vmatprep.subr.bf16.mxu0 %v2959
  %3007 = vmatpush1.bf16.msra.mxu0 %v2958
  %3008 = vmatprep.subr.bf16.mxu0 %v2961
  %3009 = vmatpush1.bf16.msra.mxu0 %v2960
  %3010 = vmatprep.subr.bf16.mxu0 %v2963
  %3011 = vmatpush1.bf16.msra.mxu0 %v2962
  %3012 = vmatprep.subr.bf16.mxu0 %v2965
  %3013 = vmatpush1.bf16.msra.mxu0 %v2964
  %3014 = vmatprep.subr.bf16.mxu0 %v2967
  %3015 = vmatpush1.bf16.msra.mxu0 %v2966
  %3016 = vmatprep.subr.bf16.mxu0 %v2969
  %3017 = vmatpush1.bf16.msra.mxu0 %v2968
  %3018 = vmatprep.subr.bf16.mxu0 %v3002
  %3019 = vmatpush1.bf16.msra.mxu0 %v2999
  %3020 = vmatprep.subr.bf16.mxu0 0
  %3021 = vmatpush1.bf16.msra.mxu0 0
  %3022 = vmatprep.subr.bf16.mxu0 0
  %3023 = vmatpush1.bf16.msra.mxu0 0
  %3024 = vmatprep.subr.bf16.mxu0 0
  %3025 = vmatpush1.bf16.msra.mxu0 0
  %3026 = vmatprep.subr.bf16.mxu0 0
  %3027 = vmatpush1.bf16.msra.mxu0 0
  %3028 = vmatprep.subr.bf16.mxu0 0
  %3029 = vmatpush1.bf16.msra.mxu0 0
  %3030 = vmatprep.subr.bf16.mxu0 0
  %3031 = vmatpush1.bf16.msra.mxu0 0
  %3032 = vmatprep.subr.bf16.mxu0 0
  %3033 = vmatpush1.bf16.msra.mxu0 0
  %3034 = vmatprep.subr.bf16.mxu0 0
  %3035 = vmatpush1.bf16.msra.mxu0 0
  %3036 = vmatprep.mubr.bf16.mxu0 0
  %3037 = vmatmul.mubr.bf16.gmra.mrb[0].mxu0 %v2987
  %v3038 = vpop.f32.mrb[0].mxu0
  %v3039 = vadd.f32 0.0, %v3038
  %v3040 = vpop.f32.mrb[0].mxu0
  %v3041 = vadd.f32 0.0, %v3040
  %v3042 = vpop.f32.mrb[0].mxu0
  %v3043 = vadd.f32 0.0, %v3042
  %v3044 = vpop.f32.mrb[0].mxu0
  %v3045 = vadd.f32 0.0, %v3044
  %3046 = vmatprep.mubr.bf16.mxu0 0
  %3047 = vmatmul.mubr.bf16.gmra.mrb[0].mxu0 %v2990
  %v3048 = vpop.f32.mrb[0].mxu0
  %v3049 = vadd.f32 0.0, %v3048
  %v3050 = vpop.f32.mrb[0].mxu0
  %v3051 = vadd.f32 0.0, %v3050
  %v3052 = vpop.f32.mrb[0].mxu0
  %v3053 = vadd.f32 0.0, %v3052
  %v3054 = vpop.f32.mrb[0].mxu0
  %v3055 = vadd.f32 0.0, %v3054
  %3056 = vmatprep.mubr.bf16.mxu0 0
  %3057 = vmatmul.mubr.bf16.gmra.mrb[0].mxu0 %v2993
  %v3058 = vpop.f32.mrb[0].mxu0
  %v3059 = vadd.f32 0.0, %v3058
  %v3060 = vpop.f32.mrb[0].mxu0
  %v3061 = vadd.f32 0.0, %v3060
  %v3062 = vpop.f32.mrb[0].mxu0
  %v3063 = vadd.f32 0.0, %v3062
  %v3064 = vpop.f32.mrb[0].mxu0
  %v3065 = vadd.f32 0.0, %v3064
  %3066 = vmatprep.mubr.bf16.mxu0 0
  %3067 = vmatmul.mubr.bf16.gmra.mrb[0].mxu0 %v2996
  %v3068 = vpop.f32.mrb[0].mxu0
  %v3069 = vadd.f32 0.0, %v3068
  %v3070 = vpop.f32.mrb[0].mxu0
  %v3071 = vadd.f32 0.0, %v3070
  %v3072 = vpop.f32.mrb[0].mxu0
  %v3073 = vadd.f32 0.0, %v3072
  %v3074 = vpop.f32.mrb[0].mxu0
  %v3075 = vadd.f32 0.0, %v3074
  %3076 = vdwg.mxu0
  %v3077 = vadd.f32 %v2867, %v3039
  %v3078 = vadd.f32 %v2868, %v3041
  %v3079 = vadd.f32 %v2869, %v3043
  %v3080 = vadd.f32 %v2870, %v3045
  %v3081 = vadd.f32 %v2871, %v3049
  %v3082 = vadd.f32 %v2872, %v3051
  %v3083 = vadd.f32 %v2873, %v3053
  %v3084 = vadd.f32 %v2874, %v3055
  %v3085 = vadd.f32 %v2875, %v3059
  %v3086 = vadd.f32 %v2876, %v3061
  %v3087 = vadd.f32 %v2877, %v3063
  %v3088 = vadd.f32 %v2878, %v3065
  %v3089 = vadd.f32 %v2879, %v3069
  %v3090 = vadd.f32 %v2880, %v3071
  %v3091 = vadd.f32 %v2881, %v3073
  %v3092 = vadd.f32 %v2882, %v3075
  %v3093 = vld [vmem:[%s2227] sm:$0xff]
  %v3094 = vld [vmem:[%s2227 + $0x8] sm:$0xff]
  %v3095 = vld [vmem:[%s2227 + $0x10] sm:$0xff]
  %v3096 = vld [vmem:[%s2227 + $0x18] sm:$0xff]
  %v3097 = vld [vmem:[%s2227 + $0x20] sm:$0xff]
  %v3098 = vld [vmem:[%s2227 + $0x28] sm:$0xff]
  %v3099 = vld [vmem:[%s2227 + $0x30] sm:$0xff]
  %v3100 = vld [vmem:[%s2227 + $0x38] sm:$0xff]
  %v3101 = vpack.c.bf16 %v3094, %v3093
  %v3102 = vpack.c.bf16 %v3096, %v3095
  %v3103 = vpack.c.bf16 %v3098, %v3097
  %v3104 = vpack.c.bf16 %v3100, %v3099
  %s3105 = scalar_lea.vmem %s8, 480
  %v3106 = vld [vmem:[%s3105] sm:$0xff]
  %v3107 = vld [vmem:[%s3105 + $0x8] sm:$0xff]
  %v3108 = vld [vmem:[%s3105 + $0x10] sm:$0xff]
  %v3109 = vld [vmem:[%s3105 + $0x18] sm:$0xff]
  %v3110 = vld [vmem:[%s3105 + $0x20] sm:$0xff]
  %v3111 = vld [vmem:[%s3105 + $0x28] sm:$0xff]
  %v3112 = vld [vmem:[%s3105 + $0x30] sm:$0xff]
  %v3113 = vld [vmem:[%s3105 + $0x38] sm:$0xff]
  %v3114 = vld [vmem:[%s3105 + $0x40] sm:$0xff]
  %v3115 = vld [vmem:[%s3105 + $0x48] sm:$0xff]
  %v3116 = vld [vmem:[%s3105 + $0x50] sm:$0xff]
  %v3117 = vld [vmem:[%s3105 + $0x58] sm:$0xff]
  %v3118 = vld [vmem:[%s3105 + $0x60] sm:$0xff]
  %v3119 = vld [vmem:[%s3105 + $0x68] sm:$0xff]
  %v3120 = vld [vmem:[%s3105 + $0x70] sm:$0xff]
  %v3136 = vunpack.c.l.b16 %v3106
  %v3137 = vunpack.c.h.b16 %v3106
  %v3138 = vunpack.c.l.b16 %v3107
  %v3139 = vunpack.c.h.b16 %v3107
  %v3140 = vunpack.c.l.b16 %v3108
  %v3141 = vunpack.c.h.b16 %v3108
  %v3142 = vunpack.c.l.b16 %v3109
  %v3143 = vunpack.c.h.b16 %v3109
  %v3144 = vunpack.c.l.b16 %v3110
  %v3145 = vunpack.c.h.b16 %v3110
  %v3146 = vunpack.c.l.b16 %v3111
  %v3147 = vunpack.c.h.b16 %v3111
  %v3148 = vunpack.c.l.b16 %v3112
  %v3149 = vunpack.c.h.b16 %v3112
  %v3150 = vunpack.c.l.b16 %v3113
  %v3151 = vunpack.c.h.b16 %v3113
  %v3152 = vunpack.c.l.b16 %v3114
  %v3153 = vunpack.c.h.b16 %v3114
  %v3154 = vunpack.c.l.b16 %v3115
  %v3155 = vunpack.c.h.b16 %v3115
  %v3156 = vunpack.c.l.b16 %v3116
  %v3157 = vunpack.c.h.b16 %v3116
  %v3158 = vunpack.c.l.b16 %v3117
  %v3159 = vunpack.c.h.b16 %v3117
  %v3160 = vunpack.c.l.b16 %v3118
  %v3161 = vunpack.c.h.b16 %v3118
  %v3162 = vunpack.c.l.b16 %v3119
  %v3163 = vunpack.c.h.b16 %v3119
  %v3164 = vunpack.c.l.b16 %v3120
  %v3165 = vunpack.c.h.b16 %v3120
  %v3166 = vpack.c.b16 %v3138, %v3136
  %v3167 = vpack.c.b16 %v3139, %v3137
  %v3168 = vpack.c.b16 %v3142, %v3140
  %v3169 = vpack.c.b16 %v3143, %v3141
  %v3170 = vpack.c.b16 %v3146, %v3144
  %v3171 = vpack.c.b16 %v3147, %v3145
  %v3172 = vpack.c.b16 %v3150, %v3148
  %v3173 = vpack.c.b16 %v3151, %v3149
  %v3174 = vpack.c.b16 %v3154, %v3152
  %v3175 = vpack.c.b16 %v3155, %v3153
  %v3176 = vpack.c.b16 %v3158, %v3156
  %v3177 = vpack.c.b16 %v3159, %v3157
  %v3178 = vpack.c.b16 %v3162, %v3160
  %v3179 = vpack.c.b16 %v3163, %v3161
  %v3180 = vpack.c.b16 %v3164, %v3164
  %v3181 = vpack.c.b16 %v3165, %v3165
  %v3197 = vsel %vm2107, %v3101, 0
  %v3200 = vsel %vm2107, %v3102, 0
  %v3203 = vsel %vm2107, %v3103, 0
  %v3206 = vsel %vm2107, %v3104, 0
  %v3209 = vsel %vm2427, %v3180, 0
  %v3212 = vsel %vm2427, %v3181, 0
  %3214 = vmatprep.subr.bf16.mxu0 %v3167
  %3215 = vmatpush1.bf16.msra.mxu0 %v3166
  %3216 = vmatprep.subr.bf16.mxu0 %v3169
  %3217 = vmatpush1.bf16.msra.mxu0 %v3168
  %3218 = vmatprep.subr.bf16.mxu0 %v3171
  %3219 = vmatpush1.bf16.msra.mxu0 %v3170
  %3220 = vmatprep.subr.bf16.mxu0 %v3173
  %3221 = vmatpush1.bf16.msra.mxu0 %v3172
  %3222 = vmatprep.subr.bf16.mxu0 %v3175
  %3223 = vmatpush1.bf16.msra.mxu0 %v3174
  %3224 = vmatprep.subr.bf16.mxu0 %v3177
  %3225 = vmatpush1.bf16.msra.mxu0 %v3176
  %3226 = vmatprep.subr.bf16.mxu0 %v3179
  %3227 = vmatpush1.bf16.msra.mxu0 %v3178
  %3228 = vmatprep.subr.bf16.mxu0 %v3212
  %3229 = vmatpush1.bf16.msra.mxu0 %v3209
  %3230 = vmatprep.subr.bf16.mxu0 0
  %3231 = vmatpush1.bf16.msra.mxu0 0
  %3232 = vmatprep.subr.bf16.mxu0 0
  %3233 = vmatpush1.bf16.msra.mxu0 0
  %3234 = vmatprep.subr.bf16.mxu0 0
  %3235 = vmatpush1.bf16.msra.mxu0 0
  %3236 = vmatprep.subr.bf16.mxu0 0
  %3237 = vmatpush1.bf16.msra.mxu0 0
  %3238 = vmatprep.subr.bf16.mxu0 0
  %3239 = vmatpush1.bf16.msra.mxu0 0
  %3240 = vmatprep.subr.bf16.mxu0 0
  %3241 = vmatpush1.bf16.msra.mxu0 0
  %3242 = vmatprep.subr.bf16.mxu0 0
  %3243 = vmatpush1.bf16.msra.mxu0 0
  %3244 = vmatprep.subr.bf16.mxu0 0
  %3245 = vmatpush1.bf16.msra.mxu0 0
  %3246 = vmatprep.mubr.bf16.mxu0 0
  %3247 = vmatmul.mubr.bf16.gmra.mrb[0].mxu0 %v3197
  %v3248 = vpop.f32.mrb[0].mxu0
  %v3249 = vadd.f32 0.0, %v3248
  %v3250 = vpop.f32.mrb[0].mxu0
  %v3251 = vadd.f32 0.0, %v3250
  %v3252 = vpop.f32.mrb[0].mxu0
  %v3253 = vadd.f32 0.0, %v3252
  %v3254 = vpop.f32.mrb[0].mxu0
  %v3255 = vadd.f32 0.0, %v3254
  %3256 = vmatprep.mubr.bf16.mxu0 0
  %3257 = vmatmul.mubr.bf16.gmra.mrb[0].mxu0 %v3200
  %v3258 = vpop.f32.mrb[0].mxu0
  %v3259 = vadd.f32 0.0, %v3258
  %v3260 = vpop.f32.mrb[0].mxu0
  %v3261 = vadd.f32 0.0, %v3260
  %v3262 = vpop.f32.mrb[0].mxu0
  %v3263 = vadd.f32 0.0, %v3262
  %v3264 = vpop.f32.mrb[0].mxu0
  %v3265 = vadd.f32 0.0, %v3264
  %3266 = vmatprep.mubr.bf16.mxu0 0
  %3267 = vmatmul.mubr.bf16.gmra.mrb[0].mxu0 %v3203
  %v3268 = vpop.f32.mrb[0].mxu0
  %v3269 = vadd.f32 0.0, %v3268
  %v3270 = vpop.f32.mrb[0].mxu0
  %v3271 = vadd.f32 0.0, %v3270
  %v3272 = vpop.f32.mrb[0].mxu0
  %v3273 = vadd.f32 0.0, %v3272
  %v3274 = vpop.f32.mrb[0].mxu0
  %v3275 = vadd.f32 0.0, %v3274
  %3276 = vmatprep.mubr.bf16.mxu0 0
  %3277 = vmatmul.mubr.bf16.gmra.mrb[0].mxu0 %v3206
  %v3278 = vpop.f32.mrb[0].mxu0
  %v3279 = vadd.f32 0.0, %v3278
  %v3280 = vpop.f32.mrb[0].mxu0
  %v3281 = vadd.f32 0.0, %v3280
  %v3282 = vpop.f32.mrb[0].mxu0
  %v3283 = vadd.f32 0.0, %v3282
  %v3284 = vpop.f32.mrb[0].mxu0
  %v3285 = vadd.f32 0.0, %v3284
  %3286 = vdwg.mxu0
  %v3287 = vadd.f32 %v3077, %v3249
  %v3288 = vadd.f32 %v3078, %v3251
  %v3289 = vadd.f32 %v3079, %v3253
  %v3290 = vadd.f32 %v3080, %v3255
  %v3291 = vadd.f32 %v3081, %v3259
  %v3292 = vadd.f32 %v3082, %v3261
  %v3293 = vadd.f32 %v3083, %v3263
  %v3294 = vadd.f32 %v3084, %v3265
  %v3295 = vadd.f32 %v3085, %v3269
  %v3296 = vadd.f32 %v3086, %v3271
  %v3297 = vadd.f32 %v3087, %v3273
  %v3298 = vadd.f32 %v3088, %v3275
  %v3299 = vadd.f32 %v3089, %v3279
  %v3300 = vadd.f32 %v3090, %v3281
  %v3301 = vadd.f32 %v3091, %v3283
  %v3302 = vadd.f32 %v3092, %v3285
  %v3303 = vld [vmem:[%s11] sm:$0x3]
  %v3305 = vlaneseq
  %v3306 = vshrl.u32 %v3305, 7
  %v3307 = vsub.s32 0, %v3306
  %v3308 = vrot.slane %v3303, %v3307
  %v3309 = vlaneseq
  %v3310 = vshrl.u32 %v3309, 7
  %v3311 = vsub.s32 1, %v3310
  %v3312 = vrot.slane %v3303, %v3311
  %v3315 = vadd.f32 %v3287, %v3308
  %v3316 = vadd.f32 %v3288, %v3312
  %v3317 = vadd.f32 %v3289, %v3308
  %v3318 = vadd.f32 %v3290, %v3312
  %v3319 = vadd.f32 %v3291, %v3308
  %v3320 = vadd.f32 %v3292, %v3312
  %v3321 = vadd.f32 %v3293, %v3308
  %v3322 = vadd.f32 %v3294, %v3312
  %v3323 = vadd.f32 %v3295, %v3308
  %v3324 = vadd.f32 %v3296, %v3312
  %v3325 = vadd.f32 %v3297, %v3308
  %v3326 = vadd.f32 %v3298, %v3312
  %v3327 = vadd.f32 %v3299, %v3308
  %v3328 = vadd.f32 %v3300, %v3312
  %v3329 = vadd.f32 %v3301, %v3308
  %v3330 = vadd.f32 %v3302, %v3312
  %v3331 = vld [vmem:[%s9] sm:$0xff]
  %v3332 = vld [vmem:[%s9 + $0x8] sm:$0xff]
  %v3333 = vld [vmem:[%s9 + $0x10] sm:$0xff]
  %v3334 = vld [vmem:[%s9 + $0x18] sm:$0xff]
  %v3335 = vld [vmem:[%s9 + $0x20] sm:$0xff]
  %v3336 = vld [vmem:[%s9 + $0x28] sm:$0xff]
  %v3337 = vld [vmem:[%s9 + $0x30] sm:$0xff]
  %v3338 = vld [vmem:[%s9 + $0x38] sm:$0xff]
  %v3339 = vld [vmem:[%s9 + $0x40] sm:$0xff]
  %v3340 = vld [vmem:[%s9 + $0x48] sm:$0xff]
  %v3341 = vld [vmem:[%s9 + $0x50] sm:$0xff]
  %v3342 = vld [vmem:[%s9 + $0x58] sm:$0xff]
  %v3343 = vld [vmem:[%s9 + $0x60] sm:$0xff]
  %v3344 = vld [vmem:[%s9 + $0x68] sm:$0xff]
  %v3345 = vld [vmem:[%s9 + $0x70] sm:$0xff]
  %v3346 = vld [vmem:[%s9 + $0x78] sm:$0xff]
  %v3347 = vld [vmem:[%s9 + $0x80] sm:$0xff]
  %v3348 = vld [vmem:[%s9 + $0x88] sm:$0xff]
  %v3349 = vld [vmem:[%s9 + $0x90] sm:$0xff]
  %v3350 = vld [vmem:[%s9 + $0x98] sm:$0xff]
  %vm3351 = vcmask 261120
  %v3353 = vsel %vm3351, %v3316, 0
  %v3356 = vsel %vm3351, %v3318, 0
  %v3359 = vsel %vm3351, %v3320, 0
  %v3362 = vsel %vm3351, %v3322, 0
  %v3365 = vsel %vm3351, %v3324, 0
  %v3368 = vsel %vm3351, %v3326, 0
  %v3371 = vsel %vm3351, %v3328, 0
  %v3374 = vsel %vm3351, %v3330, 0
  %3376 = vmatprep.subr.mxu0 0.0
  %3377 = vmatpush1.msra.mxu0 %v3331
  %3378 = vmatprep.subr.mxu0 0.0
  %3379 = vmatpush1.msra.mxu0 %v3332
  %3380 = vmatprep.subr.mxu0 0.0
  %3381 = vmatpush1.msra.mxu0 %v3333
  %3382 = vmatprep.subr.mxu0 0.0
  %3383 = vmatpush1.msra.mxu0 %v3334
  %3384 = vmatprep.subr.mxu0 0.0
  %3385 = vmatpush1.msra.mxu0 %v3335
  %3386 = vmatprep.subr.mxu0 0.0
  %3387 = vmatpush1.msra.mxu0 %v3336
  %3388 = vmatprep.subr.mxu0 0.0
  %3389 = vmatpush1.msra.mxu0 %v3337
  %3390 = vmatprep.subr.mxu0 0.0
  %3391 = vmatpush1.msra.mxu0 %v3338
  %3392 = vmatprep.subr.mxu0 0.0
  %3393 = vmatpush1.msra.mxu0 %v3339
  %3394 = vmatprep.subr.mxu0 0.0
  %3395 = vmatpush1.msra.mxu0 %v3340
  %3396 = vmatprep.subr.mxu0 0.0
  %3397 = vmatpush1.msra.mxu0 %v3341
  %3398 = vmatprep.subr.mxu0 0.0
  %3399 = vmatpush1.msra.mxu0 %v3342
  %3400 = vmatprep.subr.mxu0 0.0
  %3401 = vmatpush1.msra.mxu0 %v3343
  %3402 = vmatprep.subr.mxu0 0.0
  %3403 = vmatpush1.msra.mxu0 %v3344
  %3404 = vmatprep.subr.mxu0 0.0
  %3405 = vmatpush1.msra.mxu0 %v3345
  %3406 = vmatprep.subr.mxu0 0.0
  %3407 = vmatpush1.msra.mxu0 %v3346
  %3408 = vmatprep.subr.mxu0 0.0
  %3409 = vmatpush1.msra.mxu0 %v3347
  %3410 = vmatprep.subr.mxu0 0.0
  %3411 = vmatpush1.msra.mxu0 %v3348
  %3412 = vmatprep.subr.mxu0 0.0
  %3413 = vmatpush1.msra.mxu0 %v3349
  %3414 = vmatprep.subr.mxu0 0.0
  %3415 = vmatpush1.msra.mxu0 %v3350
  %3416 = vmatprep.subr.mxu0 0.0
  %3417 = vmatpush1.msra.mxu0 0.0
  %3418 = vmatprep.subr.mxu0 0.0
  %3419 = vmatpush1.msra.mxu0 0.0
  %3420 = vmatprep.subr.mxu0 0.0
  %3421 = vmatpush1.msra.mxu0 0.0
  %3422 = vmatprep.subr.mxu0 0.0
  %3423 = vmatpush1.msra.mxu0 0.0
  %3424 = vmatprep.subr.mxu0 0.0
  %3425 = vmatpush1.msra.mxu0 0.0
  %3426 = vmatprep.subr.mxu0 0.0
  %3427 = vmatpush1.msra.mxu0 0.0
  %3428 = vmatprep.subr.mxu0 0.0
  %3429 = vmatpush1.msra.mxu0 0.0
  %3430 = vmatprep.subr.mxu0 0.0
  %3431 = vmatpush1.msra.mxu0 0.0
  %3432 = vmatprep.subr.mxu0 0.0
  %3433 = vmatpush1.msra.mxu0 0.0
  %3434 = vmatprep.subr.mxu0 0.0
  %3435 = vmatpush1.msra.mxu0 0.0
  %3436 = vmatprep.subr.mxu0 0.0
  %3437 = vmatpush1.msra.mxu0 0.0
  %3438 = vmatprep.subr.mxu0 0.0
  %3439 = vmatpush1.msra.mxu0 0.0
  %3440 = vmatprep.mubr.f32.mxu0 %v3353
  %3441 = vmatmul.mubr.f32.gmra.mrb[0].mxu0 %v3315
  %v3442 = vpop.f32.mrb[0].mxu0
  %v3443 = vadd.f32 0.0, %v3442
  %v3444 = vpop.f32.mrb[0].mxu0
  %3445 = vmatprep.mubr.f32.mxu0 %v3356
  %3446 = vmatmul.mubr.f32.gmra.mrb[0].mxu0 %v3317
  %v3447 = vpop.f32.mrb[0].mxu0
  %v3448 = vadd.f32 0.0, %v3447
  %v3449 = vpop.f32.mrb[0].mxu0
  %3450 = vmatprep.mubr.f32.mxu0 %v3359
  %3451 = vmatmul.mubr.f32.gmra.mrb[0].mxu0 %v3319
  %v3452 = vpop.f32.mrb[0].mxu0
  %v3453 = vadd.f32 0.0, %v3452
  %v3454 = vpop.f32.mrb[0].mxu0
  %3455 = vmatprep.mubr.f32.mxu0 %v3362
  %3456 = vmatmul.mubr.f32.gmra.mrb[0].mxu0 %v3321
  %v3457 = vpop.f32.mrb[0].mxu0
  %v3458 = vadd.f32 0.0, %v3457
  %v3459 = vpop.f32.mrb[0].mxu0
  %3460 = vmatprep.mubr.f32.mxu0 %v3365
  %3461 = vmatmul.mubr.f32.gmra.mrb[0].mxu0 %v3323
  %v3462 = vpop.f32.mrb[0].mxu0
  %v3463 = vadd.f32 0.0, %v3462
  %v3464 = vpop.f32.mrb[0].mxu0
  %3465 = vmatprep.mubr.f32.mxu0 %v3368
  %3466 = vmatmul.mubr.f32.gmra.mrb[0].mxu0 %v3325
  %v3467 = vpop.f32.mrb[0].mxu0
  %v3468 = vadd.f32 0.0, %v3467
  %v3469 = vpop.f32.mrb[0].mxu0
  %3470 = vmatprep.mubr.f32.mxu0 %v3371
  %3471 = vmatmul.mubr.f32.gmra.mrb[0].mxu0 %v3327
  %v3472 = vpop.f32.mrb[0].mxu0
  %v3473 = vadd.f32 0.0, %v3472
  %v3474 = vpop.f32.mrb[0].mxu0
  %3475 = vmatprep.mubr.f32.mxu0 %v3374
  %3476 = vmatmul.mubr.f32.gmra.mrb[0].mxu0 %v3329
  %v3477 = vpop.f32.mrb[0].mxu0
  %v3478 = vadd.f32 0.0, %v3477
  %v3479 = vpop.f32.mrb[0].mxu0
  %3480 = vdwg.mxu0
  %v3481 = vld [vmem:[%s10] sm:$0xff]
  %v3482 = vld [vmem:[%s10 + $0x8] sm:$0xff]
  %v3483 = vld [vmem:[%s10 + $0x10] sm:$0xff]
  %v3484 = vld [vmem:[%s10 + $0x18] sm:$0xff]
  %v3485 = vld [vmem:[%s10 + $0x20] sm:$0xff]
  %v3486 = vld [vmem:[%s10 + $0x28] sm:$0xff]
  %v3487 = vld [vmem:[%s10 + $0x30] sm:$0xff]
  %v3488 = vld [vmem:[%s10 + $0x38] sm:$0xff]
  %v3489 = vld [vmem:[%s10 + $0x40] sm:$0xff]
  %v3490 = vld [vmem:[%s10 + $0x48] sm:$0xff]
  %v3491 = vld [vmem:[%s10 + $0x50] sm:$0xff]
  %v3492 = vld [vmem:[%s10 + $0x58] sm:$0xff]
  %v3493 = vld [vmem:[%s10 + $0x60] sm:$0xff]
  %v3494 = vld [vmem:[%s10 + $0x68] sm:$0xff]
  %v3495 = vld [vmem:[%s10 + $0x70] sm:$0xff]
  %v3496 = vld [vmem:[%s10 + $0x78] sm:$0xff]
  %v3497 = vld [vmem:[%s10 + $0x80] sm:$0xff]
  %v3498 = vld [vmem:[%s10 + $0x88] sm:$0xff]
  %v3499 = vld [vmem:[%s10 + $0x90] sm:$0xff]
  %v3500 = vld [vmem:[%s10 + $0x98] sm:$0xff]
  %3501 = vmatprep.subr.mxu0 0.0
  %3502 = vmatpush1.msra.mxu0 %v3481
  %3503 = vmatprep.subr.mxu0 0.0
  %3504 = vmatpush1.msra.mxu0 %v3482
  %3505 = vmatprep.subr.mxu0 0.0
  %3506 = vmatpush1.msra.mxu0 %v3483
  %3507 = vmatprep.subr.mxu0 0.0
  %3508 = vmatpush1.msra.mxu0 %v3484
  %3509 = vmatprep.subr.mxu0 0.0
  %3510 = vmatpush1.msra.mxu0 %v3485
  %3511 = vmatprep.subr.mxu0 0.0
  %3512 = vmatpush1.msra.mxu0 %v3486
  %3513 = vmatprep.subr.mxu0 0.0
  %3514 = vmatpush1.msra.mxu0 %v3487
  %3515 = vmatprep.subr.mxu0 0.0
  %3516 = vmatpush1.msra.mxu0 %v3488
  %3517 = vmatprep.subr.mxu0 0.0
  %3518 = vmatpush1.msra.mxu0 %v3489
  %3519 = vmatprep.subr.mxu0 0.0
  %3520 = vmatpush1.msra.mxu0 %v3490
  %3521 = vmatprep.subr.mxu0 0.0
  %3522 = vmatpush1.msra.mxu0 %v3491
  %3523 = vmatprep.subr.mxu0 0.0
  %3524 = vmatpush1.msra.mxu0 %v3492
  %3525 = vmatprep.subr.mxu0 0.0
  %3526 = vmatpush1.msra.mxu0 %v3493
  %3527 = vmatprep.subr.mxu0 0.0
  %3528 = vmatpush1.msra.mxu0 %v3494
  %3529 = vmatprep.subr.mxu0 0.0
  %3530 = vmatpush1.msra.mxu0 %v3495
  %3531 = vmatprep.subr.mxu0 0.0
  %3532 = vmatpush1.msra.mxu0 %v3496
  %3533 = vmatprep.subr.mxu0 0.0
  %3534 = vmatpush1.msra.mxu0 %v3497
  %3535 = vmatprep.subr.mxu0 0.0
  %3536 = vmatpush1.msra.mxu0 %v3498
  %3537 = vmatprep.subr.mxu0 0.0
  %3538 = vmatpush1.msra.mxu0 %v3499
  %3539 = vmatprep.subr.mxu0 0.0
  %3540 = vmatpush1.msra.mxu0 %v3500
  %3541 = vmatprep.subr.mxu0 0.0
  %3542 = vmatpush1.msra.mxu0 0.0
  %3543 = vmatprep.subr.mxu0 0.0
  %3544 = vmatpush1.msra.mxu0 0.0
  %3545 = vmatprep.subr.mxu0 0.0
  %3546 = vmatpush1.msra.mxu0 0.0
  %3547 = vmatprep.subr.mxu0 0.0
  %3548 = vmatpush1.msra.mxu0 0.0
  %3549 = vmatprep.subr.mxu0 0.0
  %3550 = vmatpush1.msra.mxu0 0.0
  %3551 = vmatprep.subr.mxu0 0.0
  %3552 = vmatpush1.msra.mxu0 0.0
  %3553 = vmatprep.subr.mxu0 0.0
  %3554 = vmatpush1.msra.mxu0 0.0
  %3555 = vmatprep.subr.mxu0 0.0
  %3556 = vmatpush1.msra.mxu0 0.0
  %3557 = vmatprep.subr.mxu0 0.0
  %3558 = vmatpush1.msra.mxu0 0.0
  %3559 = vmatprep.subr.mxu0 0.0
  %3560 = vmatpush1.msra.mxu0 0.0
  %3561 = vmatprep.subr.mxu0 0.0
  %3562 = vmatpush1.msra.mxu0 0.0
  %3563 = vmatprep.subr.mxu0 0.0
  %3564 = vmatpush1.msra.mxu0 0.0
  %3565 = vmatprep.mubr.f32.mxu0 %v3353
  %3566 = vmatmul.mubr.f32.gmra.mrb[0].mxu0 %v3315
  %v3567 = vpop.f32.mrb[0].mxu0
  %v3568 = vadd.f32 0.0, %v3567
  %v3569 = vpop.f32.mrb[0].mxu0
  %3570 = vmatprep.mubr.f32.mxu0 %v3356
  %3571 = vmatmul.mubr.f32.gmra.mrb[0].mxu0 %v3317
  %v3572 = vpop.f32.mrb[0].mxu0
  %v3573 = vadd.f32 0.0, %v3572
  %v3574 = vpop.f32.mrb[0].mxu0
  %3575 = vmatprep.mubr.f32.mxu0 %v3359
  %3576 = vmatmul.mubr.f32.gmra.mrb[0].mxu0 %v3319
  %v3577 = vpop.f32.mrb[0].mxu0
  %v3578 = vadd.f32 0.0, %v3577
  %v3579 = vpop.f32.mrb[0].mxu0
  %3580 = vmatprep.mubr.f32.mxu0 %v3362
  %3581 = vmatmul.mubr.f32.gmra.mrb[0].mxu0 %v3321
  %v3582 = vpop.f32.mrb[0].mxu0
  %v3583 = vadd.f32 0.0, %v3582
  %v3584 = vpop.f32.mrb[0].mxu0
  %3585 = vmatprep.mubr.f32.mxu0 %v3365
  %3586 = vmatmul.mubr.f32.gmra.mrb[0].mxu0 %v3323
  %v3587 = vpop.f32.mrb[0].mxu0
  %v3588 = vadd.f32 0.0, %v3587
  %v3589 = vpop.f32.mrb[0].mxu0
  %3590 = vmatprep.mubr.f32.mxu0 %v3368
  %3591 = vmatmul.mubr.f32.gmra.mrb[0].mxu0 %v3325
  %v3592 = vpop.f32.mrb[0].mxu0
  %v3593 = vadd.f32 0.0, %v3592
  %v3594 = vpop.f32.mrb[0].mxu0
  %3595 = vmatprep.mubr.f32.mxu0 %v3371
  %3596 = vmatmul.mubr.f32.gmra.mrb[0].mxu0 %v3327
  %v3597 = vpop.f32.mrb[0].mxu0
  %v3598 = vadd.f32 0.0, %v3597
  %v3599 = vpop.f32.mrb[0].mxu0
  %3600 = vmatprep.mubr.f32.mxu0 %v3374
  %3601 = vmatmul.mubr.f32.gmra.mrb[0].mxu0 %v3329
  %v3602 = vpop.f32.mrb[0].mxu0
  %v3603 = vadd.f32 0.0, %v3602
  %v3604 = vpop.f32.mrb[0].mxu0
  %3605 = vdwg.mxu0
  %v3606 = vmax.f32 %v3443, %v3568
  %v3607 = vmax.f32 %v3448, %v3573
  %v3608 = vmax.f32 %v3453, %v3578
  %v3609 = vmax.f32 %v3458, %v3583
  %v3610 = vmax.f32 %v3463, %v3588
  %v3611 = vmax.f32 %v3468, %v3593
  %v3612 = vmax.f32 %v3473, %v3598
  %v3613 = vmax.f32 %v3478, %v3603
  %v3614 = vmax.f32 %v3606, %v3607
  %v3615 = vmax.f32 %v3608, %v3609
  %v3616 = vmax.f32 %v3610, %v3611
  %v3617 = vmax.f32 %v3612, %v3613
  %v3618 = vld [vmem:[%s14] sm:$0xf]
  %v3619 = vadd.f32 %v3614, %v3615
  %v3620 = vadd.f32 %v3619, %v3616
  %v3621 = vadd.f32 %v3620, %v3617
  %v3622 = vlaneseq
  %v3623 = vshrl.u32 %v3622, 7
  %v3624 = vsub.s32 0, %v3623
  %v3625 = vrot.slane %v3618, %v3624
  %v3626 = vmul.f32 %v3621, %v3625
  %vm3627 = vcmask 654336
  %v3628 = vsel %vm3627, %v3626, 0.0
  %3629 = vadd.xlane.f32.xlu0 %v3628
  %v3630 = vpop.xlane.xlu0 %3629
  %v3631 = vmul.f32 %v3630, 0.0125
  %v3632 = vmul.f32 %v3631, %v3625
  %v3633 = vadd.f32 %v3632, 0.0
  %v3634 = vlaneseq
  %v3635 = vshrl.u32 %v3634, 7
  %v3636 = vsub.s32 1, %v3635
  %v3637 = vrot.slane %v3618, %v3636
  %v3638 = vmul.f32 %v3621, %v3637
  %v3639 = vsel %vm3627, %v3638, 0.0
  %3640 = vadd.xlane.f32.xlu0 %v3639
  %v3641 = vpop.xlane.xlu0 %3640
  %v3642 = vmul.f32 %v3641, 0.0125
  %v3643 = vmul.f32 %v3642, %v3637
  %v3644 = vadd.f32 %v3633, %v3643
  %v3645 = vlaneseq
  %v3646 = vshrl.u32 %v3645, 7
  %v3647 = vsub.s32 2, %v3646
  %v3648 = vrot.slane %v3618, %v3647
  %v3649 = vmul.f32 %v3621, %v3648
  %v3650 = vsel %vm3627, %v3649, 0.0
  %3651 = vadd.xlane.f32.xlu0 %v3650
  %v3652 = vpop.xlane.xlu0 %3651
  %v3653 = vmul.f32 %v3652, 0.0125
  %v3654 = vmul.f32 %v3653, %v3648
  %v3655 = vadd.f32 %v3644, %v3654
  %v3656 = vlaneseq
  %v3657 = vshrl.u32 %v3656, 7
  %v3658 = vsub.s32 3, %v3657
  %v3659 = vrot.slane %v3618, %v3658
  %v3660 = vmul.f32 %v3621, %v3659
  %v3661 = vsel %vm3627, %v3660, 0.0
  %3662 = vadd.xlane.f32.xlu0 %v3661
  %v3663 = vpop.xlane.xlu0 %3662
  %v3664 = vmul.f32 %v3663, 0.0125
  %v3665 = vmul.f32 %v3664, %v3659
  %v3666 = vadd.f32 %v3655, %v3665
  %v3667 = vsub.f32 %v3614, %v3666
  %v3668 = vsub.f32 %v3615, %v3666
  %v3669 = vsub.f32 %v3616, %v3666
  %v3670 = vsub.f32 %v3617, %v3666
  %v3671 = vmul.f32 %v3667, %v3667
  %v3672 = vmul.f32 %v3668, %v3668
  %v3673 = vadd.f32 %v3671, %v3672
  %v3674 = vmul.f32 %v3669, %v3669
  %v3675 = vadd.f32 %v3673, %v3674
  %v3676 = vmul.f32 %v3670, %v3670
  %v3677 = vadd.f32 %v3675, %v3676
  %v3678 = vmul.f32 %v3677, %v3625
  %v3679 = vsel %vm3627, %v3678, 0.0
  %3680 = vadd.xlane.f32.xlu0 %v3679
  %v3681 = vpop.xlane.xlu0 %3680
  %v3682 = vmul.f32 %v3681, 0.0125
  %v3683 = vmul.f32 %v3682, %v3625
  %v3684 = vadd.f32 %v3683, 0.0
  %v3685 = vmul.f32 %v3677, %v3637
  %v3686 = vsel %vm3627, %v3685, 0.0
  %3687 = vadd.xlane.f32.xlu0 %v3686
  %v3688 = vpop.xlane.xlu0 %3687
  %v3689 = vmul.f32 %v3688, 0.0125
  %v3690 = vmul.f32 %v3689, %v3637
  %v3691 = vadd.f32 %v3684, %v3690
  %v3692 = vmul.f32 %v3677, %v3648
  %v3693 = vsel %vm3627, %v3692, 0.0
  %3694 = vadd.xlane.f32.xlu0 %v3693
  %v3695 = vpop.xlane.xlu0 %3694
  %v3696 = vmul.f32 %v3695, 0.0125
  %v3697 = vmul.f32 %v3696, %v3648
  %v3698 = vadd.f32 %v3691, %v3697
  %v3699 = vmul.f32 %v3677, %v3659
  %v3700 = vsel %vm3627, %v3699, 0.0
  %3701 = vadd.xlane.f32.xlu0 %v3700
  %v3702 = vpop.xlane.xlu0 %3701
  %v3703 = vmul.f32 %v3702, 0.0125
  %v3704 = vmul.f32 %v3703, %v3659
  %v3705 = vadd.f32 %v3698, %v3704
  %v3706 = vadd.f32 %v3705, 1e-05
  %v3707 = vrsqrt.pop %v3706
  %v3708 = vld [vmem:[%s12] sm:$0x1]
  %v3709 = vld [vmem:[%s13] sm:$0x1]
  %v3710 = vmul.f32 %v3667, %v3707
  %v3712 = vlaneseq
  %v3713 = vshrl.u32 %v3712, 7
  %v3714 = vsub.s32 0, %v3713
  %v3715 = vrot.slane %v3708, %v3714
  %v3717 = vmul.f32 %v3710, %v3715
  %v3719 = vlaneseq
  %v3720 = vshrl.u32 %v3719, 7
  %v3721 = vsub.s32 0, %v3720
  %v3722 = vrot.slane %v3709, %v3721
  %v3724 = vadd.f32 %v3717, %v3722
  %vm3725 = vcmp.gt.f32.partialorder %v3724, 0.0
  %v3726 = vmul.f32 %v3724, 0.1
  %v3727 = vsel %vm3725, %v3724, %v3726
  %v3728 = vmul.f32 %v3668, %v3707
  %v3729 = vmul.f32 %v3728, %v3715
  %v3730 = vadd.f32 %v3729, %v3722
  %vm3731 = vcmp.gt.f32.partialorder %v3730, 0.0
  %v3732 = vmul.f32 %v3730, 0.1
  %v3733 = vsel %vm3731, %v3730, %v3732
  %v3734 = vmul.f32 %v3669, %v3707
  %v3735 = vmul.f32 %v3734, %v3715
  %v3736 = vadd.f32 %v3735, %v3722
  %vm3737 = vcmp.gt.f32.partialorder %v3736, 0.0
  %v3738 = vmul.f32 %v3736, 0.1
  %v3739 = vsel %vm3737, %v3736, %v3738
  %v3740 = vmul.f32 %v3670, %v3707
  %v3741 = vmul.f32 %v3740, %v3715
  %v3742 = vadd.f32 %v3741, %v3722
  %vm3743 = vcmp.gt.f32.partialorder %v3742, 0.0
  %v3744 = vmul.f32 %v3742, 0.1
  %v3745 = vsel %vm3743, %v3742, %v3744
  %v3746 = vpack.c.bf16 %v3727, %v3727
  %v3747 = vld [vmem:[%s15] sm:$0xf]
  %v3748 = vld [vmem:[%s15 + $0x4] sm:$0xf]
  %v3749 = vld [vmem:[%s15 + $0x8] sm:$0xf]
  %v3750 = vld [vmem:[%s15 + $0xc] sm:$0xf]
  %v3751 = vld [vmem:[%s15 + $0x10] sm:$0xf]
  %v3752 = vld [vmem:[%s15 + $0x14] sm:$0xf]
  %v3753 = vld [vmem:[%s15 + $0x18] sm:$0xf]
  %v3754 = vld [vmem:[%s15 + $0x1c] sm:$0xf]
  %v3755 = vld [vmem:[%s15 + $0x20] sm:$0xf]
  %v3756 = vld [vmem:[%s15 + $0x24] sm:$0xf]
  %v3757 = vpack.c.bf16 %v3733, %v3733
  %s3758 = scalar_lea.vmem %s15, 40
  %v3759 = vld [vmem:[%s3758] sm:$0xf]
  %v3760 = vld [vmem:[%s3758 + $0x4] sm:$0xf]
  %v3761 = vld [vmem:[%s3758 + $0x8] sm:$0xf]
  %v3762 = vld [vmem:[%s3758 + $0xc] sm:$0xf]
  %v3763 = vld [vmem:[%s3758 + $0x10] sm:$0xf]
  %v3764 = vld [vmem:[%s3758 + $0x14] sm:$0xf]
  %v3765 = vld [vmem:[%s3758 + $0x18] sm:$0xf]
  %v3766 = vld [vmem:[%s3758 + $0x1c] sm:$0xf]
  %v3767 = vld [vmem:[%s3758 + $0x20] sm:$0xf]
  %v3768 = vld [vmem:[%s3758 + $0x24] sm:$0xf]
  %v3779 = vunpack.c.l.b16 %v3759
  %v3780 = vunpack.c.l.b16 %v3760
  %v3781 = vunpack.c.l.b16 %v3761
  %v3782 = vunpack.c.l.b16 %v3762
  %v3783 = vunpack.c.l.b16 %v3763
  %v3784 = vunpack.c.l.b16 %v3764
  %v3785 = vunpack.c.l.b16 %v3765
  %v3786 = vunpack.c.l.b16 %v3766
  %v3787 = vunpack.c.l.b16 %v3767
  %v3788 = vunpack.c.l.b16 %v3768
  %v3789 = vpack.c.b16 %v3780, %v3779
  %v3790 = vpack.c.b16 %v3782, %v3781
  %v3791 = vpack.c.b16 %v3784, %v3783
  %v3792 = vpack.c.b16 %v3786, %v3785
  %v3793 = vpack.c.b16 %v3788, %v3787
  %v3800 = vsel %vm3627, %v3757, 0
  %3802 = vmatprep.subr.bf16.mxu0 0
  %3803 = vmatpush1.bf16.msra.mxu0 %v3789
  %3804 = vmatprep.subr.bf16.mxu0 0
  %3805 = vmatpush1.bf16.msra.mxu0 %v3790
  %3806 = vmatprep.subr.bf16.mxu0 0
  %3807 = vmatpush1.bf16.msra.mxu0 %v3791
  %3808 = vmatprep.subr.bf16.mxu0 0
  %3809 = vmatpush1.bf16.msra.mxu0 %v3792
  %3810 = vmatprep.subr.bf16.mxu0 0
  %3811 = vmatpush1.bf16.msra.mxu0 %v3793
  %3812 = vmatprep.subr.bf16.mxu0 0
  %3813 = vmatpush1.bf16.msra.mxu0 0
  %3814 = vmatprep.subr.bf16.mxu0 0
  %3815 = vmatpush1.bf16.msra.mxu0 0
  %3816 = vmatprep.subr.bf16.mxu0 0
  %3817 = vmatpush1.bf16.msra.mxu0 0
  %3818 = vmatprep.subr.bf16.mxu0 0
  %3819 = vmatpush1.bf16.msra.mxu0 0
  %3820 = vmatprep.subr.bf16.mxu0 0
  %3821 = vmatpush1.bf16.msra.mxu0 0
  %3822 = vmatprep.subr.bf16.mxu0 0
  %3823 = vmatpush1.bf16.msra.mxu0 0
  %3824 = vmatprep.subr.bf16.mxu0 0
  %3825 = vmatpush1.bf16.msra.mxu0 0
  %3826 = vmatprep.subr.bf16.mxu0 0
  %3827 = vmatpush1.bf16.msra.mxu0 0
  %3828 = vmatprep.subr.bf16.mxu0 0
  %3829 = vmatpush1.bf16.msra.mxu0 0
  %3830 = vmatprep.subr.bf16.mxu0 0
  %3831 = vmatpush1.bf16.msra.mxu0 0
  %3832 = vmatprep.subr.bf16.mxu0 0
  %3833 = vmatpush1.bf16.msra.mxu0 0
  %3834 = vmatprep.mubr.bf16.mxu0 0
  %3835 = vmatmul.mubr.bf16.gmra.mrb[0].mxu0 %v3800
  %v3836 = vpop.f32.mrb[0].mxu0
  %v3837 = vadd.f32 0.0, %v3836
  %v3838 = vpop.f32.mrb[0].mxu0
  %v3839 = vpop.f32.mrb[0].mxu0
  %v3840 = vpop.f32.mrb[0].mxu0
  %3841 = vdwg.mxu0
  %v3852 = vunpack.c.l.b16 %v3747
  %v3853 = vunpack.c.l.b16 %v3748
  %v3854 = vunpack.c.l.b16 %v3749
  %v3855 = vunpack.c.l.b16 %v3750
  %v3856 = vunpack.c.l.b16 %v3751
  %v3857 = vunpack.c.l.b16 %v3752
  %v3858 = vunpack.c.l.b16 %v3753
  %v3859 = vunpack.c.l.b16 %v3754
  %v3860 = vunpack.c.l.b16 %v3755
  %v3861 = vunpack.c.l.b16 %v3756
  %v3862 = vpack.c.b16 %v3853, %v3852
  %v3863 = vpack.c.b16 %v3855, %v3854
  %v3864 = vpack.c.b16 %v3857, %v3856
  %v3865 = vpack.c.b16 %v3859, %v3858
  %v3866 = vpack.c.b16 %v3861, %v3860
  %v3873 = vsel %vm3627, %v3746, 0
  %3875 = vmatprep.subr.bf16.mxu0 0
  %3876 = vmatpush1.bf16.msra.mxu0 %v3862
  %3877 = vmatprep.subr.bf16.mxu0 0
  %3878 = vmatpush1.bf16.msra.mxu0 %v3863
  %3879 = vmatprep.subr.bf16.mxu0 0
  %3880 = vmatpush1.bf16.msra.mxu0 %v3864
  %3881 = vmatprep.subr.bf16.mxu0 0
  %3882 = vmatpush1.bf16.msra.mxu0 %v3865
  %3883 = vmatprep.subr.bf16.mxu0 0
  %3884 = vmatpush1.bf16.msra.mxu0 %v3866
  %3885 = vmatprep.subr.bf16.mxu0 0
  %3886 = vmatpush1.bf16.msra.mxu0 0
  %3887 = vmatprep.subr.bf16.mxu0 0
  %3888 = vmatpush1.bf16.msra.mxu0 0
  %3889 = vmatprep.subr.bf16.mxu0 0
  %3890 = vmatpush1.bf16.msra.mxu0 0
  %3891 = vmatprep.subr.bf16.mxu0 0
  %3892 = vmatpush1.bf16.msra.mxu0 0
  %3893 = vmatprep.subr.bf16.mxu0 0
  %3894 = vmatpush1.bf16.msra.mxu0 0
  %3895 = vmatprep.subr.bf16.mxu0 0
  %3896 = vmatpush1.bf16.msra.mxu0 0
  %3897 = vmatprep.subr.bf16.mxu0 0
  %3898 = vmatpush1.bf16.msra.mxu0 0
  %3899 = vmatprep.subr.bf16.mxu0 0
  %3900 = vmatpush1.bf16.msra.mxu0 0
  %3901 = vmatprep.subr.bf16.mxu0 0
  %3902 = vmatpush1.bf16.msra.mxu0 0
  %3903 = vmatprep.subr.bf16.mxu0 0
  %3904 = vmatpush1.bf16.msra.mxu0 0
  %3905 = vmatprep.subr.bf16.mxu0 0
  %3906 = vmatpush1.bf16.msra.mxu0 0
  %3907 = vmatprep.mubr.bf16.mxu0 0
  %3908 = vmatmul.mubr.bf16.gmra.mrb[0].mxu0 %v3873
  %v3909 = vpop.f32.mrb[0].mxu0
  %v3910 = vadd.f32 %v3837, %v3909
  %v3911 = vpop.f32.mrb[0].mxu0
  %v3912 = vpop.f32.mrb[0].mxu0
  %v3913 = vpop.f32.mrb[0].mxu0
  %3914 = vdwg.mxu0
  %v3915 = vpack.c.bf16 %v3739, %v3739
  %s3916 = scalar_lea.vmem %s15, 80
  %v3917 = vld [vmem:[%s3916] sm:$0xf]
  %v3918 = vld [vmem:[%s3916 + $0x4] sm:$0xf]
  %v3919 = vld [vmem:[%s3916 + $0x8] sm:$0xf]
  %v3920 = vld [vmem:[%s3916 + $0xc] sm:$0xf]
  %v3921 = vld [vmem:[%s3916 + $0x10] sm:$0xf]
  %v3922 = vld [vmem:[%s3916 + $0x14] sm:$0xf]
  %v3923 = vld [vmem:[%s3916 + $0x18] sm:$0xf]
  %v3924 = vld [vmem:[%s3916 + $0x1c] sm:$0xf]
  %v3925 = vld [vmem:[%s3916 + $0x20] sm:$0xf]
  %v3926 = vld [vmem:[%s3916 + $0x24] sm:$0xf]
  %v3937 = vunpack.c.l.b16 %v3917
  %v3938 = vunpack.c.l.b16 %v3918
  %v3939 = vunpack.c.l.b16 %v3919
  %v3940 = vunpack.c.l.b16 %v3920
  %v3941 = vunpack.c.l.b16 %v3921
  %v3942 = vunpack.c.l.b16 %v3922
  %v3943 = vunpack.c.l.b16 %v3923
  %v3944 = vunpack.c.l.b16 %v3924
  %v3945 = vunpack.c.l.b16 %v3925
  %v3946 = vunpack.c.l.b16 %v3926
  %v3947 = vpack.c.b16 %v3938, %v3937
  %v3948 = vpack.c.b16 %v3940, %v3939
  %v3949 = vpack.c.b16 %v3942, %v3941
  %v3950 = vpack.c.b16 %v3944, %v3943
  %v3951 = vpack.c.b16 %v3946, %v3945
  %v3958 = vsel %vm3627, %v3915, 0
  %3960 = vmatprep.subr.bf16.mxu0 0
  %3961 = vmatpush1.bf16.msra.mxu0 %v3947
  %3962 = vmatprep.subr.bf16.mxu0 0
  %3963 = vmatpush1.bf16.msra.mxu0 %v3948
  %3964 = vmatprep.subr.bf16.mxu0 0
  %3965 = vmatpush1.bf16.msra.mxu0 %v3949
  %3966 = vmatprep.subr.bf16.mxu0 0
  %3967 = vmatpush1.bf16.msra.mxu0 %v3950
  %3968 = vmatprep.subr.bf16.mxu0 0
  %3969 = vmatpush1.bf16.msra.mxu0 %v3951
  %3970 = vmatprep.subr.bf16.mxu0 0
  %3971 = vmatpush1.bf16.msra.mxu0 0
  %3972 = vmatprep.subr.bf16.mxu0 0
  %3973 = vmatpush1.bf16.msra.mxu0 0
  %3974 = vmatprep.subr.bf16.mxu0 0
  %3975 = vmatpush1.bf16.msra.mxu0 0
  %3976 = vmatprep.subr.bf16.mxu0 0
  %3977 = vmatpush1.bf16.msra.mxu0 0
  %3978 = vmatprep.subr.bf16.mxu0 0
  %3979 = vmatpush1.bf16.msra.mxu0 0
  %3980 = vmatprep.subr.bf16.mxu0 0
  %3981 = vmatpush1.bf16.msra.mxu0 0
  %3982 = vmatprep.subr.bf16.mxu0 0
  %3983 = vmatpush1.bf16.msra.mxu0 0
  %3984 = vmatprep.subr.bf16.mxu0 0
  %3985 = vmatpush1.bf16.msra.mxu0 0
  %3986 = vmatprep.subr.bf16.mxu0 0
  %3987 = vmatpush1.bf16.msra.mxu0 0
  %3988 = vmatprep.subr.bf16.mxu0 0
  %3989 = vmatpush1.bf16.msra.mxu0 0
  %3990 = vmatprep.subr.bf16.mxu0 0
  %3991 = vmatpush1.bf16.msra.mxu0 0
  %3992 = vmatprep.mubr.bf16.mxu0 0
  %3993 = vmatmul.mubr.bf16.gmra.mrb[0].mxu0 %v3958
  %v3994 = vpop.f32.mrb[0].mxu0
  %v3995 = vadd.f32 0.0, %v3994
  %v3996 = vpop.f32.mrb[0].mxu0
  %v3997 = vpop.f32.mrb[0].mxu0
  %v3998 = vpop.f32.mrb[0].mxu0
  %3999 = vdwg.mxu0
  %v4000 = vadd.f32 %v3910, %v3995
  %v4001 = vpack.c.bf16 %v3745, %v3745
  %s4002 = scalar_lea.vmem %s15, 120
  %v4003 = vld [vmem:[%s4002] sm:$0xf]
  %v4004 = vld [vmem:[%s4002 + $0x4] sm:$0xf]
  %v4005 = vld [vmem:[%s4002 + $0x8] sm:$0xf]
  %v4006 = vld [vmem:[%s4002 + $0xc] sm:$0xf]
  %v4007 = vld [vmem:[%s4002 + $0x10] sm:$0xf]
  %v4008 = vld [vmem:[%s4002 + $0x14] sm:$0xf]
  %v4009 = vld [vmem:[%s4002 + $0x18] sm:$0xf]
  %v4010 = vld [vmem:[%s4002 + $0x1c] sm:$0xf]
  %v4011 = vld [vmem:[%s4002 + $0x20] sm:$0xf]
  %v4012 = vld [vmem:[%s4002 + $0x24] sm:$0xf]
  %v4023 = vunpack.c.l.b16 %v4003
  %v4024 = vunpack.c.l.b16 %v4004
  %v4025 = vunpack.c.l.b16 %v4005
  %v4026 = vunpack.c.l.b16 %v4006
  %v4027 = vunpack.c.l.b16 %v4007
  %v4028 = vunpack.c.l.b16 %v4008
  %v4029 = vunpack.c.l.b16 %v4009
  %v4030 = vunpack.c.l.b16 %v4010
  %v4031 = vunpack.c.l.b16 %v4011
  %v4032 = vunpack.c.l.b16 %v4012
  %v4033 = vpack.c.b16 %v4024, %v4023
  %v4034 = vpack.c.b16 %v4026, %v4025
  %v4035 = vpack.c.b16 %v4028, %v4027
  %v4036 = vpack.c.b16 %v4030, %v4029
  %v4037 = vpack.c.b16 %v4032, %v4031
  %v4044 = vsel %vm3627, %v4001, 0
  %4046 = vmatprep.subr.bf16.mxu0 0
  %4047 = vmatpush1.bf16.msra.mxu0 %v4033
  %4048 = vmatprep.subr.bf16.mxu0 0
  %4049 = vmatpush1.bf16.msra.mxu0 %v4034
  %4050 = vmatprep.subr.bf16.mxu0 0
  %4051 = vmatpush1.bf16.msra.mxu0 %v4035
  %4052 = vmatprep.subr.bf16.mxu0 0
  %4053 = vmatpush1.bf16.msra.mxu0 %v4036
  %4054 = vmatprep.subr.bf16.mxu0 0
  %4055 = vmatpush1.bf16.msra.mxu0 %v4037
  %4056 = vmatprep.subr.bf16.mxu0 0
  %4057 = vmatpush1.bf16.msra.mxu0 0
  %4058 = vmatprep.subr.bf16.mxu0 0
  %4059 = vmatpush1.bf16.msra.mxu0 0
  %4060 = vmatprep.subr.bf16.mxu0 0
  %4061 = vmatpush1.bf16.msra.mxu0 0
  %4062 = vmatprep.subr.bf16.mxu0 0
  %4063 = vmatpush1.bf16.msra.mxu0 0
  %4064 = vmatprep.subr.bf16.mxu0 0
  %4065 = vmatpush1.bf16.msra.mxu0 0
  %4066 = vmatprep.subr.bf16.mxu0 0
  %4067 = vmatpush1.bf16.msra.mxu0 0
  %4068 = vmatprep.subr.bf16.mxu0 0
  %4069 = vmatpush1.bf16.msra.mxu0 0
  %4070 = vmatprep.subr.bf16.mxu0 0
  %4071 = vmatpush1.bf16.msra.mxu0 0
  %4072 = vmatprep.subr.bf16.mxu0 0
  %4073 = vmatpush1.bf16.msra.mxu0 0
  %4074 = vmatprep.subr.bf16.mxu0 0
  %4075 = vmatpush1.bf16.msra.mxu0 0
  %4076 = vmatprep.subr.bf16.mxu0 0
  %4077 = vmatpush1.bf16.msra.mxu0 0
  %4078 = vmatprep.mubr.bf16.mxu0 0
  %4079 = vmatmul.mubr.bf16.gmra.mrb[0].mxu0 %v4044
  %v4080 = vpop.f32.mrb[0].mxu0
  %v4081 = vadd.f32 0.0, %v4080
  %v4082 = vpop.f32.mrb[0].mxu0
  %v4083 = vpop.f32.mrb[0].mxu0
  %v4084 = vpop.f32.mrb[0].mxu0
  %4085 = vdwg.mxu0
  %v4086 = vadd.f32 %v4000, %v4081
  %v4087 = vld [vmem:[%s16] sm:$0x1]
  %v4089 = vlaneseq
  %v4090 = vshrl.u32 %v4089, 7
  %v4091 = vsub.s32 0, %v4090
  %v4092 = vrot.slane %v4087, %v4091
  %v4094 = vadd.f32 %v4086, %v4092
  %v4095 = vld [vmem:[%s19] sm:$0xff]
  %v4096 = vld [vmem:[%s19 + $0x8] sm:$0x3]
  %v4097 = vlaneseq
  %v4098 = vshrl.u32 %v4097, 7
  %v4099 = vsub.s32 0, %v4098
  %v4100 = vrot.slane %v4095, %v4099
  %v4101 = vmul.f32 %v4094, %v4100
  %vm4102 = vcmask 523264
  %v4103 = vsel %vm4102, %v4101, 0.0
  %4104 = vadd.xlane.f32.xlu0 %v4103
  %v4105 = vpop.xlane.xlu0 %4104
  %v4106 = vmul.f32 %v4105, 0.2
  %v4107 = vmul.f32 %v4106, %v4100
  %v4108 = vadd.f32 %v4107, 0.0
  %v4109 = vlaneseq
  %v4110 = vshrl.u32 %v4109, 7
  %v4111 = vsub.s32 1, %v4110
  %v4112 = vrot.slane %v4095, %v4111
  %v4113 = vmul.f32 %v4094, %v4112
  %v4114 = vsel %vm4102, %v4113, 0.0
  %4115 = vadd.xlane.f32.xlu0 %v4114
  %v4116 = vpop.xlane.xlu0 %4115
  %v4117 = vmul.f32 %v4116, 0.2
  %v4118 = vmul.f32 %v4117, %v4112
  %v4119 = vadd.f32 %v4108, %v4118
  %v4120 = vlaneseq
  %v4121 = vshrl.u32 %v4120, 7
  %v4122 = vsub.s32 2, %v4121
  %v4123 = vrot.slane %v4095, %v4122
  %v4124 = vmul.f32 %v4094, %v4123
  %v4125 = vsel %vm4102, %v4124, 0.0
  %4126 = vadd.xlane.f32.xlu0 %v4125
  %v4127 = vpop.xlane.xlu0 %4126
  %v4128 = vmul.f32 %v4127, 0.2
  %v4129 = vmul.f32 %v4128, %v4123
  %v4130 = vadd.f32 %v4119, %v4129
  %v4131 = vlaneseq
  %v4132 = vshrl.u32 %v4131, 7
  %v4133 = vsub.s32 3, %v4132
  %v4134 = vrot.slane %v4095, %v4133
  %v4135 = vmul.f32 %v4094, %v4134
  %v4136 = vsel %vm4102, %v4135, 0.0
  %4137 = vadd.xlane.f32.xlu0 %v4136
  %v4138 = vpop.xlane.xlu0 %4137
  %v4139 = vmul.f32 %v4138, 0.2
  %v4140 = vmul.f32 %v4139, %v4134
  %v4141 = vadd.f32 %v4130, %v4140
  %v4142 = vlaneseq
  %v4143 = vshrl.u32 %v4142, 7
  %v4144 = vsub.s32 4, %v4143
  %v4145 = vrot.slane %v4095, %v4144
  %v4146 = vmul.f32 %v4094, %v4145
  %v4147 = vsel %vm4102, %v4146, 0.0
  %4148 = vadd.xlane.f32.xlu0 %v4147
  %v4149 = vpop.xlane.xlu0 %4148
  %v4150 = vmul.f32 %v4149, 0.2
  %v4151 = vmul.f32 %v4150, %v4145
  %v4152 = vadd.f32 %v4141, %v4151
  %v4153 = vlaneseq
  %v4154 = vshrl.u32 %v4153, 7
  %v4155 = vsub.s32 5, %v4154
  %v4156 = vrot.slane %v4095, %v4155
  %v4157 = vmul.f32 %v4094, %v4156
  %v4158 = vsel %vm4102, %v4157, 0.0
  %4159 = vadd.xlane.f32.xlu0 %v4158
  %v4160 = vpop.xlane.xlu0 %4159
  %v4161 = vmul.f32 %v4160, 0.2
  %v4162 = vmul.f32 %v4161, %v4156
  %v4163 = vadd.f32 %v4152, %v4162
  %v4164 = vlaneseq
  %v4165 = vshrl.u32 %v4164, 7
  %v4166 = vsub.s32 6, %v4165
  %v4167 = vrot.slane %v4095, %v4166
  %v4168 = vmul.f32 %v4094, %v4167
  %v4169 = vsel %vm4102, %v4168, 0.0
  %4170 = vadd.xlane.f32.xlu0 %v4169
  %v4171 = vpop.xlane.xlu0 %4170
  %v4172 = vmul.f32 %v4171, 0.2
  %v4173 = vmul.f32 %v4172, %v4167
  %v4174 = vadd.f32 %v4163, %v4173
  %v4175 = vlaneseq
  %v4176 = vshrl.u32 %v4175, 7
  %v4177 = vsub.s32 7, %v4176
  %v4178 = vrot.slane %v4095, %v4177
  %v4179 = vmul.f32 %v4094, %v4178
  %v4180 = vsel %vm4102, %v4179, 0.0
  %4181 = vadd.xlane.f32.xlu0 %v4180
  %v4182 = vpop.xlane.xlu0 %4181
  %v4183 = vmul.f32 %v4182, 0.2
  %v4184 = vmul.f32 %v4183, %v4178
  %v4185 = vadd.f32 %v4174, %v4184
  %v4186 = vlaneseq
  %v4187 = vshrl.u32 %v4186, 7
  %v4188 = vsub.s32 0, %v4187
  %v4189 = vrot.slane %v4096, %v4188
  %v4190 = vmul.f32 %v4094, %v4189
  %v4191 = vsel %vm4102, %v4190, 0.0
  %4192 = vadd.xlane.f32.xlu0 %v4191
  %v4193 = vpop.xlane.xlu0 %4192
  %v4194 = vmul.f32 %v4193, 0.2
  %v4195 = vmul.f32 %v4194, %v4189
  %v4196 = vadd.f32 %v4185, %v4195
  %v4197 = vlaneseq
  %v4198 = vshrl.u32 %v4197, 7
  %v4199 = vsub.s32 1, %v4198
  %v4200 = vrot.slane %v4096, %v4199
  %v4201 = vmul.f32 %v4094, %v4200
  %v4202 = vsel %vm4102, %v4201, 0.0
  %4203 = vadd.xlane.f32.xlu0 %v4202
  %v4204 = vpop.xlane.xlu0 %4203
  %v4205 = vmul.f32 %v4204, 0.2
  %v4206 = vmul.f32 %v4205, %v4200
  %v4207 = vadd.f32 %v4196, %v4206
  %v4208 = vsub.f32 %v4094, %v4207
  %v4209 = vmul.f32 %v4208, %v4208
  %v4210 = vmul.f32 %v4209, %v4100
  %v4211 = vsel %vm4102, %v4210, 0.0
  %4212 = vadd.xlane.f32.xlu0 %v4211
  %v4213 = vpop.xlane.xlu0 %4212
  %v4214 = vmul.f32 %v4213, 0.2
  %v4215 = vmul.f32 %v4214, %v4100
  %v4216 = vadd.f32 %v4215, 0.0
  %v4217 = vmul.f32 %v4209, %v4112
  %v4218 = vsel %vm4102, %v4217, 0.0
  %4219 = vadd.xlane.f32.xlu0 %v4218
  %v4220 = vpop.xlane.xlu0 %4219
  %v4221 = vmul.f32 %v4220, 0.2
  %v4222 = vmul.f32 %v4221, %v4112
  %v4223 = vadd.f32 %v4216, %v4222
  %v4224 = vmul.f32 %v4209, %v4123
  %v4225 = vsel %vm4102, %v4224, 0.0
  %4226 = vadd.xlane.f32.xlu0 %v4225
  %v4227 = vpop.xlane.xlu0 %4226
  %v4228 = vmul.f32 %v4227, 0.2
  %v4229 = vmul.f32 %v4228, %v4123
  %v4230 = vadd.f32 %v4223, %v4229
  %v4231 = vmul.f32 %v4209, %v4134
  %v4232 = vsel %vm4102, %v4231, 0.0
  %4233 = vadd.xlane.f32.xlu0 %v4232
  %v4234 = vpop.xlane.xlu0 %4233
  %v4235 = vmul.f32 %v4234, 0.2
  %v4236 = vmul.f32 %v4235, %v4134
  %v4237 = vadd.f32 %v4230, %v4236
  %v4238 = vmul.f32 %v4209, %v4145
  %v4239 = vsel %vm4102, %v4238, 0.0
  %4240 = vadd.xlane.f32.xlu0 %v4239
  %v4241 = vpop.xlane.xlu0 %4240
  %v4242 = vmul.f32 %v4241, 0.2
  %v4243 = vmul.f32 %v4242, %v4145
  %v4244 = vadd.f32 %v4237, %v4243
  %v4245 = vmul.f32 %v4209, %v4156
  %v4246 = vsel %vm4102, %v4245, 0.0
  %4247 = vadd.xlane.f32.xlu0 %v4246
  %v4248 = vpop.xlane.xlu0 %4247
  %v4249 = vmul.f32 %v4248, 0.2
  %v4250 = vmul.f32 %v4249, %v4156
  %v4251 = vadd.f32 %v4244, %v4250
  %v4252 = vmul.f32 %v4209, %v4167
  %v4253 = vsel %vm4102, %v4252, 0.0
  %4254 = vadd.xlane.f32.xlu0 %v4253
  %v4255 = vpop.xlane.xlu0 %4254
  %v4256 = vmul.f32 %v4255, 0.2
  %v4257 = vmul.f32 %v4256, %v4167
  %v4258 = vadd.f32 %v4251, %v4257
  %v4259 = vmul.f32 %v4209, %v4178
  %v4260 = vsel %vm4102, %v4259, 0.0
  %4261 = vadd.xlane.f32.xlu0 %v4260
  %v4262 = vpop.xlane.xlu0 %4261
  %v4263 = vmul.f32 %v4262, 0.2
  %v4264 = vmul.f32 %v4263, %v4178
  %v4265 = vadd.f32 %v4258, %v4264
  %v4266 = vmul.f32 %v4209, %v4189
  %v4267 = vsel %vm4102, %v4266, 0.0
  %4268 = vadd.xlane.f32.xlu0 %v4267
  %v4269 = vpop.xlane.xlu0 %4268
  %v4270 = vmul.f32 %v4269, 0.2
  %v4271 = vmul.f32 %v4270, %v4189
  %v4272 = vadd.f32 %v4265, %v4271
  %v4273 = vmul.f32 %v4209, %v4200
  %v4274 = vsel %vm4102, %v4273, 0.0
  %4275 = vadd.xlane.f32.xlu0 %v4274
  %v4276 = vpop.xlane.xlu0 %4275
  %v4277 = vmul.f32 %v4276, 0.2
  %v4278 = vmul.f32 %v4277, %v4200
  %v4279 = vadd.f32 %v4272, %v4278
  %v4280 = vadd.f32 %v4279, 1e-05
  %v4281 = vrsqrt.pop %v4280
  %v4282 = vmul.f32 %v4208, %v4281
  %v4283 = vld [vmem:[%s17] sm:$0x1]
  %v4285 = vlaneseq
  %v4286 = vshrl.u32 %v4285, 7
  %v4287 = vsub.s32 0, %v4286
  %v4288 = vrot.slane %v4283, %v4287
  %v4290 = vmul.f32 %v4282, %v4288
  %v4291 = vld [vmem:[%s18] sm:$0x1]
  %v4293 = vlaneseq
  %v4294 = vshrl.u32 %v4293, 7
  %v4295 = vsub.s32 0, %v4294
  %v4296 = vrot.slane %v4291, %v4295
  %v4298 = vadd.f32 %v4290, %v4296
  %vm4299 = vcmp.gt.f32.partialorder %v4298, 0.0
  %v4300 = vmul.f32 %v4298, 0.1
  %v4301 = vsel %vm4299, %v4298, %v4300
  %v4302 = vld [vmem:[%s20] sm:$0xff]
  %v4303 = vld [vmem:[%s20 + $0x8] sm:$0xff]
  %v4304 = vld [vmem:[%s20 + $0x10] sm:$0xff]
  %v4305 = vld [vmem:[%s20 + $0x18] sm:$0xff]
  %v4306 = vld [vmem:[%s20 + $0x20] sm:$0xff]
  %v4307 = vld [vmem:[%s20 + $0x28] sm:$0xff]
  %v4308 = vld [vmem:[%s20 + $0x30] sm:$0xff]
  %v4309 = vld [vmem:[%s20 + $0x38] sm:$0xff]
  %v4310 = vld [vmem:[%s21] sm:$0x1]
  %v4312 = vlaneseq
  %v4313 = vshrl.u32 %v4312, 7
  %v4314 = vsub.s32 0, %v4313
  %v4315 = vrot.slane %v4310, %v4314
  %v4318 = vsel %vm4102, %v4301, 0
  %4320 = vmatprep.subr.mxu0 0.0
  %4321 = vmatpush1.msra.mxu0 %v4302
  %4322 = vmatprep.subr.mxu0 0.0
  %4323 = vmatpush1.msra.mxu0 %v4303
  %4324 = vmatprep.subr.mxu0 0.0
  %4325 = vmatpush1.msra.mxu0 %v4304
  %4326 = vmatprep.subr.mxu0 0.0
  %4327 = vmatpush1.msra.mxu0 %v4305
  %4328 = vmatprep.subr.mxu0 0.0
  %4329 = vmatpush1.msra.mxu0 %v4306
  %4330 = vmatprep.subr.mxu0 0.0
  %4331 = vmatpush1.msra.mxu0 %v4307
  %4332 = vmatprep.subr.mxu0 0.0
  %4333 = vmatpush1.msra.mxu0 %v4308
  %4334 = vmatprep.subr.mxu0 0.0
  %4335 = vmatpush1.msra.mxu0 %v4309
  %4336 = vmatprep.subr.mxu0 0.0
  %4337 = vmatpush1.msra.mxu0 0.0
  %4338 = vmatprep.subr.mxu0 0.0
  %4339 = vmatpush1.msra.mxu0 0.0
  %4340 = vmatprep.subr.mxu0 0.0
  %4341 = vmatpush1.msra.mxu0 0.0
  %4342 = vmatprep.subr.mxu0 0.0
  %4343 = vmatpush1.msra.mxu0 0.0
  %4344 = vmatprep.subr.mxu0 0.0
  %4345 = vmatpush1.msra.mxu0 0.0
  %4346 = vmatprep.subr.mxu0 0.0
  %4347 = vmatpush1.msra.mxu0 0.0
  %4348 = vmatprep.subr.mxu0 0.0
  %4349 = vmatpush1.msra.mxu0 0.0
  %4350 = vmatprep.subr.mxu0 0.0
  %4351 = vmatpush1.msra.mxu0 0.0
  %4352 = vmatprep.subr.mxu0 0.0
  %4353 = vmatpush1.msra.mxu0 0.0
  %4354 = vmatprep.subr.mxu0 0.0
  %4355 = vmatpush1.msra.mxu0 0.0
  %4356 = vmatprep.subr.mxu0 0.0
  %4357 = vmatpush1.msra.mxu0 0.0
  %4358 = vmatprep.subr.mxu0 0.0
  %4359 = vmatpush1.msra.mxu0 0.0
  %4360 = vmatprep.subr.mxu0 0.0
  %4361 = vmatpush1.msra.mxu0 0.0
  %4362 = vmatprep.subr.mxu0 0.0
  %4363 = vmatpush1.msra.mxu0 0.0
  %4364 = vmatprep.subr.mxu0 0.0
  %4365 = vmatpush1.msra.mxu0 0.0
  %4366 = vmatprep.subr.mxu0 0.0
  %4367 = vmatpush1.msra.mxu0 0.0
  %4368 = vmatprep.subr.mxu0 0.0
  %4369 = vmatpush1.msra.mxu0 0.0
  %4370 = vmatprep.subr.mxu0 0.0
  %4371 = vmatpush1.msra.mxu0 0.0
  %4372 = vmatprep.subr.mxu0 0.0
  %4373 = vmatpush1.msra.mxu0 0.0
  %4374 = vmatprep.subr.mxu0 0.0
  %4375 = vmatpush1.msra.mxu0 0.0
  %4376 = vmatprep.subr.mxu0 0.0
  %4377 = vmatpush1.msra.mxu0 0.0
  %4378 = vmatprep.subr.mxu0 0.0
  %4379 = vmatpush1.msra.mxu0 0.0
  %4380 = vmatprep.subr.mxu0 0.0
  %4381 = vmatpush1.msra.mxu0 0.0
  %4382 = vmatprep.subr.mxu0 0.0
  %4383 = vmatpush1.msra.mxu0 0.0
  %4384 = vmatprep.mubr.f32.mxu0 0.0
  %4385 = vmatmul.mubr.f32.gmra.mrb[0].mxu0 %v4318
  %v4386 = vpop.f32.mrb[0].mxu0
  %v4387 = vadd.f32 %v4315, %v4386
  %v4388 = vpop.f32.mrb[0].mxu0
  %4389 = vdwg.mxu0
  %vm4390 = vcmask 80896
  %v4391 = vsel %vm4390, %v4387, -inf
  %4392 = vmax.xlane.f32.xlu0 %v4391
  %v4393 = vpop.xlane.xlu0 %4392
  %v4394 = vsub.f32 %v4387, %v4393
  %v4395 = vmul.f32 %v4394, 1.442695
  %v4396 = vpow.pop %v4395
  %v4397 = vsel %vm4390, %v4396, 0.0
  %4398 = vadd.xlane.f32.xlu0 %v4397
  %v4399 = vpop.xlane.xlu0 %4398
  %v4400 = vlog2.pop %v4399
  %v4401 = vmul.f32 %v4400, 0.6931472
  %v4402 = vsub.f32 %v4394, %v4401
  %4403 = vst.msk [vmem:[%s22] sm:$0xff] %vm4390, %v4402
  // Predicated region
  $region90: #{net_forward.1} parent=0 // pred_check
    _
  $region91: #{net_forward.1} parent=0 // pred_check_branch
    %4405 = sbr.rel (0) target = $region93
  $region92: #{net_forward.1} parent=0 // pred_region
    _
  $region93: #{net_forward.1} parent=0 // pred_fallthru
    _
  // Predicated region
  $region94: #{net_forward.1} parent=0 // pred_check
    _
  $region95: #{net_forward.1} parent=0 // pred_check_branch
    %4407 = sbr.rel (0) target = $region97
  $region96: #{net_forward.1} parent=0 // pred_region
    _
  $region97: #{net_forward.1} parent=0 // pred_fallthru
    _

</llo_original>
